<compile_context>
chip_gen: v6e
topology: v6e:2x2x1
jax: 0.10.0
libtpu: 0.0.40
codegen_flags: <defaults>
</compile_context>

<pallas_src>
import functools

import jax
import jax.numpy as jnp
from jax.experimental import pallas as pl
from jax.experimental.pallas import tpu as pltpu

BN_EPS = 1e-5
LANE = 128
_H_RESIDENT_BYTES = 8 * 1024 * 1024      # keep h VMEM-resident below this
_A_TILE_BUDGET_BYTES = 4 * 1024 * 1024   # double-buffered int8 A-tile budget


# ---------------------------------------------------------------------------
# small helpers
# ---------------------------------------------------------------------------
def _ceil_to(x, m):
    return ((x + m - 1) // m) * m


def _pad2(x, rows, cols):
    return jnp.pad(x, ((0, rows - x.shape[0]), (0, cols - x.shape[1])))


@functools.lru_cache(maxsize=None)
def _vmem_limit_bytes():
    # Generation-aware scoped VMEM budget: ~3/4 of physical, capped at 96 MiB
    # (v5e/v6e: 128 MiB physical -> 96 MiB; v7x: 64 MiB -> 48 MiB).
    try:
        cap = int(pltpu.get_tpu_info().vmem_capacity_bytes)
        return int(min(cap * 3 // 4, 96 * 1024 * 1024))
    except Exception:
        return 48 * 1024 * 1024


def _cparams(*semantics):
    return pltpu.CompilerParams(dimension_semantics=semantics,
                                vmem_limit_bytes=_vmem_limit_bytes())


def _row_tile(n_pad):
    # Row (sublane) tile: prefer >= 2 row tiles so the "parallel" axis can be
    # split across v7x's two TensorCores; n_pad is a multiple of 128.
    for t in (512, 256, 128, 64):
        if n_pad % t == 0 and n_pad // t >= 2:
            return t
    return n_pad


def _col_tile(n_pad, tm):
    # Reduction (lane) tile for the adjacency stream; the double-buffered int8
    # A tile (2 * tm * tk bytes) is kept under a fixed budget so it fits even
    # v7x's 64 MiB VMEM with plenty of headroom.
    for t in (2048, 1024, 512, 256, 128):
        if n_pad % t == 0 and n_pad // t >= 2 and 2 * tm * t <= _A_TILE_BUDGET_BYTES:
            return t
    return 128 if n_pad > 128 else n_pad


def _pack_stats(z):
    # Pack per-row-tile [sum ; sum of squares] of the f32 activation into an
    # (8, p) f32 tile (sublane 0 = sum, sublane 1 = sum of squares).
    s = jnp.sum(z, axis=0, keepdims=True)
    sq = jnp.sum(z * z, axis=0, keepdims=True)
    rid = jax.lax.broadcasted_iota(jnp.int32, (8, z.shape[1]), 0)
    return jnp.where(rid == 0, s, jnp.where(rid == 1, sq, 0.0))


def _bn_scale_shift(stats, gamma, beta, n_real):
    # Finish the fused BN statistics: stats is (nr*8, p); rows 8i hold the
    # per-tile sums, rows 8i+1 the per-tile sums of squares (padded node rows
    # contribute exact zeros).  Biased variance, training-mode BatchNorm1d.
    p = stats.shape[-1]
    st = stats.reshape(-1, 8, p).sum(axis=0)
    mean = st[0:1] / n_real
    var = jnp.maximum(st[1:2] / n_real - mean * mean, 0.0)
    inv = jax.lax.rsqrt(var + BN_EPS)
    scale = gamma * inv
    shift = beta - mean * scale
    return scale, shift


# ---------------------------------------------------------------------------
# Kernel 1: z1 = (A_hat @ h) @ W1, plus fused BN1 partial statistics.
#   grid = (N/tm, N/tk); int8 A stream, bf16 h (optionally VMEM-resident),
#   f32 accumulator in scratch, bf16 z1 output.
# ---------------------------------------------------------------------------
def agg_mlp1_kernel(a_ref, h_ref, w1_ref, z1_ref, stats_ref, acc_ref,
                    *, tk, h_resident):
    k = pl.program_id(1)

    @pl.when(k == 0)
    def _():
        acc_ref[...] = jnp.zeros_like(acc_ref)

    # int8 (0/1/2) adjacency: upcast in VMEM just before the MXU dot.
    a_blk = a_ref[...].astype(jnp.float32).astype(jnp.bfloat16)
    if h_resident:
        start = pl.multiple_of(k * tk, tk)
        h_blk = h_ref[pl.ds(start, tk), :]
    else:
        h_blk = h_ref[...]
    acc_ref[...] += jnp.dot(a_blk, h_blk, preferred_element_type=jnp.float32)

    @pl.when(k == pl.num_programs(1) - 1)
    def _():
        # First (bias-free) MLP linear: bf16 operands, f32 accumulation.
        z1 = jnp.dot(acc_ref[...].astype(jnp.bfloat16), w1_ref[...],
                     preferred_element_type=jnp.float32)
        z1_ref[...] = z1.astype(z1_ref.dtype)
        stats_ref[...] = _pack_stats(z1)


def agg_mlp1(a_hat, h, w1, *, tm, tk, h_resident):
    n = a_hat.shape[0]
    p = h.shape[1]
    nr, nk = n // tm, n // tk
    if h_resident:
        h_spec = pl.BlockSpec((n, p), lambda i, k: (0, 0))
        h_bytes = n * p * 2
    else:
        h_spec = pl.BlockSpec((tk, p), lambda i, k: (k, 0))
        h_bytes = nr * n * p * 2
    flops = 2 * n * n * p + 2 * n * p * p
    bytes_accessed = (n * n            # int8 adjacency stream
                      + h_bytes        # bf16 h
                      + p * p * 2      # bf16 W1 (resident)
                      + n * p * 2      # bf16 z1 writeback
                      + nr * 8 * p * 4)
    kernel = functools.partial(agg_mlp1_kernel, tk=tk, h_resident=h_resident)
    return pl.pallas_call(
        kernel,
        out_shape=(jax.ShapeDtypeStruct((n, p), jnp.bfloat16),
                   jax.ShapeDtypeStruct((nr * 8, p), jnp.float32)),
        grid_spec=pltpu.PrefetchScalarGridSpec(
            num_scalar_prefetch=0,
            grid=(nr, nk),
            in_specs=[
                pl.BlockSpec((tm, tk), lambda i, k: (i, k)),   # int8 A_hat
                h_spec,                                        # bf16 h
                pl.BlockSpec((p, p), lambda i, k: (0, 0)),     # bf16 W1
            ],
            out_specs=(pl.BlockSpec((tm, p), lambda i, k: (i, 0)),
                       pl.BlockSpec((8, p), lambda i, k: (i, 0))),
            scratch_shapes=[pltpu.VMEM((tm, p), jnp.float32)],
        ),
        compiler_params=_cparams("parallel", "arbitrary"),
        cost_estimate=pl.CostEstimate(flops=flops, transcendentals=0,
                                      bytes_accessed=bytes_accessed),
    )(a_hat, h, w1)


# ---------------------------------------------------------------------------
# Kernel 2: z2 = relu(BN1(z1)) @ W2, plus fused BN2 partial statistics.
#   Padded node rows are masked so they contribute exact zeros to the stats.
# ---------------------------------------------------------------------------
def bn_relu_matmul_kernel(z_ref, scale_ref, shift_ref, w_ref, z2_ref, stats_ref,
                          *, tm, n_real, need_mask):
    h1 = jnp.maximum(z_ref[...].astype(jnp.float32) * scale_ref[...]
                     + shift_ref[...], 0.0)
    if need_mask:
        row = pl.program_id(0) * tm + jax.lax.broadcasted_iota(
            jnp.int32, h1.shape, 0)
        h1 = jnp.where(row < n_real, h1, 0.0)
    z2 = jnp.dot(h1.astype(jnp.bfloat16), w_ref[...],
                 preferred_element_type=jnp.float32)
    z2_ref[...] = z2.astype(z2_ref.dtype)
    stats_ref[...] = _pack_stats(z2)


def bn_relu_matmul(z, scale, shift, w, *, tm, n_real):
    n, p = z.shape
    nr = n // tm
    kernel = functools.partial(bn_relu_matmul_kernel, tm=tm, n_real=n_real,
                               need_mask=(n_real != n))
    return pl.pallas_call(
        kernel,
        out_shape=(jax.ShapeDtypeStruct((n, p), jnp.bfloat16),
                   jax.ShapeDtypeStruct((nr * 8, p), jnp.float32)),
        grid_spec=pltpu.PrefetchScalarGridSpec(
            num_scalar_prefetch=0,
            grid=(nr,),
            in_specs=[
                pl.BlockSpec((tm, p), lambda i: (i, 0)),
                pl.BlockSpec((1, p), lambda i: (0, 0)),
                pl.BlockSpec((1, p), lambda i: (0, 0)),
                pl.BlockSpec((p, p), lambda i: (0, 0)),
            ],
            out_specs=(pl.BlockSpec((tm, p), lambda i: (i, 0)),
                       pl.BlockSpec((8, p), lambda i: (i, 0))),
        ),
        compiler_params=_cparams("parallel"),
    )(z, scale, shift, w)


# ---------------------------------------------------------------------------
# Kernel 3: h = relu(BN2(z2)), emitted as bf16   (row-tiled)
# ---------------------------------------------------------------------------
def bn_relu_kernel(z_ref, scale_ref, shift_ref, out_ref):
    y = jnp.maximum(z_ref[...].astype(jnp.float32) * scale_ref[...]
                    + shift_ref[...], 0.0)
    out_ref[...] = y.astype(out_ref.dtype)


def bn_relu(z, scale, shift, *, tm):
    n, p = z.shape
    nr = n // tm
    return pl.pallas_call(
        bn_relu_kernel,
        out_shape=jax.ShapeDtypeStruct((n, p), jnp.bfloat16),
        grid_spec=pltpu.PrefetchScalarGridSpec(
            num_scalar_prefetch=0,
            grid=(nr,),
            in_specs=[
                pl.BlockSpec((tm, p), lambda i: (i, 0)),
                pl.BlockSpec((1, p), lambda i: (0, 0)),
                pl.BlockSpec((1, p), lambda i: (0, 0)),
            ],
            out_specs=pl.BlockSpec((tm, p), lambda i: (i, 0)),
        ),
        compiler_params=_cparams("parallel"),
    )(z, scale, shift)


# ---------------------------------------------------------------------------
# Kernel 4: out = concat(hidden_rep, -1) @ concat(Wp, 0) + b_sum
#   One K = num_layers*128 dot per row tile (better MXU fill than 5 K=128 dots)
# ---------------------------------------------------------------------------
def pred_sum_kernel(*refs):
    *h_refs, w_ref, b_ref, out_ref = refs
    hcat = jnp.concatenate([h_ref[...] for h_ref in h_refs], axis=-1)
    out_ref[...] = jnp.dot(hcat, w_ref[...],
                           preferred_element_type=jnp.float32) + b_ref[...]


def pred_sum(hidden_rep, w_cat, b_sum, *, tm):
    n, p = hidden_rep[0].shape
    kdim, q = w_cat.shape
    nr = n // tm
    flops = 2 * n * kdim * q
    bytes_accessed = len(hidden_rep) * n * p * 2 + kdim * q * 2 + n * q * 4
    h_specs = [pl.BlockSpec((tm, p), lambda i: (i, 0)) for _ in hidden_rep]
    return pl.pallas_call(
        pred_sum_kernel,
        out_shape=jax.ShapeDtypeStruct((n, q), jnp.float32),
        grid_spec=pltpu.PrefetchScalarGridSpec(
            num_scalar_prefetch=0,
            grid=(nr,),
            in_specs=h_specs + [
                pl.BlockSpec((kdim, q), lambda i: (0, 0)),   # bf16 stacked W
                pl.BlockSpec((1, q), lambda i: (0, 0)),      # f32 summed bias
            ],
            out_specs=pl.BlockSpec((tm, q), lambda i: (i, 0)),
        ),
        compiler_params=_cparams("parallel"),
        cost_estimate=pl.CostEstimate(flops=flops, transcendentals=0,
                                      bytes_accessed=bytes_accessed),
    )(*hidden_rep, w_cat, b_sum)


# ---------------------------------------------------------------------------
# parameters + forward
# ---------------------------------------------------------------------------
def init_params(key, input_dim, hidden_dim, output_dim, num_layers=5):
    params = {"gin": [], "pred": []}
    for layer in range(num_layers - 1):
        in_dim = input_dim if layer == 0 else hidden_dim
        key, k1, k2, k3, k4, k5, k6 = jax.random.split(key, 7)
        params["gin"].append(dict(
            w1=0.1 * jax.random.normal(k1, (in_dim, hidden_dim), jnp.float32),
            w2=0.1 * jax.random.normal(k2, (hidden_dim, hidden_dim), jnp.float32),
            g1=1.0 + 0.1 * jax.random.normal(k3, (1, hidden_dim), jnp.float32),
            b1=0.1 * jax.random.normal(k4, (1, hidden_dim), jnp.float32),
            g2=1.0 + 0.1 * jax.random.normal(k5, (1, hidden_dim), jnp.float32),
            b2=0.1 * jax.random.normal(k6, (1, hidden_dim), jnp.float32),
        ))
    for layer in range(num_layers):
        in_dim = input_dim if layer == 0 else hidden_dim
        key, kw, kb = jax.random.split(key, 3)
        params["pred"].append(dict(
            w=0.1 * jax.random.normal(kw, (in_dim, output_dim), jnp.float32),
            b=0.1 * jax.random.normal(kb, (1, output_dim), jnp.float32),
        ))
    return params


def gin_forward(a, h, params):
    n, input_dim = h.shape
    hidden_dim = params["gin"][0]["w1"].shape[1]
    output_dim = params["pred"][0]["w"].shape[1]

    feat_pad = _ceil_to(max(input_dim, hidden_dim), LANE)
    out_pad = _ceil_to(output_dim, LANE)
    n_pad = _ceil_to(n, LANE)
    tm = _row_tile(n_pad)
    tk = _col_tile(n_pad, tm)
    h_resident = (n_pad * feat_pad * 2) <= _H_RESIDENT_BYTES

    # A_hat = A + I folds GINConv's "(1+eps)*h_i + sum_j h_j" self-term (eps=0).
    # Entries (0/1/2) are exact in int8; padded rows/cols are zero so padded
    # nodes never contribute to real rows or to the fused BN statistics.
    a_hat = a + jnp.eye(n, dtype=a.dtype)
    a_hat = _pad2(a_hat, n_pad, n_pad).astype(jnp.int8)

    h_cur = _pad2(h, n_pad, feat_pad).astype(jnp.bfloat16)
    hidden_rep = [h_cur]

    for lp in params["gin"]:
        w1 = _pad2(lp["w1"], feat_pad, feat_pad).astype(jnp.bfloat16)
        w2 = _pad2(lp["w2"], feat_pad, feat_pad).astype(jnp.bfloat16)
        g1 = _pad2(lp["g1"], 1, feat_pad)
        b1 = _pad2(lp["b1"], 1, feat_pad)
        g2 = _pad2(lp["g2"], 1, feat_pad)
        b2 = _pad2(lp["b2"], 1, feat_pad)

        z1, st1 = agg_mlp1(a_hat, h_cur, w1, tm=tm, tk=tk,
                           h_resident=h_resident)          # (A_hat@h)@W1 + stats
        s1, t1 = _bn_scale_shift(st1, g1, b1, n)           # global BN over real rows
        z2, st2 = bn_relu_matmul(z1, s1, t1, w2, tm=tm, n_real=n)
        s2, t2 = _bn_scale_shift(st2, g2, b2, n)
        h_cur = bn_relu(z2, s2, t2, tm=tm)                 # relu(BN) -> bf16
        hidden_rep.append(h_cur)

    # output = sum_i Linear_i(hidden_rep[i]); one fused lane-dense kernel.
    w_cat = jnp.concatenate(
        [_pad2(pr["w"], feat_pad, out_pad) for pr in params["pred"]],
        axis=0).astype(jnp.bfloat16)
    b_sum = sum(_pad2(pr["b"], 1, out_pad) for pr in params["pred"])

    out = pred_sum(hidden_rep, w_cat, b_sum, tm=tm)
    return out[:n, :output_dim]


# ---------------------------------------------------------------------------
# references for validation
# ---------------------------------------------------------------------------
def _bn_relu_ref(x, gamma, beta):
    mean = jnp.mean(x, axis=0, keepdims=True)
    var = jnp.mean((x - mean) ** 2, axis=0, keepdims=True)
    y = (x - mean) * jax.lax.rsqrt(var + BN_EPS) * gamma + beta
    return jnp.maximum(y, 0.0)


def gin_forward_reference_f32(a, h, params):
    # Pure-f32 reference with the original module semantics (loose compare).
    hidden_rep = [h]
    for lp in params["gin"]:
        agg = a @ h + h
        h1 = _bn_relu_ref(agg @ lp["w1"], lp["g1"], lp["b1"])
        h = _bn_relu_ref(h1 @ lp["w2"], lp["g2"], lp["b2"])
        hidden_rep.append(h)
    out = jnp.zeros((h.shape[0], params["pred"][0]["w"].shape[1]), jnp.float32)
    for hr, pr in zip(hidden_rep, params["pred"]):
        out = out + hr @ pr["w"] + pr["b"]
    return out


def _scale_shift_from_moments(z, gamma, beta, n):
    mean = jnp.sum(z, axis=0, keepdims=True) / n
    var = jnp.maximum(jnp.sum(z * z, axis=0, keepdims=True) / n - mean * mean, 0.0)
    inv = jax.lax.rsqrt(var + BN_EPS)
    scale = gamma * inv
    shift = beta - mean * scale
    return scale, shift


def gin_forward_reference_mixed(a, h, params):
    # Pure-JAX reference emulating the kernel's precision chain (bf16 operands,
    # f32 accumulation, fused moment-based BN stats) for a tight comparison.
    bf = jnp.bfloat16
    n = h.shape[0]
    a_hat = (a + jnp.eye(n, dtype=a.dtype)).astype(bf)
    h = h.astype(bf)
    hidden_rep = [h]
    for lp in params["gin"]:
        agg = jnp.dot(a_hat, h, preferred_element_type=jnp.float32)
        z1 = jnp.dot(agg.astype(bf), lp["w1"].astype(bf),
                     preferred_element_type=jnp.float32)
        s1, t1 = _scale_shift_from_moments(z1, lp["g1"], lp["b1"], n)
        h1 = jnp.maximum(z1.astype(bf).astype(jnp.float32) * s1 + t1, 0.0)
        z2 = jnp.dot(h1.astype(bf), lp["w2"].astype(bf),
                     preferred_element_type=jnp.float32)
        s2, t2 = _scale_shift_from_moments(z2, lp["g2"], lp["b2"], n)
        h = jnp.maximum(z2.astype(bf).astype(jnp.float32) * s2 + t2,
                        0.0).astype(bf)
        hidden_rep.append(h)
    out = jnp.zeros((n, params["pred"][0]["w"].shape[1]), jnp.float32)
    for hr, pr in zip(hidden_rep, params["pred"]):
        out = out + jnp.dot(hr, pr["w"].astype(bf),
                            preferred_element_type=jnp.float32) + pr["b"]
    return out


if __name__ == "__main__":
    # N deliberately NOT a multiple of 128 so the node-padding + masked-stats
    # path is exercised; n_pad = 512 gives a (2, 2) aggregation grid
    # (tm = tk = 256), exercising both the k-axis accumulator and >= 2 row
    # tiles (v7x two-TensorCore split).
    N, INPUT_DIM, HIDDEN_DIM, OUTPUT_DIM = 500, 8, 32, 8

    key = jax.random.PRNGKey(0)
    key, ka, kh, kp = jax.random.split(key, 4)

    # deterministic random undirected graph (dense adjacency, no self loops)
    adj = (jax.random.uniform(ka, (N, N)) < 0.05).astype(jnp.float32)
    adj = jnp.maximum(adj, adj.T) * (1.0 - jnp.eye(N, dtype=jnp.float32))

    h0 = jax.random.normal(kh, (N, INPUT_DIM), jnp.float32)
    params = init_params(kp, INPUT_DIM, HIDDEN_DIM, OUTPUT_DIM)

    out = jax.jit(gin_forward)(adj, h0, params)
    out = jax.block_until_ready(out)
    assert out.shape == (N, OUTPUT_DIM)

    # Tight check vs a reference that emulates the kernel's mixed precision.
    ref_mixed = gin_forward_reference_mixed(adj, h0, params)
    assert jnp.allclose(out, ref_mixed, atol=5e-3, rtol=5e-3), \
        "mismatch vs mixed-precision reference"

    # Loose check vs the pure-f32 module semantics (bf16 operand rounding).
    ref_f32 = gin_forward_reference_f32(adj, h0, params)
    assert jnp.allclose(out, ref_f32, atol=1e-1, rtol=1e-1), \
        "mismatch vs f32 reference"

    print("KERNEL_OK")
</pallas_src>

<mosaic_0001>
module attributes {stable_mosaic.version = 11 : i64} {
  func.func @agg_mlp1_kernel(%arg0: i32, %arg1: i32, %arg2: memref<256x256xi8, #tpu.memory_space<vmem>>, %arg3: memref<512x128xbf16, #tpu.memory_space<vmem>>, %arg4: memref<128x128xbf16, #tpu.memory_space<vmem>>, %arg5: memref<256x128xbf16, #tpu.memory_space<vmem>>, %arg6: memref<8x128xf32, #tpu.memory_space<vmem>>, %arg7: memref<256x128xf32, #tpu.memory_space<vmem>>) attributes {dimension_semantics = [#tpu.dimension_semantics<parallel>, #tpu.dimension_semantics<arbitrary>], iteration_bounds = array<i64: 2, 2>, scalar_prefetch = 0 : i64, scratch_operands = 1 : i64, tpu.core_type = #tpu.core_type<tc>, window_params = [{transform_indices = @transform_0, window_bounds = array<i64: 256, 256>}, {pipeline_mode = #tpu.pipeline_mode<synchronous>, transform_indices = @transform_1, window_bounds = array<i64: 512, 128>}, {pipeline_mode = #tpu.pipeline_mode<synchronous>, transform_indices = @transform_2, window_bounds = array<i64: 128, 128>}, {transform_indices = @transform_3, window_bounds = array<i64: 256, 128>}, {transform_indices = @transform_4, window_bounds = array<i64: 8, 128>}]} {
    %c0_i32 = arith.constant 0 : i32
    %0 = arith.cmpi eq, %arg1, %c0_i32 : i32
    %1 = arith.extui %0 : i1 to i32
    %c0_i32_0 = arith.constant 0 : i32
    %2 = arith.cmpi ne, %1, %c0_i32_0 : i32
    scf.if %2 {
      %cst_8 = arith.constant 0.000000e+00 : f32
      %17 = vector.broadcast %cst_8 : f32 to vector<256x128xf32>
      %c0_9 = arith.constant 0 : index
      %c0_10 = arith.constant 0 : index
      %18 = vector.load %arg7[%c0_9, %c0_10] : memref<256x128xf32, #tpu.memory_space<vmem>>, vector<256x128xf32>
      tpu.vector_store %arg7[%c0_9, %c0_10], %17 {strides = array<i32>} : memref<256x128xf32, #tpu.memory_space<vmem>>, vector<256x128xf32>,
    } else {
    }
    %c0 = arith.constant 0 : index
    %c0_1 = arith.constant 0 : index
    %3 = vector.load %arg2[%c0, %c0_1] : memref<256x256xi8, #tpu.memory_space<vmem>>, vector<256x256xi8>
    %4 = arith.sitofp %3 : vector<256x256xi8> to vector<256x256xf32>
    %5 = arith.truncf %4 : vector<256x256xf32> to vector<256x256xbf16>
    %c256_i32 = arith.constant 256 : i32
    %6 = arith.muli %arg1, %c256_i32 : i32
    %7 = tpu.assume_multiple %6, 256 : i32
    %8 = arith.index_cast %7 : i32 to index
    %c0_2 = arith.constant 0 : index
    %9 = vector.load %arg3[%8, %c0_2] : memref<512x128xbf16, #tpu.memory_space<vmem>>, vector<256x128xbf16>
    %c0_3 = arith.constant 0 : index
    %c0_4 = arith.constant 0 : index
    %10 = vector.load %arg7[%c0_3, %c0_4] : memref<256x128xf32, #tpu.memory_space<vmem>>, vector<256x128xf32>
    %cst = arith.constant dense<0.000000e+00> : vector<256x128xf32>
    %11 = tpu.matmul %5, %9, %cst {dimension_numbers = #tpu.dot_dimension_numbers<[1], [0], [0], [1], [0, 0, 1, 1], [], []>} : vector<256x256xbf16>, vector<256x128xbf16>, vector<256x128xf32> -> vector<256x128xf32>
    %12 = arith.addf %10, %11 : vector<256x128xf32>
    %c0_5 = arith.constant 0 : index
    %c0_6 = arith.constant 0 : index
    %13 = vector.load %arg7[%c0_5, %c0_6] : memref<256x128xf32, #tpu.memory_space<vmem>>, vector<256x128xf32>
    tpu.vector_store %arg7[%c0_5, %c0_6], %12 {strides = array<i32>} : memref<256x128xf32, #tpu.memory_space<vmem>>, vector<256x128xf32>,
    %c1_i32 = arith.constant 1 : i32
    %14 = arith.cmpi eq, %arg1, %c1_i32 : i32
    %15 = arith.extui %14 : i1 to i32
    %c0_i32_7 = arith.constant 0 : i32
    %16 = arith.cmpi ne, %15, %c0_i32_7 : i32
    scf.if %16 {
      %c0_8 = arith.constant 0 : index
      %c0_9 = arith.constant 0 : index
      %17 = vector.load %arg7[%c0_8, %c0_9] : memref<256x128xf32, #tpu.memory_space<vmem>>, vector<256x128xf32>
      %18 = arith.truncf %17 : vector<256x128xf32> to vector<256x128xbf16>
      %c0_10 = arith.constant 0 : index
      %c0_11 = arith.constant 0 : index
      %19 = vector.load %arg4[%c0_10, %c0_11] : memref<128x128xbf16, #tpu.memory_space<vmem>>, vector<128x128xbf16>
      %cst_12 = arith.constant dense<0.000000e+00> : vector<256x128xf32>
      %20 = tpu.matmul %18, %19, %cst_12 {dimension_numbers = #tpu.dot_dimension_numbers<[1], [0], [0], [1], [0, 0, 1, 1], [], []>} : vector<256x128xbf16>, vector<128x128xbf16>, vector<256x128xf32> -> vector<256x128xf32>
      %21 = arith.truncf %20 : vector<256x128xf32> to vector<256x128xbf16>
      %c0_13 = arith.constant 0 : index
      %c0_14 = arith.constant 0 : index
      %22 = vector.load %arg5[%c0_13, %c0_14] : memref<256x128xbf16, #tpu.memory_space<vmem>>, vector<256x128xbf16>
      tpu.vector_store %arg5[%c0_13, %c0_14], %21 {strides = array<i32>} : memref<256x128xbf16, #tpu.memory_space<vmem>>, vector<256x128xbf16>,
      %cst_15 = arith.constant dense<0.000000e+00> : vector<128xf32>
      %23 = vector.multi_reduction <add>, %20, %cst_15 [0] : vector<256x128xf32> to vector<128xf32>
      %24 = vector.shape_cast %23 : vector<128xf32> to vector<1x128xf32>
      %25 = arith.mulf %20, %20 : vector<256x128xf32>
      %cst_16 = arith.constant dense<0.000000e+00> : vector<128xf32>
      %26 = vector.multi_reduction <add>, %25, %cst_16 [0] : vector<256x128xf32> to vector<128xf32>
      %27 = vector.shape_cast %26 : vector<128xf32> to vector<1x128xf32>
      %28 = tpu.iota {dimensions = array<i32: 0>} : vector<8x128xi32>
      %c0_i32_17 = arith.constant 0 : i32
      %29 = vector.broadcast %c0_i32_17 : i32 to vector<8x128xi32>
      %30 = arith.cmpi eq, %28, %29 : vector<8x128xi32>
      %c1_i32_18 = arith.constant 1 : i32
      %31 = vector.broadcast %c1_i32_18 : i32 to vector<8x128xi32>
      %32 = arith.cmpi eq, %28, %31 : vector<8x128xi32>
      %cst_19 = arith.constant 0.000000e+00 : f32
      %33 = vector.shape_cast %27 : vector<1x128xf32> to vector<1x128xf32>
      %34 = vector.broadcast %33 : vector<1x128xf32> to vector<8x128xf32>
      %35 = vector.broadcast %cst_19 : f32 to vector<8x128xf32>
      %36 = arith.select %32, %34, %35 : vector<8x128xi1>, vector<8x128xf32>
      %37 = vector.shape_cast %24 : vector<1x128xf32> to vector<1x128xf32>
      %38 = vector.broadcast %37 : vector<1x128xf32> to vector<8x128xf32>
      %39 = arith.select %30, %38, %36 : vector<8x128xi1>, vector<8x128xf32>
      %c0_20 = arith.constant 0 : index
      %c0_21 = arith.constant 0 : index
      %40 = vector.load %arg6[%c0_20, %c0_21] : memref<8x128xf32, #tpu.memory_space<vmem>>, vector<8x128xf32>
      tpu.vector_store %arg6[%c0_20, %c0_21], %39 {strides = array<i32>} : memref<8x128xf32, #tpu.memory_space<vmem>>, vector<8x128xf32>,
    } else {
    }
    return
  }
  func.func @transform_0(%arg0: i32, %arg1: i32) -> (i32, i32) {
    %c0_i32 = arith.constant 0 : i32
    return %arg0, %arg1 : i32, i32
  }
  func.func @transform_1(%arg0: i32, %arg1: i32) -> (i32, i32) {
    %c0_i32 = arith.constant 0 : i32
    %c0_i32_0 = arith.constant 0 : i32
    %c0_i32_1 = arith.constant 0 : i32
    return %c0_i32, %c0_i32_0 : i32, i32
  }
  func.func @transform_2(%arg0: i32, %arg1: i32) -> (i32, i32) {
    %c0_i32 = arith.constant 0 : i32
    %c0_i32_0 = arith.constant 0 : i32
    %c0_i32_1 = arith.constant 0 : i32
    return %c0_i32, %c0_i32_0 : i32, i32
  }
  func.func @transform_3(%arg0: i32, %arg1: i32) -> (i32, i32) {
    %c0_i32 = arith.constant 0 : i32
    %c0_i32_0 = arith.constant 0 : i32
    return %arg0, %c0_i32 : i32, i32
  }
  func.func @transform_4(%arg0: i32, %arg1: i32) -> (i32, i32) {
    %c0_i32 = arith.constant 0 : i32
    %c0_i32_0 = arith.constant 0 : i32
    return %arg0, %c0_i32 : i32, i32
  }
}

module attributes {stable_mosaic.version = 11 : i64} {
  func.func @bn_relu_kernel(%arg0: i32, %arg1: memref<256x128xbf16, #tpu.memory_space<vmem>>, %arg2: memref<1x128xf32, #tpu.memory_space<vmem>>, %arg3: memref<1x128xf32, #tpu.memory_space<vmem>>, %arg4: memref<256x128xbf16, #tpu.memory_space<vmem>>) attributes {dimension_semantics = [#tpu.dimension_semantics<parallel>], iteration_bounds = array<i64: 2>, scalar_prefetch = 0 : i64, scratch_operands = 0 : i64, tpu.core_type = #tpu.core_type<tc>, window_params = [{transform_indices = @transform_0, window_bounds = array<i64: 256, 128>}, {pipeline_mode = #tpu.pipeline_mode<synchronous>, transform_indices = @transform_1, window_bounds = array<i64: 1, 128>}, {pipeline_mode = #tpu.pipeline_mode<synchronous>, transform_indices = @transform_2, window_bounds = array<i64: 1, 128>}, {transform_indices = @transform_3, window_bounds = array<i64: 256, 128>}]} {
    %c0 = arith.constant 0 : index
    %c0_0 = arith.constant 0 : index
    %0 = vector.load %arg1[%c0, %c0_0] : memref<256x128xbf16, #tpu.memory_space<vmem>>, vector<256x128xbf16>
    %1 = arith.extf %0 : vector<256x128xbf16> to vector<256x128xf32>
    %c0_1 = arith.constant 0 : index
    %c0_2 = arith.constant 0 : index
    %2 = vector.load %arg2[%c0_1, %c0_2] : memref<1x128xf32, #tpu.memory_space<vmem>>, vector<1x128xf32>
    %3 = vector.broadcast %2 : vector<1x128xf32> to vector<256x128xf32>
    %4 = arith.mulf %1, %3 : vector<256x128xf32>
    %c0_3 = arith.constant 0 : index
    %c0_4 = arith.constant 0 : index
    %5 = vector.load %arg3[%c0_3, %c0_4] : memref<1x128xf32, #tpu.memory_space<vmem>>, vector<1x128xf32>
    %6 = vector.broadcast %5 : vector<1x128xf32> to vector<256x128xf32>
    %7 = arith.addf %4, %6 : vector<256x128xf32>
    %cst = arith.constant 0.000000e+00 : f32
    %8 = vector.broadcast %cst : f32 to vector<256x128xf32>
    %9 = arith.maximumf %7, %8 : vector<256x128xf32>
    %10 = arith.truncf %9 : vector<256x128xf32> to vector<256x128xbf16>
    %c0_5 = arith.constant 0 : index
    %c0_6 = arith.constant 0 : index
    %11 = vector.load %arg4[%c0_5, %c0_6] : memref<256x128xbf16, #tpu.memory_space<vmem>>, vector<256x128xbf16>
    tpu.vector_store %arg4[%c0_5, %c0_6], %10 {strides = array<i32>} : memref<256x128xbf16, #tpu.memory_space<vmem>>, vector<256x128xbf16>,
    return
  }
  func.func @transform_0(%arg0: i32) -> (i32, i32) {
    %c0_i32 = arith.constant 0 : i32
    %c0_i32_0 = arith.constant 0 : i32
    return %arg0, %c0_i32 : i32, i32
  }
  func.func @transform_1(%arg0: i32) -> (i32, i32) {
    %c0_i32 = arith.constant 0 : i32
    %c0_i32_0 = arith.constant 0 : i32
    %c0_i32_1 = arith.constant 0 : i32
    return %c0_i32, %c0_i32_0 : i32, i32
  }
  func.func @transform_2(%arg0: i32) -> (i32, i32) {
    %c0_i32 = arith.constant 0 : i32
    %c0_i32_0 = arith.constant 0 : i32
    %c0_i32_1 = arith.constant 0 : i32
    return %c0_i32, %c0_i32_0 : i32, i32
  }
  func.func @transform_3(%arg0: i32) -> (i32, i32) {
    %c0_i32 = arith.constant 0 : i32
    %c0_i32_0 = arith.constant 0 : i32
    return %arg0, %c0_i32 : i32, i32
  }
}

module attributes {stable_mosaic.version = 11 : i64} {
  func.func @bn_relu_matmul_kernel(%arg0: i32, %arg1: memref<256x128xbf16, #tpu.memory_space<vmem>>, %arg2: memref<1x128xf32, #tpu.memory_space<vmem>>, %arg3: memref<1x128xf32, #tpu.memory_space<vmem>>, %arg4: memref<128x128xbf16, #tpu.memory_space<vmem>>, %arg5: memref<256x128xbf16, #tpu.memory_space<vmem>>, %arg6: memref<8x128xf32, #tpu.memory_space<vmem>>) attributes {dimension_semantics = [#tpu.dimension_semantics<parallel>], iteration_bounds = array<i64: 2>, scalar_prefetch = 0 : i64, scratch_operands = 0 : i64, tpu.core_type = #tpu.core_type<tc>, window_params = [{transform_indices = @transform_0, window_bounds = array<i64: 256, 128>}, {pipeline_mode = #tpu.pipeline_mode<synchronous>, transform_indices = @transform_1, window_bounds = array<i64: 1, 128>}, {pipeline_mode = #tpu.pipeline_mode<synchronous>, transform_indices = @transform_2, window_bounds = array<i64: 1, 128>}, {pipeline_mode = #tpu.pipeline_mode<synchronous>, transform_indices = @transform_3, window_bounds = array<i64: 128, 128>}, {transform_indices = @transform_4, window_bounds = array<i64: 256, 128>}, {transform_indices = @transform_5, window_bounds = array<i64: 8, 128>}]} {
    %c0 = arith.constant 0 : index
    %c0_0 = arith.constant 0 : index
    %0 = vector.load %arg1[%c0, %c0_0] : memref<256x128xbf16, #tpu.memory_space<vmem>>, vector<256x128xbf16>
    %1 = arith.extf %0 : vector<256x128xbf16> to vector<256x128xf32>
    %c0_1 = arith.constant 0 : index
    %c0_2 = arith.constant 0 : index
    %2 = vector.load %arg2[%c0_1, %c0_2] : memref<1x128xf32, #tpu.memory_space<vmem>>, vector<1x128xf32>
    %3 = vector.broadcast %2 : vector<1x128xf32> to vector<256x128xf32>
    %4 = arith.mulf %1, %3 : vector<256x128xf32>
    %c0_3 = arith.constant 0 : index
    %c0_4 = arith.constant 0 : index
    %5 = vector.load %arg3[%c0_3, %c0_4] : memref<1x128xf32, #tpu.memory_space<vmem>>, vector<1x128xf32>
    %6 = vector.broadcast %5 : vector<1x128xf32> to vector<256x128xf32>
    %7 = arith.addf %4, %6 : vector<256x128xf32>
    %cst = arith.constant 0.000000e+00 : f32
    %8 = vector.broadcast %cst : f32 to vector<256x128xf32>
    %9 = arith.maximumf %7, %8 : vector<256x128xf32>
    %c256_i32 = arith.constant 256 : i32
    %10 = arith.muli %arg0, %c256_i32 : i32
    %11 = tpu.iota {dimensions = array<i32: 0>} : vector<256x128xi32>
    %12 = vector.broadcast %10 : i32 to vector<256x128xi32>
    %13 = arith.addi %12, %11 : vector<256x128xi32>
    %c500_i32 = arith.constant 500 : i32
    %14 = vector.broadcast %c500_i32 : i32 to vector<256x128xi32>
    %15 = arith.cmpi slt, %13, %14 : vector<256x128xi32>
    %cst_5 = arith.constant 0.000000e+00 : f32
    %16 = vector.broadcast %cst_5 : f32 to vector<256x128xf32>
    %17 = arith.select %15, %9, %16 : vector<256x128xi1>, vector<256x128xf32>
    %18 = arith.truncf %17 : vector<256x128xf32> to vector<256x128xbf16>
    %c0_6 = arith.constant 0 : index
    %c0_7 = arith.constant 0 : index
    %19 = vector.load %arg4[%c0_6, %c0_7] : memref<128x128xbf16, #tpu.memory_space<vmem>>, vector<128x128xbf16>
    %cst_8 = arith.constant dense<0.000000e+00> : vector<256x128xf32>
    %20 = tpu.matmul %18, %19, %cst_8 {dimension_numbers = #tpu.dot_dimension_numbers<[1], [0], [0], [1], [0, 0, 1, 1], [], []>} : vector<256x128xbf16>, vector<128x128xbf16>, vector<256x128xf32> -> vector<256x128xf32>
    %21 = arith.truncf %20 : vector<256x128xf32> to vector<256x128xbf16>
    %c0_9 = arith.constant 0 : index
    %c0_10 = arith.constant 0 : index
    %22 = vector.load %arg5[%c0_9, %c0_10] : memref<256x128xbf16, #tpu.memory_space<vmem>>, vector<256x128xbf16>
    tpu.vector_store %arg5[%c0_9, %c0_10], %21 {strides = array<i32>} : memref<256x128xbf16, #tpu.memory_space<vmem>>, vector<256x128xbf16>,
    %cst_11 = arith.constant dense<0.000000e+00> : vector<128xf32>
    %23 = vector.multi_reduction <add>, %20, %cst_11 [0] : vector<256x128xf32> to vector<128xf32>
    %24 = vector.shape_cast %23 : vector<128xf32> to vector<1x128xf32>
    %25 = arith.mulf %20, %20 : vector<256x128xf32>
    %cst_12 = arith.constant dense<0.000000e+00> : vector<128xf32>
    %26 = vector.multi_reduction <add>, %25, %cst_12 [0] : vector<256x128xf32> to vector<128xf32>
    %27 = vector.shape_cast %26 : vector<128xf32> to vector<1x128xf32>
    %28 = tpu.iota {dimensions = array<i32: 0>} : vector<8x128xi32>
    %c0_i32 = arith.constant 0 : i32
    %29 = vector.broadcast %c0_i32 : i32 to vector<8x128xi32>
    %30 = arith.cmpi eq, %28, %29 : vector<8x128xi32>
    %c1_i32 = arith.constant 1 : i32
    %31 = vector.broadcast %c1_i32 : i32 to vector<8x128xi32>
    %32 = arith.cmpi eq, %28, %31 : vector<8x128xi32>
    %cst_13 = arith.constant 0.000000e+00 : f32
    %33 = vector.shape_cast %27 : vector<1x128xf32> to vector<1x128xf32>
    %34 = vector.broadcast %33 : vector<1x128xf32> to vector<8x128xf32>
    %35 = vector.broadcast %cst_13 : f32 to vector<8x128xf32>
    %36 = arith.select %32, %34, %35 : vector<8x128xi1>, vector<8x128xf32>
    %37 = vector.shape_cast %24 : vector<1x128xf32> to vector<1x128xf32>
    %38 = vector.broadcast %37 : vector<1x128xf32> to vector<8x128xf32>
    %39 = arith.select %30, %38, %36 : vector<8x128xi1>, vector<8x128xf32>
    %c0_14 = arith.constant 0 : index
    %c0_15 = arith.constant 0 : index
    %40 = vector.load %arg6[%c0_14, %c0_15] : memref<8x128xf32, #tpu.memory_space<vmem>>, vector<8x128xf32>
    tpu.vector_store %arg6[%c0_14, %c0_15], %39 {strides = array<i32>} : memref<8x128xf32, #tpu.memory_space<vmem>>, vector<8x128xf32>,
    return
  }
  func.func @transform_0(%arg0: i32) -> (i32, i32) {
    %c0_i32 = arith.constant 0 : i32
    %c0_i32_0 = arith.constant 0 : i32
    return %arg0, %c0_i32 : i32, i32
  }
  func.func @transform_1(%arg0: i32) -> (i32, i32) {
    %c0_i32 = arith.constant 0 : i32
    %c0_i32_0 = arith.constant 0 : i32
    %c0_i32_1 = arith.constant 0 : i32
    return %c0_i32, %c0_i32_0 : i32, i32
  }
  func.func @transform_2(%arg0: i32) -> (i32, i32) {
    %c0_i32 = arith.constant 0 : i32
    %c0_i32_0 = arith.constant 0 : i32
    %c0_i32_1 = arith.constant 0 : i32
    return %c0_i32, %c0_i32_0 : i32, i32
  }
  func.func @transform_3(%arg0: i32) -> (i32, i32) {
    %c0_i32 = arith.constant 0 : i32
    %c0_i32_0 = arith.constant 0 : i32
    %c0_i32_1 = arith.constant 0 : i32
    return %c0_i32, %c0_i32_0 : i32, i32
  }
  func.func @transform_4(%arg0: i32) -> (i32, i32) {
    %c0_i32 = arith.constant 0 : i32
    %c0_i32_0 = arith.constant 0 : i32
    return %arg0, %c0_i32 : i32, i32
  }
  func.func @transform_5(%arg0: i32) -> (i32, i32) {
    %c0_i32 = arith.constant 0 : i32
    %c0_i32_0 = arith.constant 0 : i32
    return %arg0, %c0_i32 : i32, i32
  }
}

module attributes {stable_mosaic.version = 11 : i64} {
  func.func @pred_sum_kernel(%arg0: i32, %arg1: memref<256x128xbf16, #tpu.memory_space<vmem>>, %arg2: memref<256x128xbf16, #tpu.memory_space<vmem>>, %arg3: memref<256x128xbf16, #tpu.memory_space<vmem>>, %arg4: memref<256x128xbf16, #tpu.memory_space<vmem>>, %arg5: memref<256x128xbf16, #tpu.memory_space<vmem>>, %arg6: memref<640x128xbf16, #tpu.memory_space<vmem>>, %arg7: memref<1x128xf32, #tpu.memory_space<vmem>>, %arg8: memref<256x128xf32, #tpu.memory_space<vmem>>) attributes {dimension_semantics = [#tpu.dimension_semantics<parallel>], iteration_bounds = array<i64: 2>, scalar_prefetch = 0 : i64, scratch_operands = 0 : i64, tpu.core_type = #tpu.core_type<tc>, window_params = [{transform_indices = @transform_0, window_bounds = array<i64: 256, 128>}, {transform_indices = @transform_1, window_bounds = array<i64: 256, 128>}, {transform_indices = @transform_2, window_bounds = array<i64: 256, 128>}, {transform_indices = @transform_3, window_bounds = array<i64: 256, 128>}, {transform_indices = @transform_4, window_bounds = array<i64: 256, 128>}, {pipeline_mode = #tpu.pipeline_mode<synchronous>, transform_indices = @transform_5, window_bounds = array<i64: 640, 128>}, {pipeline_mode = #tpu.pipeline_mode<synchronous>, transform_indices = @transform_6, window_bounds = array<i64: 1, 128>}, {transform_indices = @transform_7, window_bounds = array<i64: 256, 128>}]} {
    %c0 = arith.constant 0 : index
    %c0_0 = arith.constant 0 : index
    %0 = vector.load %arg1[%c0, %c0_0] : memref<256x128xbf16, #tpu.memory_space<vmem>>, vector<256x128xbf16>
    %c0_1 = arith.constant 0 : index
    %c0_2 = arith.constant 0 : index
    %1 = vector.load %arg2[%c0_1, %c0_2] : memref<256x128xbf16, #tpu.memory_space<vmem>>, vector<256x128xbf16>
    %c0_3 = arith.constant 0 : index
    %c0_4 = arith.constant 0 : index
    %2 = vector.load %arg3[%c0_3, %c0_4] : memref<256x128xbf16, #tpu.memory_space<vmem>>, vector<256x128xbf16>
    %c0_5 = arith.constant 0 : index
    %c0_6 = arith.constant 0 : index
    %3 = vector.load %arg4[%c0_5, %c0_6] : memref<256x128xbf16, #tpu.memory_space<vmem>>, vector<256x128xbf16>
    %c0_7 = arith.constant 0 : index
    %c0_8 = arith.constant 0 : index
    %4 = vector.load %arg5[%c0_7, %c0_8] : memref<256x128xbf16, #tpu.memory_space<vmem>>, vector<256x128xbf16>
    %5 = tpu.concatenate %0, %1, %2, %3, %4 in 1 : vector<256x128xbf16>, vector<256x128xbf16>, vector<256x128xbf16>, vector<256x128xbf16>, vector<256x128xbf16> -> vector<256x640xbf16>
    %c0_9 = arith.constant 0 : index
    %c0_10 = arith.constant 0 : index
    %6 = vector.load %arg6[%c0_9, %c0_10] : memref<640x128xbf16, #tpu.memory_space<vmem>>, vector<640x128xbf16>
    %cst = arith.constant dense<0.000000e+00> : vector<256x128xf32>
    %7 = tpu.matmul %5, %6, %cst {dimension_numbers = #tpu.dot_dimension_numbers<[1], [0], [0], [1], [0, 0, 1, 1], [], []>} : vector<256x640xbf16>, vector<640x128xbf16>, vector<256x128xf32> -> vector<256x128xf32>
    %c0_11 = arith.constant 0 : index
    %c0_12 = arith.constant 0 : index
    %8 = vector.load %arg7[%c0_11, %c0_12] : memref<1x128xf32, #tpu.memory_space<vmem>>, vector<1x128xf32>
    %9 = vector.broadcast %8 : vector<1x128xf32> to vector<256x128xf32>
    %10 = arith.addf %7, %9 : vector<256x128xf32>
    %c0_13 = arith.constant 0 : index
    %c0_14 = arith.constant 0 : index
    %11 = vector.load %arg8[%c0_13, %c0_14] : memref<256x128xf32, #tpu.memory_space<vmem>>, vector<256x128xf32>
    tpu.vector_store %arg8[%c0_13, %c0_14], %10 {strides = array<i32>} : memref<256x128xf32, #tpu.memory_space<vmem>>, vector<256x128xf32>,
    return
  }
  func.func @transform_0(%arg0: i32) -> (i32, i32) {
    %c0_i32 = arith.constant 0 : i32
    %c0_i32_0 = arith.constant 0 : i32
    return %arg0, %c0_i32 : i32, i32
  }
  func.func @transform_1(%arg0: i32) -> (i32, i32) {
    %c0_i32 = arith.constant 0 : i32
    %c0_i32_0 = arith.constant 0 : i32
    return %arg0, %c0_i32 : i32, i32
  }
  func.func @transform_2(%arg0: i32) -> (i32, i32) {
    %c0_i32 = arith.constant 0 : i32
    %c0_i32_0 = arith.constant 0 : i32
    return %arg0, %c0_i32 : i32, i32
  }
  func.func @transform_3(%arg0: i32) -> (i32, i32) {
    %c0_i32 = arith.constant 0 : i32
    %c0_i32_0 = arith.constant 0 : i32
    return %arg0, %c0_i32 : i32, i32
  }
  func.func @transform_4(%arg0: i32) -> (i32, i32) {
    %c0_i32 = arith.constant 0 : i32
    %c0_i32_0 = arith.constant 0 : i32
    return %arg0, %c0_i32 : i32, i32
  }
  func.func @transform_5(%arg0: i32) -> (i32, i32) {
    %c0_i32 = arith.constant 0 : i32
    %c0_i32_0 = arith.constant 0 : i32
    %c0_i32_1 = arith.constant 0 : i32
    return %c0_i32, %c0_i32_0 : i32, i32
  }
  func.func @transform_6(%arg0: i32) -> (i32, i32) {
    %c0_i32 = arith.constant 0 : i32
    %c0_i32_0 = arith.constant 0 : i32
    %c0_i32_1 = arith.constant 0 : i32
    return %c0_i32, %c0_i32_0 : i32, i32
  }
  func.func @transform_7(%arg0: i32) -> (i32, i32) {
    %c0_i32 = arith.constant 0 : i32
    %c0_i32_0 = arith.constant 0 : i32
    return %arg0, %c0_i32 : i32, i32
  }
}

</mosaic_0001>

<llo_original>
// kernel: gin_forward.15
$region0: #{gin_forward.15}
  #allocation0 [shape = 'u32[]', space=smem, size = 0x4, offset = 0x4, fixed_abs, tag = 'smem constant byte address 0x4 - core index']
  #allocation1 [shape = 'u32[144,128]{1,0:T(1,128)}', space=vmem, size = 0x12000, scoped, tag = 'internal scratch']
  %s0 = inlined_call_operand.vmem [shape: bf16[512,128], index: 0, kind: input, shape index: {}]
  %s1 = inlined_call_operand.vmem [shape: f32[1,128], index: 1, kind: input, shape index: {}]
  %s2 = inlined_call_operand.vmem [shape: f32[1,128], index: 2, kind: input, shape index: {}]
  %s3 = inlined_call_operand.vmem [shape: bf16[512,128], index: 3, kind: output, shape index: {}]
  %s4 = sld [smem:[#allocation0]]
  $region45: #{gin_forward.15} parent=0
    _
  %s6 = ssub.s32 1, %s4
  %s7 = scalar_select 0, %s6, %s4
  loop: start=0, step=1, limit=4
  $region2: #{gin_forward.15} parent=0 // loop_pre_header
    _
  $region3: #{gin_forward.15} parent=0 // loop_header
    %s9 = sphi 0, %s13
    %p10 = scmp.ge.s32.totalorder %s9, 4
    %s19 = sphi 0, %s21
    %s22 = sphi 0, %s19
    %s23 = sphi 0, %s22
    %s39 = sphi 0, %s23
    %s43 = sphi 0, %s43
    %s45 = sphi 0, %s43
    %s46 = sphi 0, %s45
    %s60 = sphi 0, %s46
    %s64 = sphi 0, %s64
    %s66 = sphi 0, %s64
    %s67 = sphi 0, %s66
    %s81 = sphi 0, %s67
    %s87 = sphi 0, %s89
    %s90 = sphi 0, %s87
    %s91 = sphi 0, %s90
    %s107 = sphi 0, %s91
  $region4: #{gin_forward.15} parent=0 // loop_header_branch
    %12 = sbr.rel (%p10) target = $region8
  $region5: #{gin_forward.15} parent=0 // loop_body
    %s14 = ssub.s32 %s9, 1
    %s15 = ssub.s32 %s9, 2
    %s16 = sadd.s32 %s9, 1
    %s17 = ssub.s32 %s9, %s16
    %p18 = scmp.eq.s32.totalorder %s17, 0
    %s20 = sadd.s32 %s19, 1
    %s21 = scalar_select %p18, %s19, %s20
    %p24 = pneg %p18
    %p25 = scmp.eq.s32.totalorder %s9, 1
    %p26 = por %p24, %p25
    %p27 = scmp.ne.s32.totalorder %s19, %s22
    %p28 = scmp.eq.s32.totalorder %s9, 0
    %p29 = por %p27, %p28
    %p30 = scmp.ne.s32.totalorder %s19, %s22
    %p31 = scmp.eq.s32.totalorder %s14, 1
    %p32 = por %p30, %p31
    %p33 = scmp.ne.s32.totalorder %s22, %s23
    %p34 = scmp.eq.s32.totalorder %s14, 0
    %p35 = por %p33, %p34
    %p36 = scmp.ne.s32.totalorder %s22, %s23
    %p37 = scmp.eq.s32.totalorder %s15, 1
    %p38 = por %p36, %p37
    %p40 = scmp.ne.s32.totalorder %s23, %s39
    %p41 = scmp.eq.s32.totalorder %s15, 0
    %p42 = por %p40, %p41
    %s44 = sadd.s32 %s43, 1
    %p47 = scmp.eq.s32.totalorder %s9, 1
    %p48 = scmp.ne.s32.totalorder %s43, %s45
    %p49 = scmp.eq.s32.totalorder %s9, 0
    %p50 = por %p48, %p49
    %p51 = scmp.ne.s32.totalorder %s43, %s45
    %p52 = scmp.eq.s32.totalorder %s14, 1
    %p53 = por %p51, %p52
    %p54 = scmp.ne.s32.totalorder %s45, %s46
    %p55 = scmp.eq.s32.totalorder %s14, 0
    %p56 = por %p54, %p55
    %p57 = scmp.ne.s32.totalorder %s45, %s46
    %p58 = scmp.eq.s32.totalorder %s15, 1
    %p59 = por %p57, %p58
    %p61 = scmp.ne.s32.totalorder %s46, %s60
    %p62 = scmp.eq.s32.totalorder %s15, 0
    %p63 = por %p61, %p62
    %s65 = sadd.s32 %s64, 1
    %p68 = scmp.eq.s32.totalorder %s9, 1
    %p69 = scmp.ne.s32.totalorder %s64, %s66
    %p70 = scmp.eq.s32.totalorder %s9, 0
    %p71 = por %p69, %p70
    %p72 = scmp.ne.s32.totalorder %s64, %s66
    %p73 = scmp.eq.s32.totalorder %s14, 1
    %p74 = por %p72, %p73
    %p75 = scmp.ne.s32.totalorder %s66, %s67
    %p76 = scmp.eq.s32.totalorder %s14, 0
    %p77 = por %p75, %p76
    %p78 = scmp.ne.s32.totalorder %s66, %s67
    %p79 = scmp.eq.s32.totalorder %s15, 1
    %p80 = por %p78, %p79
    %p82 = scmp.ne.s32.totalorder %s67, %s81
    %p83 = scmp.eq.s32.totalorder %s15, 0
    %p84 = por %p82, %p83
    %s85 = ssub.s32 %s9, %s16
    %p86 = scmp.eq.s32.totalorder %s85, 0
    %s88 = sadd.s32 %s87, 1
    %s89 = scalar_select %p86, %s87, %s88
    %p92 = pneg %p86
    %p93 = scmp.eq.s32.totalorder %s9, 1
    %p94 = por %p92, %p93
    %p95 = scmp.ne.s32.totalorder %s87, %s90
    %p96 = scmp.eq.s32.totalorder %s9, 0
    %p97 = por %p95, %p96
    %p98 = scmp.ne.s32.totalorder %s87, %s90
    %p99 = scmp.eq.s32.totalorder %s14, 1
    %p100 = por %p98, %p99
    %p101 = scmp.ne.s32.totalorder %s90, %s91
    %p102 = scmp.eq.s32.totalorder %s14, 0
    %p103 = por %p101, %p102
    %p104 = scmp.ne.s32.totalorder %s90, %s91
    %p105 = scmp.eq.s32.totalorder %s15, 1
    %p106 = por %p104, %p105
    %p108 = scmp.ne.s32.totalorder %s91, %s107
    %p109 = scmp.eq.s32.totalorder %s15, 0
    %p110 = por %p108, %p109
    %p111 = scmp.le.s32.totalorder 1, %s9
    %p112 = scmp.lt.s32.totalorder %s9, 3
    %p113 = pnand %p111, %p112
    %p114 = pneg %p113
    // Predicated region
    $region9: #{gin_forward.15} parent=5 // pred_check
      _
    $region10: #{gin_forward.15} parent=5 // pred_check_branch
      %116 = sbr.rel (%p113) target = $region12
    $region11: #{gin_forward.15} parent=5 // pred_region
      %s117 = ssub.s32 %s9, 1
      // Predicated region
      $region13: #{gin_forward.15} parent=11 // pred_check
        %p118 = pneg %p56
      $region14: #{gin_forward.15} parent=11 // pred_check_branch
        %120 = sbr.rel (%p118) target = $region16
      $region15: #{gin_forward.15} parent=11 // pred_region
        _
      $region16: #{gin_forward.15} parent=11 // pred_fallthru
        _
      // Predicated region
      $region17: #{gin_forward.15} parent=11 // pred_check
        %p121 = pneg %p77
      $region18: #{gin_forward.15} parent=11 // pred_check_branch
        %123 = sbr.rel (%p121) target = $region20
      $region19: #{gin_forward.15} parent=11 // pred_region
        _
      $region20: #{gin_forward.15} parent=11 // pred_fallthru
        _
    $region12: #{gin_forward.15} parent=5 // pred_fallthru
      _
    %p124 = scmp.lt.s32.totalorder %s9, 2
    // Predicated region
    $region21: #{gin_forward.15} parent=5 // pred_check
      %p125 = pneg %p124
    $region22: #{gin_forward.15} parent=5 // pred_check_branch
      %127 = sbr.rel (%p125) target = $region24
    $region23: #{gin_forward.15} parent=5 // pred_region
      // Predicated region
      $region25: #{gin_forward.15} parent=23 // pred_check
        %p128 = pneg %p29
      $region26: #{gin_forward.15} parent=23 // pred_check_branch
        %130 = sbr.rel (%p128) target = $region28
      $region27: #{gin_forward.15} parent=23 // pred_region
        %s131 = smul.u32 32, %s9
        %p132 = scmp.lt.s32.totalorder %s131, 63
        %s133 = scalar_select %p132, %s131, 63
        %s134 = smul.addr %s133, 4
        %s135 = scalar_lea.vmem %s0, %s134
        %s136 = smul.u32 32, %s9
      $region28: #{gin_forward.15} parent=23 // pred_fallthru
        _
    $region24: #{gin_forward.15} parent=5 // pred_fallthru
      _
    %p137 = scmp.le.s32.totalorder 1, %s9
    %p138 = scmp.lt.s32.totalorder %s9, 3
    %p139 = pnand %p137, %p138
    %p140 = pneg %p139
    // Predicated region
    $region29: #{gin_forward.15} parent=5 // pred_check
      _
    $region30: #{gin_forward.15} parent=5 // pred_check_branch
      %142 = sbr.rel (%p139) target = $region32
    $region31: #{gin_forward.15} parent=5 // pred_region
      %s143 = ssub.s32 %s9, 1
      %s144 = smul.u32 32, %s14
      %p145 = scmp.lt.s32.totalorder %s144, 63
      %s146 = scalar_select %p145, %s144, 63
      %s147 = smul.addr %s146, 4
      %s148 = scalar_lea.vmem %s0, %s147
      %p149 = pneg %p35
      %p150 = pneg %p32
      %p151 = pneg %p56
      %p152 = pneg %p53
      %p153 = pneg %p77
      %p154 = pneg %p74
      %p155 = pneg %p103
      %p156 = pneg %p100
      %s157 = smul.u32 32, %s14
      %p158 = scmp.lt.s32.totalorder %s157, 63
      %s159 = scalar_select %p158, %s157, 63
      %s160 = smul.addr %s159, 4
      %s161 = scalar_lea.vmem %s3, %s160
      %s162 = smul.u32 32, %s14
      %p163 = scmp.lt.s32.totalorder %s162, 63
      %s164 = scalar_select %p163, %s162, 63
      %s165 = smul.addr %s164, 4
      %s166 = scalar_lea.vmem %s0, %s165
      %s167 = smul.u32 32, %s14
      %s168 = smul.u32 32, %s14
      %p169 = scmp.lt.s32.totalorder %s168, 63
      %s170 = scalar_select %p169, %s168, 63
      %s171 = smul.addr %s170, 4
      %s172 = scalar_lea.vmem %s3, %s171
      %s173 = smul.u32 32, %s14
      %v174 = vld [vmem:[%s166] sm:$0xf]
      %v175 = vld [vmem:[%s166 + $0x4] sm:$0xf]
      %v176 = vld [vmem:[%s166 + $0x8] sm:$0xf]
      %v177 = vld [vmem:[%s166 + $0xc] sm:$0xf]
      %v178 = vld [vmem:[%s166 + $0x10] sm:$0xf]
      %v179 = vld [vmem:[%s166 + $0x14] sm:$0xf]
      %v180 = vld [vmem:[%s166 + $0x18] sm:$0xf]
      %v181 = vld [vmem:[%s166 + $0x1c] sm:$0xf]
      %v182 = vld [vmem:[%s166 + $0x20] sm:$0xf]
      %v183 = vld [vmem:[%s166 + $0x24] sm:$0xf]
      %v184 = vld [vmem:[%s166 + $0x28] sm:$0xf]
      %v185 = vld [vmem:[%s166 + $0x2c] sm:$0xf]
      %v186 = vld [vmem:[%s166 + $0x30] sm:$0xf]
      %v187 = vld [vmem:[%s166 + $0x34] sm:$0xf]
      %v188 = vld [vmem:[%s166 + $0x38] sm:$0xf]
      %v189 = vld [vmem:[%s166 + $0x3c] sm:$0xf]
      %v190 = vld [vmem:[%s166 + $0x40] sm:$0xf]
      %v191 = vld [vmem:[%s166 + $0x44] sm:$0xf]
      %v192 = vld [vmem:[%s166 + $0x48] sm:$0xf]
      %v193 = vld [vmem:[%s166 + $0x4c] sm:$0xf]
      %v194 = vld [vmem:[%s166 + $0x50] sm:$0xf]
      %v195 = vld [vmem:[%s166 + $0x54] sm:$0xf]
      %v196 = vld [vmem:[%s166 + $0x58] sm:$0xf]
      %v197 = vld [vmem:[%s166 + $0x5c] sm:$0xf]
      %v198 = vld [vmem:[%s166 + $0x60] sm:$0xf]
      %v199 = vld [vmem:[%s166 + $0x64] sm:$0xf]
      %v200 = vld [vmem:[%s166 + $0x68] sm:$0xf]
      %v201 = vld [vmem:[%s166 + $0x6c] sm:$0xf]
      %v202 = vld [vmem:[%s166 + $0x70] sm:$0xf]
      %v203 = vld [vmem:[%s166 + $0x74] sm:$0xf]
      %v204 = vld [vmem:[%s166 + $0x78] sm:$0xf]
      %v205 = vld [vmem:[%s166 + $0x7c] sm:$0xf]
      %v206 = vunpack.c.l.bf16 %v174
      %v207 = vunpack.c.l.bf16 %v175
      %v208 = vunpack.c.l.bf16 %v176
      %v209 = vunpack.c.l.bf16 %v177
      %v210 = vunpack.c.l.bf16 %v178
      %v211 = vunpack.c.l.bf16 %v179
      %v212 = vunpack.c.l.bf16 %v180
      %v213 = vunpack.c.l.bf16 %v181
      %v214 = vunpack.c.l.bf16 %v182
      %v215 = vunpack.c.l.bf16 %v183
      %v216 = vunpack.c.l.bf16 %v184
      %v217 = vunpack.c.l.bf16 %v185
      %v218 = vunpack.c.l.bf16 %v186
      %v219 = vunpack.c.l.bf16 %v187
      %v220 = vunpack.c.l.bf16 %v188
      %v221 = vunpack.c.l.bf16 %v189
      %v222 = vunpack.c.l.bf16 %v190
      %v223 = vunpack.c.l.bf16 %v191
      %v224 = vunpack.c.l.bf16 %v192
      %v225 = vunpack.c.l.bf16 %v193
      %v226 = vunpack.c.l.bf16 %v194
      %v227 = vunpack.c.l.bf16 %v195
      %v228 = vunpack.c.l.bf16 %v196
      %v229 = vunpack.c.l.bf16 %v197
      %v230 = vunpack.c.l.bf16 %v198
      %v231 = vunpack.c.l.bf16 %v199
      %v232 = vunpack.c.l.bf16 %v200
      %v233 = vunpack.c.l.bf16 %v201
      %v234 = vunpack.c.l.bf16 %v202
      %v235 = vunpack.c.l.bf16 %v203
      %v236 = vunpack.c.l.bf16 %v204
      %v237 = vunpack.c.l.bf16 %v205
      %v238 = vld [vmem:[%s1] sm:$0x1]
      %v240 = vlaneseq
      %v241 = vshrl.u32 %v240, 7
      %v242 = vsub.s32 0, %v241
      %v243 = vrot.slane %v238, %v242
      %v245 = vmul.f32 %v206, %v243
      %v246 = vmul.f32 %v207, %v243
      %v247 = vmul.f32 %v208, %v243
      %v248 = vmul.f32 %v209, %v243
      %v249 = vmul.f32 %v210, %v243
      %v250 = vmul.f32 %v211, %v243
      %v251 = vmul.f32 %v212, %v243
      %v252 = vmul.f32 %v213, %v243
      %v253 = vmul.f32 %v214, %v243
      %v254 = vmul.f32 %v215, %v243
      %v255 = vmul.f32 %v216, %v243
      %v256 = vmul.f32 %v217, %v243
      %v257 = vmul.f32 %v218, %v243
      %v258 = vmul.f32 %v219, %v243
      %v259 = vmul.f32 %v220, %v243
      %v260 = vmul.f32 %v221, %v243
      %v261 = vmul.f32 %v222, %v243
      %v262 = vmul.f32 %v223, %v243
      %v263 = vmul.f32 %v224, %v243
      %v264 = vmul.f32 %v225, %v243
      %v265 = vmul.f32 %v226, %v243
      %v266 = vmul.f32 %v227, %v243
      %v267 = vmul.f32 %v228, %v243
      %v268 = vmul.f32 %v229, %v243
      %v269 = vmul.f32 %v230, %v243
      %v270 = vmul.f32 %v231, %v243
      %v271 = vmul.f32 %v232, %v243
      %v272 = vmul.f32 %v233, %v243
      %v273 = vmul.f32 %v234, %v243
      %v274 = vmul.f32 %v235, %v243
      %v275 = vmul.f32 %v236, %v243
      %v276 = vmul.f32 %v237, %v243
      %v277 = vld [vmem:[%s2] sm:$0x1]
      %v279 = vlaneseq
      %v280 = vshrl.u32 %v279, 7
      %v281 = vsub.s32 0, %v280
      %v282 = vrot.slane %v277, %v281
      %v284 = vadd.f32 %v245, %v282
      %v285 = vadd.f32 %v246, %v282
      %v286 = vadd.f32 %v247, %v282
      %v287 = vadd.f32 %v248, %v282
      %v288 = vadd.f32 %v249, %v282
      %v289 = vadd.f32 %v250, %v282
      %v290 = vadd.f32 %v251, %v282
      %v291 = vadd.f32 %v252, %v282
      %v292 = vadd.f32 %v253, %v282
      %v293 = vadd.f32 %v254, %v282
      %v294 = vadd.f32 %v255, %v282
      %v295 = vadd.f32 %v256, %v282
      %v296 = vadd.f32 %v257, %v282
      %v297 = vadd.f32 %v258, %v282
      %v298 = vadd.f32 %v259, %v282
      %v299 = vadd.f32 %v260, %v282
      %v300 = vadd.f32 %v261, %v282
      %v301 = vadd.f32 %v262, %v282
      %v302 = vadd.f32 %v263, %v282
      %v303 = vadd.f32 %v264, %v282
      %v304 = vadd.f32 %v265, %v282
      %v305 = vadd.f32 %v266, %v282
      %v306 = vadd.f32 %v267, %v282
      %v307 = vadd.f32 %v268, %v282
      %v308 = vadd.f32 %v269, %v282
      %v309 = vadd.f32 %v270, %v282
      %v310 = vadd.f32 %v271, %v282
      %v311 = vadd.f32 %v272, %v282
      %v312 = vadd.f32 %v273, %v282
      %v313 = vadd.f32 %v274, %v282
      %v314 = vadd.f32 %v275, %v282
      %v315 = vadd.f32 %v276, %v282
      %v316 = vmax.f32 %v284, 0.0
      %v317 = vmax.f32 %v285, 0.0
      %v318 = vmax.f32 %v286, 0.0
      %v319 = vmax.f32 %v287, 0.0
      %v320 = vmax.f32 %v288, 0.0
      %v321 = vmax.f32 %v289, 0.0
      %v322 = vmax.f32 %v290, 0.0
      %v323 = vmax.f32 %v291, 0.0
      %v324 = vmax.f32 %v292, 0.0
      %v325 = vmax.f32 %v293, 0.0
      %v326 = vmax.f32 %v294, 0.0
      %v327 = vmax.f32 %v295, 0.0
      %v328 = vmax.f32 %v296, 0.0
      %v329 = vmax.f32 %v297, 0.0
      %v330 = vmax.f32 %v298, 0.0
      %v331 = vmax.f32 %v299, 0.0
      %v332 = vmax.f32 %v300, 0.0
      %v333 = vmax.f32 %v301, 0.0
      %v334 = vmax.f32 %v302, 0.0
      %v335 = vmax.f32 %v303, 0.0
      %v336 = vmax.f32 %v304, 0.0
      %v337 = vmax.f32 %v305, 0.0
      %v338 = vmax.f32 %v306, 0.0
      %v339 = vmax.f32 %v307, 0.0
      %v340 = vmax.f32 %v308, 0.0
      %v341 = vmax.f32 %v309, 0.0
      %v342 = vmax.f32 %v310, 0.0
      %v343 = vmax.f32 %v311, 0.0
      %v344 = vmax.f32 %v312, 0.0
      %v345 = vmax.f32 %v313, 0.0
      %v346 = vmax.f32 %v314, 0.0
      %v347 = vmax.f32 %v315, 0.0
      %v348 = vpack.c.bf16 %v317, %v316
      %v349 = vpack.c.bf16 %v319, %v318
      %v350 = vpack.c.bf16 %v321, %v320
      %v351 = vpack.c.bf16 %v323, %v322
      %v352 = vpack.c.bf16 %v325, %v324
      %v353 = vpack.c.bf16 %v327, %v326
      %v354 = vpack.c.bf16 %v329, %v328
      %v355 = vpack.c.bf16 %v331, %v330
      %v356 = vpack.c.bf16 %v333, %v332
      %v357 = vpack.c.bf16 %v335, %v334
      %v358 = vpack.c.bf16 %v337, %v336
      %v359 = vpack.c.bf16 %v339, %v338
      %v360 = vpack.c.bf16 %v341, %v340
      %v361 = vpack.c.bf16 %v343, %v342
      %v362 = vpack.c.bf16 %v345, %v344
      %v363 = vpack.c.bf16 %v347, %v346
      %v380 = vunpack.c.l.b16 %v348
      %v381 = vunpack.c.h.b16 %v348
      %v382 = vunpack.c.l.b16 %v349
      %v383 = vunpack.c.h.b16 %v349
      %v384 = vunpack.c.l.b16 %v350
      %v385 = vunpack.c.h.b16 %v350
      %v386 = vunpack.c.l.b16 %v351
      %v387 = vunpack.c.h.b16 %v351
      %v388 = vunpack.c.l.b16 %v352
      %v389 = vunpack.c.h.b16 %v352
      %v390 = vunpack.c.l.b16 %v353
      %v391 = vunpack.c.h.b16 %v353
      %v392 = vunpack.c.l.b16 %v354
      %v393 = vunpack.c.h.b16 %v354
      %v394 = vunpack.c.l.b16 %v355
      %v395 = vunpack.c.h.b16 %v355
      %v396 = vunpack.c.l.b16 %v356
      %v397 = vunpack.c.h.b16 %v356
      %v398 = vunpack.c.l.b16 %v357
      %v399 = vunpack.c.h.b16 %v357
      %v400 = vunpack.c.l.b16 %v358
      %v401 = vunpack.c.h.b16 %v358
      %v402 = vunpack.c.l.b16 %v359
      %v403 = vunpack.c.h.b16 %v359
      %v404 = vunpack.c.l.b16 %v360
      %v405 = vunpack.c.h.b16 %v360
      %v406 = vunpack.c.l.b16 %v361
      %v407 = vunpack.c.h.b16 %v361
      %v408 = vunpack.c.l.b16 %v362
      %v409 = vunpack.c.h.b16 %v362
      %v410 = vunpack.c.l.b16 %v363
      %v411 = vunpack.c.h.b16 %v363
      %v412 = vpack.c.b16 %v380, %v380
      %v413 = vpack.c.b16 %v381, %v381
      %v414 = vpack.c.b16 %v382, %v382
      %v415 = vpack.c.b16 %v383, %v383
      %v416 = vpack.c.b16 %v384, %v384
      %v417 = vpack.c.b16 %v385, %v385
      %v418 = vpack.c.b16 %v386, %v386
      %v419 = vpack.c.b16 %v387, %v387
      %v420 = vpack.c.b16 %v388, %v388
      %v421 = vpack.c.b16 %v389, %v389
      %v422 = vpack.c.b16 %v390, %v390
      %v423 = vpack.c.b16 %v391, %v391
      %v424 = vpack.c.b16 %v392, %v392
      %v425 = vpack.c.b16 %v393, %v393
      %v426 = vpack.c.b16 %v394, %v394
      %v427 = vpack.c.b16 %v395, %v395
      %v428 = vpack.c.b16 %v396, %v396
      %v429 = vpack.c.b16 %v397, %v397
      %v430 = vpack.c.b16 %v398, %v398
      %v431 = vpack.c.b16 %v399, %v399
      %v432 = vpack.c.b16 %v400, %v400
      %v433 = vpack.c.b16 %v401, %v401
      %v434 = vpack.c.b16 %v402, %v402
      %v435 = vpack.c.b16 %v403, %v403
      %v436 = vpack.c.b16 %v404, %v404
      %v437 = vpack.c.b16 %v405, %v405
      %v438 = vpack.c.b16 %v406, %v406
      %v439 = vpack.c.b16 %v407, %v407
      %v440 = vpack.c.b16 %v408, %v408
      %v441 = vpack.c.b16 %v409, %v409
      %v442 = vpack.c.b16 %v410, %v410
      %v443 = vpack.c.b16 %v411, %v411
      %476 = vst [vmem:[%s172] sm:$0xf] %v412
      %477 = vst [vmem:[%s172 + $0x4] sm:$0xf] %v413
      %478 = vst [vmem:[%s172 + $0x8] sm:$0xf] %v414
      %479 = vst [vmem:[%s172 + $0xc] sm:$0xf] %v415
      %480 = vst [vmem:[%s172 + $0x10] sm:$0xf] %v416
      %481 = vst [vmem:[%s172 + $0x14] sm:$0xf] %v417
      %482 = vst [vmem:[%s172 + $0x18] sm:$0xf] %v418
      %483 = vst [vmem:[%s172 + $0x1c] sm:$0xf] %v419
      %484 = vst [vmem:[%s172 + $0x20] sm:$0xf] %v420
      %485 = vst [vmem:[%s172 + $0x24] sm:$0xf] %v421
      %486 = vst [vmem:[%s172 + $0x28] sm:$0xf] %v422
      %487 = vst [vmem:[%s172 + $0x2c] sm:$0xf] %v423
      %488 = vst [vmem:[%s172 + $0x30] sm:$0xf] %v424
      %489 = vst [vmem:[%s172 + $0x34] sm:$0xf] %v425
      %490 = vst [vmem:[%s172 + $0x38] sm:$0xf] %v426
      %491 = vst [vmem:[%s172 + $0x3c] sm:$0xf] %v427
      %492 = vst [vmem:[%s172 + $0x40] sm:$0xf] %v428
      %493 = vst [vmem:[%s172 + $0x44] sm:$0xf] %v429
      %494 = vst [vmem:[%s172 + $0x48] sm:$0xf] %v430
      %495 = vst [vmem:[%s172 + $0x4c] sm:$0xf] %v431
      %496 = vst [vmem:[%s172 + $0x50] sm:$0xf] %v432
      %497 = vst [vmem:[%s172 + $0x54] sm:$0xf] %v433
      %498 = vst [vmem:[%s172 + $0x58] sm:$0xf] %v434
      %499 = vst [vmem:[%s172 + $0x5c] sm:$0xf] %v435
      %500 = vst [vmem:[%s172 + $0x60] sm:$0xf] %v436
      %501 = vst [vmem:[%s172 + $0x64] sm:$0xf] %v437
      %502 = vst [vmem:[%s172 + $0x68] sm:$0xf] %v438
      %503 = vst [vmem:[%s172 + $0x6c] sm:$0xf] %v439
      %504 = vst [vmem:[%s172 + $0x70] sm:$0xf] %v440
      %505 = vst [vmem:[%s172 + $0x74] sm:$0xf] %v441
      %506 = vst [vmem:[%s172 + $0x78] sm:$0xf] %v442
      %507 = vst [vmem:[%s172 + $0x7c] sm:$0xf] %v443
      %s508 = smul.u32 32, %s14
      %p509 = scmp.lt.s32.totalorder %s508, 63
      %s510 = scalar_select %p509, %s508, 63
      %s511 = smul.addr %s510, 4
      %s512 = scalar_lea.vmem %s3, %s511
      // Predicated region
      $region33: #{gin_forward.15} parent=31 // pred_check
        %p513 = pneg %p100
      $region34: #{gin_forward.15} parent=31 // pred_check_branch
        %515 = sbr.rel (%p513) target = $region36
      $region35: #{gin_forward.15} parent=31 // pred_region
        %s516 = smul.u32 32, %s14
      $region36: #{gin_forward.15} parent=31 // pred_fallthru
        _
    $region32: #{gin_forward.15} parent=5 // pred_fallthru
      _
    %p517 = scmp.le.s32.totalorder 2, %s9
    // Predicated region
    $region37: #{gin_forward.15} parent=5 // pred_check
      %p518 = pneg %p517
    $region38: #{gin_forward.15} parent=5 // pred_check_branch
      %520 = sbr.rel (%p518) target = $region40
    $region39: #{gin_forward.15} parent=5 // pred_region
      %s521 = ssub.s32 %s9, 2
      // Predicated region
      $region41: #{gin_forward.15} parent=39 // pred_check
        %p522 = pneg %p106
      $region42: #{gin_forward.15} parent=39 // pred_check_branch
        %524 = sbr.rel (%p522) target = $region44
      $region43: #{gin_forward.15} parent=39 // pred_region
        %s525 = smul.u32 32, %s15
        %p526 = scmp.lt.s32.totalorder %s525, 63
        %s527 = scalar_select %p526, %s525, 63
        %s528 = smul.addr %s527, 4
        %s529 = scalar_lea.vmem %s3, %s528
      $region44: #{gin_forward.15} parent=39 // pred_fallthru
        _
    $region40: #{gin_forward.15} parent=5 // pred_fallthru
      _
  $region6: #{gin_forward.15} parent=0 // loop_footer
    %s13 = sadd.s32 1, %s9
  $region7: #{gin_forward.15} parent=0 // loop_footer_branch
    %8 = sbr.rel target = $region3
  $region8: #{gin_forward.15} parent=0 // loop_exit
    _

// kernel: gin_forward.14
$region0: #{gin_forward.14}
  #allocation0 [shape = 'u32[]', space=smem, size = 0x4, offset = 0x4, fixed_abs, tag = 'smem constant byte address 0x4 - core index']
  #allocation1 [shape = 'u32[144,128]{1,0:T(1,128)}', space=vmem, size = 0x12000, scoped, tag = 'internal scratch']
  %s0 = inlined_call_operand.vmem [shape: bf16[512,128], index: 0, kind: input, shape index: {}]
  %s1 = inlined_call_operand.vmem [shape: f32[1,128], index: 1, kind: input, shape index: {}]
  %s2 = inlined_call_operand.vmem [shape: f32[1,128], index: 2, kind: input, shape index: {}]
  %s3 = inlined_call_operand.vmem [shape: bf16[128,128], index: 3, kind: input, shape index: {}]
  %s4 = inlined_call_operand.vmem [shape: bf16[512,128], index: 4, kind: output, shape index: {0}]
  %s5 = inlined_call_operand.vmem [shape: f32[16,128], index: 5, kind: output, shape index: {1}]
  %6 = xla_tuple %s4, %s5
  %s7 = sld [smem:[#allocation0]]
  $region57: #{gin_forward.14} parent=0
    _
  %s9 = ssub.s32 1, %s7
  %s10 = scalar_select 0, %s9, %s7
  loop: start=0, step=1, limit=4
  $region2: #{gin_forward.14} parent=0 // loop_pre_header
    _
  $region3: #{gin_forward.14} parent=0 // loop_header
    %s12 = sphi 0, %s16
    %p13 = scmp.ge.s32.totalorder %s12, 4
    %s22 = sphi 0, %s24
    %s25 = sphi 0, %s22
    %s26 = sphi 0, %s25
    %s42 = sphi 0, %s26
    %s46 = sphi 0, %s46
    %s48 = sphi 0, %s46
    %s49 = sphi 0, %s48
    %s63 = sphi 0, %s49
    %s67 = sphi 0, %s67
    %s69 = sphi 0, %s67
    %s70 = sphi 0, %s69
    %s84 = sphi 0, %s70
    %s88 = sphi 0, %s88
    %s90 = sphi 0, %s88
    %s91 = sphi 0, %s90
    %s105 = sphi 0, %s91
    %s111 = sphi 0, %s113
    %s114 = sphi 0, %s111
    %s115 = sphi 0, %s114
    %s131 = sphi 0, %s115
    %s137 = sphi 0, %s139
    %s140 = sphi 0, %s137
    %s141 = sphi 0, %s140
    %s157 = sphi 0, %s141
  $region4: #{gin_forward.14} parent=0 // loop_header_branch
    %15 = sbr.rel (%p13) target = $region8
  $region5: #{gin_forward.14} parent=0 // loop_body
    %s17 = ssub.s32 %s12, 1
    %s18 = ssub.s32 %s12, 2
    %s19 = sadd.s32 %s12, 1
    %s20 = ssub.s32 %s12, %s19
    %p21 = scmp.eq.s32.totalorder %s20, 0
    %s23 = sadd.s32 %s22, 1
    %s24 = scalar_select %p21, %s22, %s23
    %p27 = pneg %p21
    %p28 = scmp.eq.s32.totalorder %s12, 1
    %p29 = por %p27, %p28
    %p30 = scmp.ne.s32.totalorder %s22, %s25
    %p31 = scmp.eq.s32.totalorder %s12, 0
    %p32 = por %p30, %p31
    %p33 = scmp.ne.s32.totalorder %s22, %s25
    %p34 = scmp.eq.s32.totalorder %s17, 1
    %p35 = por %p33, %p34
    %p36 = scmp.ne.s32.totalorder %s25, %s26
    %p37 = scmp.eq.s32.totalorder %s17, 0
    %p38 = por %p36, %p37
    %p39 = scmp.ne.s32.totalorder %s25, %s26
    %p40 = scmp.eq.s32.totalorder %s18, 1
    %p41 = por %p39, %p40
    %p43 = scmp.ne.s32.totalorder %s26, %s42
    %p44 = scmp.eq.s32.totalorder %s18, 0
    %p45 = por %p43, %p44
    %s47 = sadd.s32 %s46, 1
    %p50 = scmp.eq.s32.totalorder %s12, 1
    %p51 = scmp.ne.s32.totalorder %s46, %s48
    %p52 = scmp.eq.s32.totalorder %s12, 0
    %p53 = por %p51, %p52
    %p54 = scmp.ne.s32.totalorder %s46, %s48
    %p55 = scmp.eq.s32.totalorder %s17, 1
    %p56 = por %p54, %p55
    %p57 = scmp.ne.s32.totalorder %s48, %s49
    %p58 = scmp.eq.s32.totalorder %s17, 0
    %p59 = por %p57, %p58
    %p60 = scmp.ne.s32.totalorder %s48, %s49
    %p61 = scmp.eq.s32.totalorder %s18, 1
    %p62 = por %p60, %p61
    %p64 = scmp.ne.s32.totalorder %s49, %s63
    %p65 = scmp.eq.s32.totalorder %s18, 0
    %p66 = por %p64, %p65
    %s68 = sadd.s32 %s67, 1
    %p71 = scmp.eq.s32.totalorder %s12, 1
    %p72 = scmp.ne.s32.totalorder %s67, %s69
    %p73 = scmp.eq.s32.totalorder %s12, 0
    %p74 = por %p72, %p73
    %p75 = scmp.ne.s32.totalorder %s67, %s69
    %p76 = scmp.eq.s32.totalorder %s17, 1
    %p77 = por %p75, %p76
    %p78 = scmp.ne.s32.totalorder %s69, %s70
    %p79 = scmp.eq.s32.totalorder %s17, 0
    %p80 = por %p78, %p79
    %p81 = scmp.ne.s32.totalorder %s69, %s70
    %p82 = scmp.eq.s32.totalorder %s18, 1
    %p83 = por %p81, %p82
    %p85 = scmp.ne.s32.totalorder %s70, %s84
    %p86 = scmp.eq.s32.totalorder %s18, 0
    %p87 = por %p85, %p86
    %s89 = sadd.s32 %s88, 1
    %p92 = scmp.eq.s32.totalorder %s12, 1
    %p93 = scmp.ne.s32.totalorder %s88, %s90
    %p94 = scmp.eq.s32.totalorder %s12, 0
    %p95 = por %p93, %p94
    %p96 = scmp.ne.s32.totalorder %s88, %s90
    %p97 = scmp.eq.s32.totalorder %s17, 1
    %p98 = por %p96, %p97
    %p99 = scmp.ne.s32.totalorder %s90, %s91
    %p100 = scmp.eq.s32.totalorder %s17, 0
    %p101 = por %p99, %p100
    %p102 = scmp.ne.s32.totalorder %s90, %s91
    %p103 = scmp.eq.s32.totalorder %s18, 1
    %p104 = por %p102, %p103
    %p106 = scmp.ne.s32.totalorder %s91, %s105
    %p107 = scmp.eq.s32.totalorder %s18, 0
    %p108 = por %p106, %p107
    %s109 = ssub.s32 %s12, %s19
    %p110 = scmp.eq.s32.totalorder %s109, 0
    %s112 = sadd.s32 %s111, 1
    %s113 = scalar_select %p110, %s111, %s112
    %p116 = pneg %p110
    %p117 = scmp.eq.s32.totalorder %s12, 1
    %p118 = por %p116, %p117
    %p119 = scmp.ne.s32.totalorder %s111, %s114
    %p120 = scmp.eq.s32.totalorder %s12, 0
    %p121 = por %p119, %p120
    %p122 = scmp.ne.s32.totalorder %s111, %s114
    %p123 = scmp.eq.s32.totalorder %s17, 1
    %p124 = por %p122, %p123
    %p125 = scmp.ne.s32.totalorder %s114, %s115
    %p126 = scmp.eq.s32.totalorder %s17, 0
    %p127 = por %p125, %p126
    %p128 = scmp.ne.s32.totalorder %s114, %s115
    %p129 = scmp.eq.s32.totalorder %s18, 1
    %p130 = por %p128, %p129
    %p132 = scmp.ne.s32.totalorder %s115, %s131
    %p133 = scmp.eq.s32.totalorder %s18, 0
    %p134 = por %p132, %p133
    %s135 = ssub.s32 %s12, %s19
    %p136 = scmp.eq.s32.totalorder %s135, 0
    %s138 = sadd.s32 %s137, 1
    %s139 = scalar_select %p136, %s137, %s138
    %p142 = pneg %p136
    %p143 = scmp.eq.s32.totalorder %s12, 1
    %p144 = por %p142, %p143
    %p145 = scmp.ne.s32.totalorder %s137, %s140
    %p146 = scmp.eq.s32.totalorder %s12, 0
    %p147 = por %p145, %p146
    %p148 = scmp.ne.s32.totalorder %s137, %s140
    %p149 = scmp.eq.s32.totalorder %s17, 1
    %p150 = por %p148, %p149
    %p151 = scmp.ne.s32.totalorder %s140, %s141
    %p152 = scmp.eq.s32.totalorder %s17, 0
    %p153 = por %p151, %p152
    %p154 = scmp.ne.s32.totalorder %s140, %s141
    %p155 = scmp.eq.s32.totalorder %s18, 1
    %p156 = por %p154, %p155
    %p158 = scmp.ne.s32.totalorder %s141, %s157
    %p159 = scmp.eq.s32.totalorder %s18, 0
    %p160 = por %p158, %p159
    %p161 = scmp.le.s32.totalorder 1, %s12
    %p162 = scmp.lt.s32.totalorder %s12, 3
    %p163 = pnand %p161, %p162
    %p164 = pneg %p163
    // Predicated region
    $region9: #{gin_forward.14} parent=5 // pred_check
      _
    $region10: #{gin_forward.14} parent=5 // pred_check_branch
      %166 = sbr.rel (%p163) target = $region12
    $region11: #{gin_forward.14} parent=5 // pred_region
      %s167 = ssub.s32 %s12, 1
      // Predicated region
      $region13: #{gin_forward.14} parent=11 // pred_check
        %p168 = pneg %p59
      $region14: #{gin_forward.14} parent=11 // pred_check_branch
        %170 = sbr.rel (%p168) target = $region16
      $region15: #{gin_forward.14} parent=11 // pred_region
        _
      $region16: #{gin_forward.14} parent=11 // pred_fallthru
        _
      // Predicated region
      $region17: #{gin_forward.14} parent=11 // pred_check
        %p171 = pneg %p80
      $region18: #{gin_forward.14} parent=11 // pred_check_branch
        %173 = sbr.rel (%p171) target = $region20
      $region19: #{gin_forward.14} parent=11 // pred_region
        _
      $region20: #{gin_forward.14} parent=11 // pred_fallthru
        _
      // Predicated region
      $region21: #{gin_forward.14} parent=11 // pred_check
        %p174 = pneg %p101
      $region22: #{gin_forward.14} parent=11 // pred_check_branch
        %176 = sbr.rel (%p174) target = $region24
      $region23: #{gin_forward.14} parent=11 // pred_region
        _
      $region24: #{gin_forward.14} parent=11 // pred_fallthru
        _
    $region12: #{gin_forward.14} parent=5 // pred_fallthru
      _
    %p177 = scmp.lt.s32.totalorder %s12, 2
    // Predicated region
    $region25: #{gin_forward.14} parent=5 // pred_check
      %p178 = pneg %p177
    $region26: #{gin_forward.14} parent=5 // pred_check_branch
      %180 = sbr.rel (%p178) target = $region28
    $region27: #{gin_forward.14} parent=5 // pred_region
      // Predicated region
      $region29: #{gin_forward.14} parent=27 // pred_check
        %p181 = pneg %p32
      $region30: #{gin_forward.14} parent=27 // pred_check_branch
        %183 = sbr.rel (%p181) target = $region32
      $region31: #{gin_forward.14} parent=27 // pred_region
        %s184 = smul.u32 32, %s12
        %p185 = scmp.lt.s32.totalorder %s184, 63
        %s186 = scalar_select %p185, %s184, 63
        %s187 = smul.addr %s186, 4
        %s188 = scalar_lea.vmem %s0, %s187
        %s189 = smul.u32 32, %s12
      $region32: #{gin_forward.14} parent=27 // pred_fallthru
        _
    $region28: #{gin_forward.14} parent=5 // pred_fallthru
      _
    %p190 = scmp.le.s32.totalorder 1, %s12
    %p191 = scmp.lt.s32.totalorder %s12, 3
    %p192 = pnand %p190, %p191
    %p193 = pneg %p192
    // Predicated region
    $region33: #{gin_forward.14} parent=5 // pred_check
      _
    $region34: #{gin_forward.14} parent=5 // pred_check_branch
      %195 = sbr.rel (%p192) target = $region36
    $region35: #{gin_forward.14} parent=5 // pred_region
      %s196 = ssub.s32 %s12, 1
      %s197 = smul.u32 32, %s17
      %p198 = scmp.lt.s32.totalorder %s197, 63
      %s199 = scalar_select %p198, %s197, 63
      %s200 = smul.addr %s199, 4
      %s201 = scalar_lea.vmem %s0, %s200
      %p202 = pneg %p38
      %p203 = pneg %p35
      %p204 = pneg %p59
      %p205 = pneg %p56
      %p206 = pneg %p80
      %p207 = pneg %p77
      %p208 = pneg %p101
      %p209 = pneg %p98
      %p210 = pneg %p127
      %p211 = pneg %p124
      %s212 = smul.u32 32, %s17
      %p213 = scmp.lt.s32.totalorder %s212, 63
      %s214 = scalar_select %p213, %s212, 63
      %s215 = smul.addr %s214, 4
      %s216 = scalar_lea.vmem %s4, %s215
      %p217 = pneg %p153
      %p218 = pneg %p150
      %p219 = scmp.lt.s32.totalorder %s17, 1
      %s220 = scalar_select %p219, %s17, 1
      %s221 = smul.addr %s220, 8
      %s222 = scalar_lea.vmem %s5, %s221
      %s223 = smul.u32 32, %s17
      %p224 = scmp.lt.s32.totalorder %s223, 63
      %s225 = scalar_select %p224, %s223, 63
      %s226 = smul.addr %s225, 4
      %s227 = scalar_lea.vmem %s0, %s226
      %s228 = smul.u32 32, %s17
      %s229 = smul.u32 32, %s17
      %p230 = scmp.lt.s32.totalorder %s229, 63
      %s231 = scalar_select %p230, %s229, 63
      %s232 = smul.addr %s231, 4
      %s233 = scalar_lea.vmem %s4, %s232
      %s234 = smul.u32 32, %s17
      %p235 = scmp.lt.s32.totalorder %s17, 1
      %s236 = scalar_select %p235, %s17, 1
      %s237 = smul.addr %s236, 8
      %s238 = scalar_lea.vmem %s5, %s237
      %v240 = vld [vmem:[%s227] sm:$0xf]
      %v241 = vld [vmem:[%s227 + $0x4] sm:$0xf]
      %v242 = vld [vmem:[%s227 + $0x8] sm:$0xf]
      %v243 = vld [vmem:[%s227 + $0xc] sm:$0xf]
      %v244 = vld [vmem:[%s227 + $0x10] sm:$0xf]
      %v245 = vld [vmem:[%s227 + $0x14] sm:$0xf]
      %v246 = vld [vmem:[%s227 + $0x18] sm:$0xf]
      %v247 = vld [vmem:[%s227 + $0x1c] sm:$0xf]
      %v248 = vld [vmem:[%s227 + $0x20] sm:$0xf]
      %v249 = vld [vmem:[%s227 + $0x24] sm:$0xf]
      %v250 = vld [vmem:[%s227 + $0x28] sm:$0xf]
      %v251 = vld [vmem:[%s227 + $0x2c] sm:$0xf]
      %v252 = vld [vmem:[%s227 + $0x30] sm:$0xf]
      %v253 = vld [vmem:[%s227 + $0x34] sm:$0xf]
      %v254 = vld [vmem:[%s227 + $0x38] sm:$0xf]
      %v255 = vld [vmem:[%s227 + $0x3c] sm:$0xf]
      %v256 = vld [vmem:[%s227 + $0x40] sm:$0xf]
      %v257 = vld [vmem:[%s227 + $0x44] sm:$0xf]
      %v258 = vld [vmem:[%s227 + $0x48] sm:$0xf]
      %v259 = vld [vmem:[%s227 + $0x4c] sm:$0xf]
      %v260 = vld [vmem:[%s227 + $0x50] sm:$0xf]
      %v261 = vld [vmem:[%s227 + $0x54] sm:$0xf]
      %v262 = vld [vmem:[%s227 + $0x58] sm:$0xf]
      %v263 = vld [vmem:[%s227 + $0x5c] sm:$0xf]
      %v264 = vld [vmem:[%s227 + $0x60] sm:$0xf]
      %v265 = vld [vmem:[%s227 + $0x64] sm:$0xf]
      %v266 = vld [vmem:[%s227 + $0x68] sm:$0xf]
      %v267 = vld [vmem:[%s227 + $0x6c] sm:$0xf]
      %v268 = vld [vmem:[%s227 + $0x70] sm:$0xf]
      %v269 = vld [vmem:[%s227 + $0x74] sm:$0xf]
      %v270 = vld [vmem:[%s227 + $0x78] sm:$0xf]
      %v271 = vld [vmem:[%s227 + $0x7c] sm:$0xf]
      %v272 = vunpack.c.l.bf16 %v240
      %v273 = vunpack.c.l.bf16 %v241
      %v274 = vunpack.c.l.bf16 %v242
      %v275 = vunpack.c.l.bf16 %v243
      %v276 = vunpack.c.l.bf16 %v244
      %v277 = vunpack.c.l.bf16 %v245
      %v278 = vunpack.c.l.bf16 %v246
      %v279 = vunpack.c.l.bf16 %v247
      %v280 = vunpack.c.l.bf16 %v248
      %v281 = vunpack.c.l.bf16 %v249
      %v282 = vunpack.c.l.bf16 %v250
      %v283 = vunpack.c.l.bf16 %v251
      %v284 = vunpack.c.l.bf16 %v252
      %v285 = vunpack.c.l.bf16 %v253
      %v286 = vunpack.c.l.bf16 %v254
      %v287 = vunpack.c.l.bf16 %v255
      %v288 = vunpack.c.l.bf16 %v256
      %v289 = vunpack.c.l.bf16 %v257
      %v290 = vunpack.c.l.bf16 %v258
      %v291 = vunpack.c.l.bf16 %v259
      %v292 = vunpack.c.l.bf16 %v260
      %v293 = vunpack.c.l.bf16 %v261
      %v294 = vunpack.c.l.bf16 %v262
      %v295 = vunpack.c.l.bf16 %v263
      %v296 = vunpack.c.l.bf16 %v264
      %v297 = vunpack.c.l.bf16 %v265
      %v298 = vunpack.c.l.bf16 %v266
      %v299 = vunpack.c.l.bf16 %v267
      %v300 = vunpack.c.l.bf16 %v268
      %v301 = vunpack.c.l.bf16 %v269
      %v302 = vunpack.c.l.bf16 %v270
      %v303 = vunpack.c.l.bf16 %v271
      %v304 = vld [vmem:[%s1] sm:$0x1]
      %v306 = vlaneseq
      %v307 = vshrl.u32 %v306, 7
      %v308 = vsub.s32 0, %v307
      %v309 = vrot.slane %v304, %v308
      %v311 = vmul.f32 %v272, %v309
      %v312 = vmul.f32 %v273, %v309
      %v313 = vmul.f32 %v274, %v309
      %v314 = vmul.f32 %v275, %v309
      %v315 = vmul.f32 %v276, %v309
      %v316 = vmul.f32 %v277, %v309
      %v317 = vmul.f32 %v278, %v309
      %v318 = vmul.f32 %v279, %v309
      %v319 = vmul.f32 %v280, %v309
      %v320 = vmul.f32 %v281, %v309
      %v321 = vmul.f32 %v282, %v309
      %v322 = vmul.f32 %v283, %v309
      %v323 = vmul.f32 %v284, %v309
      %v324 = vmul.f32 %v285, %v309
      %v325 = vmul.f32 %v286, %v309
      %v326 = vmul.f32 %v287, %v309
      %v327 = vmul.f32 %v288, %v309
      %v328 = vmul.f32 %v289, %v309
      %v329 = vmul.f32 %v290, %v309
      %v330 = vmul.f32 %v291, %v309
      %v331 = vmul.f32 %v292, %v309
      %v332 = vmul.f32 %v293, %v309
      %v333 = vmul.f32 %v294, %v309
      %v334 = vmul.f32 %v295, %v309
      %v335 = vmul.f32 %v296, %v309
      %v336 = vmul.f32 %v297, %v309
      %v337 = vmul.f32 %v298, %v309
      %v338 = vmul.f32 %v299, %v309
      %v339 = vmul.f32 %v300, %v309
      %v340 = vmul.f32 %v301, %v309
      %v341 = vmul.f32 %v302, %v309
      %v342 = vmul.f32 %v303, %v309
      %v343 = vld [vmem:[%s2] sm:$0x1]
      %v345 = vlaneseq
      %v346 = vshrl.u32 %v345, 7
      %v347 = vsub.s32 0, %v346
      %v348 = vrot.slane %v343, %v347
      %v350 = vadd.f32 %v311, %v348
      %v351 = vadd.f32 %v312, %v348
      %v352 = vadd.f32 %v313, %v348
      %v353 = vadd.f32 %v314, %v348
      %v354 = vadd.f32 %v315, %v348
      %v355 = vadd.f32 %v316, %v348
      %v356 = vadd.f32 %v317, %v348
      %v357 = vadd.f32 %v318, %v348
      %v358 = vadd.f32 %v319, %v348
      %v359 = vadd.f32 %v320, %v348
      %v360 = vadd.f32 %v321, %v348
      %v361 = vadd.f32 %v322, %v348
      %v362 = vadd.f32 %v323, %v348
      %v363 = vadd.f32 %v324, %v348
      %v364 = vadd.f32 %v325, %v348
      %v365 = vadd.f32 %v326, %v348
      %v366 = vadd.f32 %v327, %v348
      %v367 = vadd.f32 %v328, %v348
      %v368 = vadd.f32 %v329, %v348
      %v369 = vadd.f32 %v330, %v348
      %v370 = vadd.f32 %v331, %v348
      %v371 = vadd.f32 %v332, %v348
      %v372 = vadd.f32 %v333, %v348
      %v373 = vadd.f32 %v334, %v348
      %v374 = vadd.f32 %v335, %v348
      %v375 = vadd.f32 %v336, %v348
      %v376 = vadd.f32 %v337, %v348
      %v377 = vadd.f32 %v338, %v348
      %v378 = vadd.f32 %v339, %v348
      %v379 = vadd.f32 %v340, %v348
      %v380 = vadd.f32 %v341, %v348
      %v381 = vadd.f32 %v342, %v348
      %v382 = vmax.f32 %v350, 0.0
      %v383 = vmax.f32 %v351, 0.0
      %v384 = vmax.f32 %v352, 0.0
      %v385 = vmax.f32 %v353, 0.0
      %v386 = vmax.f32 %v354, 0.0
      %v387 = vmax.f32 %v355, 0.0
      %v388 = vmax.f32 %v356, 0.0
      %v389 = vmax.f32 %v357, 0.0
      %v390 = vmax.f32 %v358, 0.0
      %v391 = vmax.f32 %v359, 0.0
      %v392 = vmax.f32 %v360, 0.0
      %v393 = vmax.f32 %v361, 0.0
      %v394 = vmax.f32 %v362, 0.0
      %v395 = vmax.f32 %v363, 0.0
      %v396 = vmax.f32 %v364, 0.0
      %v397 = vmax.f32 %v365, 0.0
      %v398 = vmax.f32 %v366, 0.0
      %v399 = vmax.f32 %v367, 0.0
      %v400 = vmax.f32 %v368, 0.0
      %v401 = vmax.f32 %v369, 0.0
      %v402 = vmax.f32 %v370, 0.0
      %v403 = vmax.f32 %v371, 0.0
      %v404 = vmax.f32 %v372, 0.0
      %v405 = vmax.f32 %v373, 0.0
      %v406 = vmax.f32 %v374, 0.0
      %v407 = vmax.f32 %v375, 0.0
      %v408 = vmax.f32 %v376, 0.0
      %v409 = vmax.f32 %v377, 0.0
      %v410 = vmax.f32 %v378, 0.0
      %v411 = vmax.f32 %v379, 0.0
      %v412 = vmax.f32 %v380, 0.0
      %v413 = vmax.f32 %v381, 0.0
      %s414 = smul.u32 %s17, 256
      %v415 = vlaneseq
      %v416 = vshrl.u32 %v415, 7
      %v417 = vadd.s32 %v416, 8
      %v418 = vadd.s32 %v416, 16
      %v419 = vadd.s32 %v416, 24
      %v420 = vadd.s32 %v416, 32
      %v421 = vadd.s32 %v416, 40
      %v422 = vadd.s32 %v416, 48
      %v423 = vadd.s32 %v416, 56
      %v424 = vadd.s32 %v416, 64
      %v425 = vadd.s32 %v416, 72
      %v426 = vadd.s32 %v416, 80
      %v427 = vadd.s32 %v416, 88
      %v428 = vadd.s32 %v416, 96
      %v429 = vadd.s32 %v416, 104
      %v430 = vadd.s32 %v416, 112
      %v431 = vadd.s32 %v416, 120
      %v432 = vadd.s32 %v416, 128
      %v433 = vadd.s32 %v416, 136
      %v434 = vadd.s32 %v416, 144
      %v435 = vadd.s32 %v416, 152
      %v436 = vadd.s32 %v416, 160
      %v437 = vadd.s32 %v416, 168
      %v438 = vadd.s32 %v416, 176
      %v439 = vadd.s32 %v416, 184
      %v440 = vadd.s32 %v416, 192
      %v441 = vadd.s32 %v416, 200
      %v442 = vadd.s32 %v416, 208
      %v443 = vadd.s32 %v416, 216
      %v444 = vadd.s32 %v416, 224
      %v445 = vadd.s32 %v416, 232
      %v446 = vadd.s32 %v416, 240
      %v447 = vadd.s32 %v416, 248
      %v448 = vstv %s414
      %v449 = vadd.s32 %v448, %v416
      %v450 = vadd.s32 %v448, %v417
      %v451 = vadd.s32 %v448, %v418
      %v452 = vadd.s32 %v448, %v419
      %v453 = vadd.s32 %v448, %v420
      %v454 = vadd.s32 %v448, %v421
      %v455 = vadd.s32 %v448, %v422
      %v456 = vadd.s32 %v448, %v423
      %v457 = vadd.s32 %v448, %v424
      %v458 = vadd.s32 %v448, %v425
      %v459 = vadd.s32 %v448, %v426
      %v460 = vadd.s32 %v448, %v427
      %v461 = vadd.s32 %v448, %v428
      %v462 = vadd.s32 %v448, %v429
      %v463 = vadd.s32 %v448, %v430
      %v464 = vadd.s32 %v448, %v431
      %v465 = vadd.s32 %v448, %v432
      %v466 = vadd.s32 %v448, %v433
      %v467 = vadd.s32 %v448, %v434
      %v468 = vadd.s32 %v448, %v435
      %v469 = vadd.s32 %v448, %v436
      %v470 = vadd.s32 %v448, %v437
      %v471 = vadd.s32 %v448, %v438
      %v472 = vadd.s32 %v448, %v439
      %v473 = vadd.s32 %v448, %v440
      %v474 = vadd.s32 %v448, %v441
      %v475 = vadd.s32 %v448, %v442
      %v476 = vadd.s32 %v448, %v443
      %v477 = vadd.s32 %v448, %v444
      %v478 = vadd.s32 %v448, %v445
      %v479 = vadd.s32 %v448, %v446
      %v480 = vadd.s32 %v448, %v447
      %vm481 = vcmp.lt.s32.totalorder %v449, 500
      %vm482 = vcmp.lt.s32.totalorder %v450, 500
      %vm483 = vcmp.lt.s32.totalorder %v451, 500
      %vm484 = vcmp.lt.s32.totalorder %v452, 500
      %vm485 = vcmp.lt.s32.totalorder %v453, 500
      %vm486 = vcmp.lt.s32.totalorder %v454, 500
      %vm487 = vcmp.lt.s32.totalorder %v455, 500
      %vm488 = vcmp.lt.s32.totalorder %v456, 500
      %vm489 = vcmp.lt.s32.totalorder %v457, 500
      %vm490 = vcmp.lt.s32.totalorder %v458, 500
      %vm491 = vcmp.lt.s32.totalorder %v459, 500
      %vm492 = vcmp.lt.s32.totalorder %v460, 500
      %vm493 = vcmp.lt.s32.totalorder %v461, 500
      %vm494 = vcmp.lt.s32.totalorder %v462, 500
      %vm495 = vcmp.lt.s32.totalorder %v463, 500
      %vm496 = vcmp.lt.s32.totalorder %v464, 500
      %vm497 = vcmp.lt.s32.totalorder %v465, 500
      %vm498 = vcmp.lt.s32.totalorder %v466, 500
      %vm499 = vcmp.lt.s32.totalorder %v467, 500
      %vm500 = vcmp.lt.s32.totalorder %v468, 500
      %vm501 = vcmp.lt.s32.totalorder %v469, 500
      %vm502 = vcmp.lt.s32.totalorder %v470, 500
      %vm503 = vcmp.lt.s32.totalorder %v471, 500
      %vm504 = vcmp.lt.s32.totalorder %v472, 500
      %vm505 = vcmp.lt.s32.totalorder %v473, 500
      %vm506 = vcmp.lt.s32.totalorder %v474, 500
      %vm507 = vcmp.lt.s32.totalorder %v475, 500
      %vm508 = vcmp.lt.s32.totalorder %v476, 500
      %vm509 = vcmp.lt.s32.totalorder %v477, 500
      %vm510 = vcmp.lt.s32.totalorder %v478, 500
      %vm511 = vcmp.lt.s32.totalorder %v479, 500
      %vm512 = vcmp.lt.s32.totalorder %v480, 500
      %v513 = vsel %vm481, %v382, 0.0
      %v514 = vsel %vm482, %v383, 0.0
      %v515 = vsel %vm483, %v384, 0.0
      %v516 = vsel %vm484, %v385, 0.0
      %v517 = vsel %vm485, %v386, 0.0
      %v518 = vsel %vm486, %v387, 0.0
      %v519 = vsel %vm487, %v388, 0.0
      %v520 = vsel %vm488, %v389, 0.0
      %v521 = vsel %vm489, %v390, 0.0
      %v522 = vsel %vm490, %v391, 0.0
      %v523 = vsel %vm491, %v392, 0.0
      %v524 = vsel %vm492, %v393, 0.0
      %v525 = vsel %vm493, %v394, 0.0
      %v526 = vsel %vm494, %v395, 0.0
      %v527 = vsel %vm495, %v396, 0.0
      %v528 = vsel %vm496, %v397, 0.0
      %v529 = vsel %vm497, %v398, 0.0
      %v530 = vsel %vm498, %v399, 0.0
      %v531 = vsel %vm499, %v400, 0.0
      %v532 = vsel %vm500, %v401, 0.0
      %v533 = vsel %vm501, %v402, 0.0
      %v534 = vsel %vm502, %v403, 0.0
      %v535 = vsel %vm503, %v404, 0.0
      %v536 = vsel %vm504, %v405, 0.0
      %v537 = vsel %vm505, %v406, 0.0
      %v538 = vsel %vm506, %v407, 0.0
      %v539 = vsel %vm507, %v408, 0.0
      %v540 = vsel %vm508, %v409, 0.0
      %v541 = vsel %vm509, %v410, 0.0
      %v542 = vsel %vm510, %v411, 0.0
      %v543 = vsel %vm511, %v412, 0.0
      %v544 = vsel %vm512, %v413, 0.0
      %v545 = vpack.c.bf16 %v514, %v513
      %v546 = vpack.c.bf16 %v516, %v515
      %v547 = vpack.c.bf16 %v518, %v517
      %v548 = vpack.c.bf16 %v520, %v519
      %v549 = vpack.c.bf16 %v522, %v521
      %v550 = vpack.c.bf16 %v524, %v523
      %v551 = vpack.c.bf16 %v526, %v525
      %v552 = vpack.c.bf16 %v528, %v527
      %v553 = vpack.c.bf16 %v530, %v529
      %v554 = vpack.c.bf16 %v532, %v531
      %v555 = vpack.c.bf16 %v534, %v533
      %v556 = vpack.c.bf16 %v536, %v535
      %v557 = vpack.c.bf16 %v538, %v537
      %v558 = vpack.c.bf16 %v540, %v539
      %v559 = vpack.c.bf16 %v542, %v541
      %v560 = vpack.c.bf16 %v544, %v543
      %v561 = vld [vmem:[%s3] sm:$0xf]
      %v562 = vld [vmem:[%s3 + $0x4] sm:$0xf]
      %v563 = vld [vmem:[%s3 + $0x8] sm:$0xf]
      %v564 = vld [vmem:[%s3 + $0xc] sm:$0xf]
      %v565 = vld [vmem:[%s3 + $0x10] sm:$0xf]
      %v566 = vld [vmem:[%s3 + $0x14] sm:$0xf]
      %v567 = vld [vmem:[%s3 + $0x18] sm:$0xf]
      %v568 = vld [vmem:[%s3 + $0x1c] sm:$0xf]
      %v569 = vld [vmem:[%s3 + $0x20] sm:$0xf]
      %v570 = vld [vmem:[%s3 + $0x24] sm:$0xf]
      %v571 = vld [vmem:[%s3 + $0x28] sm:$0xf]
      %v572 = vld [vmem:[%s3 + $0x2c] sm:$0xf]
      %v573 = vld [vmem:[%s3 + $0x30] sm:$0xf]
      %v574 = vld [vmem:[%s3 + $0x34] sm:$0xf]
      %v575 = vld [vmem:[%s3 + $0x38] sm:$0xf]
      %v576 = vld [vmem:[%s3 + $0x3c] sm:$0xf]
      %v593 = vunpack.c.l.b16 %v561
      %v594 = vunpack.c.l.b16 %v562
      %v595 = vunpack.c.l.b16 %v563
      %v596 = vunpack.c.l.b16 %v564
      %v597 = vunpack.c.l.b16 %v565
      %v598 = vunpack.c.l.b16 %v566
      %v599 = vunpack.c.l.b16 %v567
      %v600 = vunpack.c.l.b16 %v568
      %v601 = vunpack.c.l.b16 %v569
      %v602 = vunpack.c.l.b16 %v570
      %v603 = vunpack.c.l.b16 %v571
      %v604 = vunpack.c.l.b16 %v572
      %v605 = vunpack.c.l.b16 %v573
      %v606 = vunpack.c.l.b16 %v574
      %v607 = vunpack.c.l.b16 %v575
      %v608 = vunpack.c.l.b16 %v576
      %v609 = vpack.c.b16 %v594, %v593
      %v610 = vpack.c.b16 %v596, %v595
      %v611 = vpack.c.b16 %v598, %v597
      %v612 = vpack.c.b16 %v600, %v599
      %v613 = vpack.c.b16 %v602, %v601
      %v614 = vpack.c.b16 %v604, %v603
      %v615 = vpack.c.b16 %v606, %v605
      %v616 = vpack.c.b16 %v608, %v607
      %625 = vmatprep.subr.bf16.mxu0 0
      %626 = vmatpush1.bf16.msra.mxu0 %v616
      %627 = vmatprep.subr.bf16.mxu0 0
      %628 = vmatpush1.bf16.msra.mxu0 %v615
      %629 = vmatprep.subr.bf16.mxu0 0
      %630 = vmatpush1.bf16.msra.mxu0 %v614
      %631 = vmatprep.subr.bf16.mxu0 0
      %632 = vmatpush1.bf16.msra.mxu0 %v613
      %633 = vmatprep.subr.bf16.mxu0 0
      %634 = vmatpush1.bf16.msra.mxu0 %v612
      %635 = vmatprep.subr.bf16.mxu0 0
      %636 = vmatpush1.bf16.msra.mxu0 %v611
      %637 = vmatprep.subr.bf16.mxu0 0
      %638 = vmatpush1.bf16.msra.mxu0 %v610
      %639 = vmatprep.subr.bf16.mxu0 0
      %640 = vmatpush1.bf16.msra.mxu0 %v609
      %641 = vmatprep.subr.bf16.mxu0 0
      %642 = vmatpush2.bf16.msra.mxu0 0
      %643 = vmatprep.subr.bf16.mxu0 0
      %644 = vmatpush2.bf16.msra.mxu0 0
      %645 = vmatprep.subr.bf16.mxu0 0
      %646 = vmatpush2.bf16.msra.mxu0 0
      %647 = vmatprep.subr.bf16.mxu0 0
      %648 = vmatpush2.bf16.msra.mxu0 0
      %649 = vmatprep.subr.bf16.mxu0 0
      %650 = vmatpush2.bf16.msra.mxu0 0
      %651 = vmatprep.subr.bf16.mxu0 0
      %652 = vmatpush2.bf16.msra.mxu0 0
      %653 = vmatprep.subr.bf16.mxu0 0
      %654 = vmatpush2.bf16.msra.mxu0 0
      %655 = vmatprep.subr.bf16.mxu0 0
      %656 = vmatpush2.bf16.msra.mxu0 0
      %657 = vmatprep.mubr.bf16.mxu0 0
      %658 = vmatmul.mubr.bf16.gmra.mxu0 %v545
      %v659 = vpop.f32.mrf.mxu0
      %v660 = vadd.f32 0.0, %v659
      %v661 = vpop.f32.mrf.mxu0
      %v662 = vpop.f32.mrf.mxu0
      %v663 = vadd.f32 0.0, %v662
      %v664 = vpop.f32.mrf.mxu0
      %665 = vmatprep.mubr.bf16.mxu0 0
      %666 = vmatmul.mubr.bf16.gmra.mxu0 %v546
      %v667 = vpop.f32.mrf.mxu0
      %v668 = vadd.f32 0.0, %v667
      %v669 = vpop.f32.mrf.mxu0
      %v670 = vpop.f32.mrf.mxu0
      %v671 = vadd.f32 0.0, %v670
      %v672 = vpop.f32.mrf.mxu0
      %673 = vmatprep.mubr.bf16.mxu0 0
      %674 = vmatmul.mubr.bf16.gmra.mxu0 %v547
      %v675 = vpop.f32.mrf.mxu0
      %v676 = vadd.f32 0.0, %v675
      %v677 = vpop.f32.mrf.mxu0
      %v678 = vpop.f32.mrf.mxu0
      %v679 = vadd.f32 0.0, %v678
      %v680 = vpop.f32.mrf.mxu0
      %681 = vmatprep.mubr.bf16.mxu0 0
      %682 = vmatmul.mubr.bf16.gmra.mxu0 %v548
      %v683 = vpop.f32.mrf.mxu0
      %v684 = vadd.f32 0.0, %v683
      %v685 = vpop.f32.mrf.mxu0
      %v686 = vpop.f32.mrf.mxu0
      %v687 = vadd.f32 0.0, %v686
      %v688 = vpop.f32.mrf.mxu0
      %689 = vmatprep.mubr.bf16.mxu0 0
      %690 = vmatmul.mubr.bf16.gmra.mxu0 %v549
      %v691 = vpop.f32.mrf.mxu0
      %v692 = vadd.f32 0.0, %v691
      %v693 = vpop.f32.mrf.mxu0
      %v694 = vpop.f32.mrf.mxu0
      %v695 = vadd.f32 0.0, %v694
      %v696 = vpop.f32.mrf.mxu0
      %697 = vmatprep.mubr.bf16.mxu0 0
      %698 = vmatmul.mubr.bf16.gmra.mxu0 %v550
      %v699 = vpop.f32.mrf.mxu0
      %v700 = vadd.f32 0.0, %v699
      %v701 = vpop.f32.mrf.mxu0
      %v702 = vpop.f32.mrf.mxu0
      %v703 = vadd.f32 0.0, %v702
      %v704 = vpop.f32.mrf.mxu0
      %705 = vmatprep.mubr.bf16.mxu0 0
      %706 = vmatmul.mubr.bf16.gmra.mxu0 %v551
      %v707 = vpop.f32.mrf.mxu0
      %v708 = vadd.f32 0.0, %v707
      %v709 = vpop.f32.mrf.mxu0
      %v710 = vpop.f32.mrf.mxu0
      %v711 = vadd.f32 0.0, %v710
      %v712 = vpop.f32.mrf.mxu0
      %713 = vmatprep.mubr.bf16.mxu0 0
      %714 = vmatmul.mubr.bf16.gmra.mxu0 %v552
      %v715 = vpop.f32.mrf.mxu0
      %v716 = vadd.f32 0.0, %v715
      %v717 = vpop.f32.mrf.mxu0
      %v718 = vpop.f32.mrf.mxu0
      %v719 = vadd.f32 0.0, %v718
      %v720 = vpop.f32.mrf.mxu0
      %721 = vmatprep.mubr.bf16.mxu0 0
      %722 = vmatmul.mubr.bf16.gmra.mxu0 %v553
      %v723 = vpop.f32.mrf.mxu0
      %v724 = vadd.f32 0.0, %v723
      %v725 = vpop.f32.mrf.mxu0
      %v726 = vpop.f32.mrf.mxu0
      %v727 = vadd.f32 0.0, %v726
      %v728 = vpop.f32.mrf.mxu0
      %729 = vmatprep.mubr.bf16.mxu0 0
      %730 = vmatmul.mubr.bf16.gmra.mxu0 %v554
      %v731 = vpop.f32.mrf.mxu0
      %v732 = vadd.f32 0.0, %v731
      %v733 = vpop.f32.mrf.mxu0
      %v734 = vpop.f32.mrf.mxu0
      %v735 = vadd.f32 0.0, %v734
      %v736 = vpop.f32.mrf.mxu0
      %737 = vmatprep.mubr.bf16.mxu0 0
      %738 = vmatmul.mubr.bf16.gmra.mxu0 %v555
      %v739 = vpop.f32.mrf.mxu0
      %v740 = vadd.f32 0.0, %v739
      %v741 = vpop.f32.mrf.mxu0
      %v742 = vpop.f32.mrf.mxu0
      %v743 = vadd.f32 0.0, %v742
      %v744 = vpop.f32.mrf.mxu0
      %745 = vmatprep.mubr.bf16.mxu0 0
      %746 = vmatmul.mubr.bf16.gmra.mxu0 %v556
      %v747 = vpop.f32.mrf.mxu0
      %v748 = vadd.f32 0.0, %v747
      %v749 = vpop.f32.mrf.mxu0
      %v750 = vpop.f32.mrf.mxu0
      %v751 = vadd.f32 0.0, %v750
      %v752 = vpop.f32.mrf.mxu0
      %753 = vmatprep.mubr.bf16.mxu0 0
      %754 = vmatmul.mubr.bf16.gmra.mxu0 %v557
      %v755 = vpop.f32.mrf.mxu0
      %v756 = vadd.f32 0.0, %v755
      %v757 = vpop.f32.mrf.mxu0
      %v758 = vpop.f32.mrf.mxu0
      %v759 = vadd.f32 0.0, %v758
      %v760 = vpop.f32.mrf.mxu0
      %761 = vmatprep.mubr.bf16.mxu0 0
      %762 = vmatmul.mubr.bf16.gmra.mxu0 %v558
      %v763 = vpop.f32.mrf.mxu0
      %v764 = vadd.f32 0.0, %v763
      %v765 = vpop.f32.mrf.mxu0
      %v766 = vpop.f32.mrf.mxu0
      %v767 = vadd.f32 0.0, %v766
      %v768 = vpop.f32.mrf.mxu0
      %769 = vmatprep.mubr.bf16.mxu0 0
      %770 = vmatmul.mubr.bf16.gmra.mxu0 %v559
      %v771 = vpop.f32.mrf.mxu0
      %v772 = vadd.f32 0.0, %v771
      %v773 = vpop.f32.mrf.mxu0
      %v774 = vpop.f32.mrf.mxu0
      %v775 = vadd.f32 0.0, %v774
      %v776 = vpop.f32.mrf.mxu0
      %777 = vmatprep.mubr.bf16.mxu0 0
      %778 = vmatmul.mubr.bf16.gmra.mxu0 %v560
      %v779 = vpop.f32.mrf.mxu0
      %v780 = vadd.f32 0.0, %v779
      %v781 = vpop.f32.mrf.mxu0
      %v782 = vpop.f32.mrf.mxu0
      %v783 = vadd.f32 0.0, %v782
      %v784 = vpop.f32.mrf.mxu0
      %785 = vdwg.mxu0
      %v786 = vpack.c.bf16 %v663, %v660
      %v787 = vpack.c.bf16 %v671, %v668
      %v788 = vpack.c.bf16 %v679, %v676
      %v789 = vpack.c.bf16 %v687, %v684
      %v790 = vpack.c.bf16 %v695, %v692
      %v791 = vpack.c.bf16 %v703, %v700
      %v792 = vpack.c.bf16 %v711, %v708
      %v793 = vpack.c.bf16 %v719, %v716
      %v794 = vpack.c.bf16 %v727, %v724
      %v795 = vpack.c.bf16 %v735, %v732
      %v796 = vpack.c.bf16 %v743, %v740
      %v797 = vpack.c.bf16 %v751, %v748
      %v798 = vpack.c.bf16 %v759, %v756
      %v799 = vpack.c.bf16 %v767, %v764
      %v800 = vpack.c.bf16 %v775, %v772
      %v801 = vpack.c.bf16 %v783, %v780
      %v818 = vunpack.c.l.b16 %v786
      %v819 = vunpack.c.h.b16 %v786
      %v820 = vunpack.c.l.b16 %v787
      %v821 = vunpack.c.h.b16 %v787
      %v822 = vunpack.c.l.b16 %v788
      %v823 = vunpack.c.h.b16 %v788
      %v824 = vunpack.c.l.b16 %v789
      %v825 = vunpack.c.h.b16 %v789
      %v826 = vunpack.c.l.b16 %v790
      %v827 = vunpack.c.h.b16 %v790
      %v828 = vunpack.c.l.b16 %v791
      %v829 = vunpack.c.h.b16 %v791
      %v830 = vunpack.c.l.b16 %v792
      %v831 = vunpack.c.h.b16 %v792
      %v832 = vunpack.c.l.b16 %v793
      %v833 = vunpack.c.h.b16 %v793
      %v834 = vunpack.c.l.b16 %v794
      %v835 = vunpack.c.h.b16 %v794
      %v836 = vunpack.c.l.b16 %v795
      %v837 = vunpack.c.h.b16 %v795
      %v838 = vunpack.c.l.b16 %v796
      %v839 = vunpack.c.h.b16 %v796
      %v840 = vunpack.c.l.b16 %v797
      %v841 = vunpack.c.h.b16 %v797
      %v842 = vunpack.c.l.b16 %v798
      %v843 = vunpack.c.h.b16 %v798
      %v844 = vunpack.c.l.b16 %v799
      %v845 = vunpack.c.h.b16 %v799
      %v846 = vunpack.c.l.b16 %v800
      %v847 = vunpack.c.h.b16 %v800
      %v848 = vunpack.c.l.b16 %v801
      %v849 = vunpack.c.h.b16 %v801
      %v850 = vpack.c.b16 %v818, %v818
      %v851 = vpack.c.b16 %v819, %v819
      %v852 = vpack.c.b16 %v820, %v820
      %v853 = vpack.c.b16 %v821, %v821
      %v854 = vpack.c.b16 %v822, %v822
      %v855 = vpack.c.b16 %v823, %v823
      %v856 = vpack.c.b16 %v824, %v824
      %v857 = vpack.c.b16 %v825, %v825
      %v858 = vpack.c.b16 %v826, %v826
      %v859 = vpack.c.b16 %v827, %v827
      %v860 = vpack.c.b16 %v828, %v828
      %v861 = vpack.c.b16 %v829, %v829
      %v862 = vpack.c.b16 %v830, %v830
      %v863 = vpack.c.b16 %v831, %v831
      %v864 = vpack.c.b16 %v832, %v832
      %v865 = vpack.c.b16 %v833, %v833
      %v866 = vpack.c.b16 %v834, %v834
      %v867 = vpack.c.b16 %v835, %v835
      %v868 = vpack.c.b16 %v836, %v836
      %v869 = vpack.c.b16 %v837, %v837
      %v870 = vpack.c.b16 %v838, %v838
      %v871 = vpack.c.b16 %v839, %v839
      %v872 = vpack.c.b16 %v840, %v840
      %v873 = vpack.c.b16 %v841, %v841
      %v874 = vpack.c.b16 %v842, %v842
      %v875 = vpack.c.b16 %v843, %v843
      %v876 = vpack.c.b16 %v844, %v844
      %v877 = vpack.c.b16 %v845, %v845
      %v878 = vpack.c.b16 %v846, %v846
      %v879 = vpack.c.b16 %v847, %v847
      %v880 = vpack.c.b16 %v848, %v848
      %v881 = vpack.c.b16 %v849, %v849
      %914 = vst [vmem:[%s233] sm:$0xf] %v850
      %915 = vst [vmem:[%s233 + $0x4] sm:$0xf] %v851
      %916 = vst [vmem:[%s233 + $0x8] sm:$0xf] %v852
      %917 = vst [vmem:[%s233 + $0xc] sm:$0xf] %v853
      %918 = vst [vmem:[%s233 + $0x10] sm:$0xf] %v854
      %919 = vst [vmem:[%s233 + $0x14] sm:$0xf] %v855
      %920 = vst [vmem:[%s233 + $0x18] sm:$0xf] %v856
      %921 = vst [vmem:[%s233 + $0x1c] sm:$0xf] %v857
      %922 = vst [vmem:[%s233 + $0x20] sm:$0xf] %v858
      %923 = vst [vmem:[%s233 + $0x24] sm:$0xf] %v859
      %924 = vst [vmem:[%s233 + $0x28] sm:$0xf] %v860
      %925 = vst [vmem:[%s233 + $0x2c] sm:$0xf] %v861
      %926 = vst [vmem:[%s233 + $0x30] sm:$0xf] %v862
      %927 = vst [vmem:[%s233 + $0x34] sm:$0xf] %v863
      %928 = vst [vmem:[%s233 + $0x38] sm:$0xf] %v864
      %929 = vst [vmem:[%s233 + $0x3c] sm:$0xf] %v865
      %930 = vst [vmem:[%s233 + $0x40] sm:$0xf] %v866
      %931 = vst [vmem:[%s233 + $0x44] sm:$0xf] %v867
      %932 = vst [vmem:[%s233 + $0x48] sm:$0xf] %v868
      %933 = vst [vmem:[%s233 + $0x4c] sm:$0xf] %v869
      %934 = vst [vmem:[%s233 + $0x50] sm:$0xf] %v870
      %935 = vst [vmem:[%s233 + $0x54] sm:$0xf] %v871
      %936 = vst [vmem:[%s233 + $0x58] sm:$0xf] %v872
      %937 = vst [vmem:[%s233 + $0x5c] sm:$0xf] %v873
      %938 = vst [vmem:[%s233 + $0x60] sm:$0xf] %v874
      %939 = vst [vmem:[%s233 + $0x64] sm:$0xf] %v875
      %940 = vst [vmem:[%s233 + $0x68] sm:$0xf] %v876
      %941 = vst [vmem:[%s233 + $0x6c] sm:$0xf] %v877
      %942 = vst [vmem:[%s233 + $0x70] sm:$0xf] %v878
      %943 = vst [vmem:[%s233 + $0x74] sm:$0xf] %v879
      %944 = vst [vmem:[%s233 + $0x78] sm:$0xf] %v880
      %945 = vst [vmem:[%s233 + $0x7c] sm:$0xf] %v881
      %v946 = vadd.f32 %v660, %v663
      %v947 = vadd.f32 %v946, %v668
      %v948 = vadd.f32 %v947, %v671
      %v949 = vadd.f32 %v948, %v676
      %v950 = vadd.f32 %v949, %v679
      %v951 = vadd.f32 %v950, %v684
      %v952 = vadd.f32 %v951, %v687
      %v953 = vadd.f32 %v952, %v692
      %v954 = vadd.f32 %v953, %v695
      %v955 = vadd.f32 %v954, %v700
      %v956 = vadd.f32 %v955, %v703
      %v957 = vadd.f32 %v956, %v708
      %v958 = vadd.f32 %v957, %v711
      %v959 = vadd.f32 %v958, %v716
      %v960 = vadd.f32 %v959, %v719
      %v961 = vadd.f32 %v960, %v724
      %v962 = vadd.f32 %v961, %v727
      %v963 = vadd.f32 %v962, %v732
      %v964 = vadd.f32 %v963, %v735
      %v965 = vadd.f32 %v964, %v740
      %v966 = vadd.f32 %v965, %v743
      %v967 = vadd.f32 %v966, %v748
      %v968 = vadd.f32 %v967, %v751
      %v969 = vadd.f32 %v968, %v756
      %v970 = vadd.f32 %v969, %v759
      %v971 = vadd.f32 %v970, %v764
      %v972 = vadd.f32 %v971, %v767
      %v973 = vadd.f32 %v972, %v772
      %v974 = vadd.f32 %v973, %v775
      %v975 = vadd.f32 %v974, %v780
      %v976 = vadd.f32 %v975, %v783
      %v977 = vrot.slane %v976, 4
      %v978 = vadd.f32 %v976, %v977
      %v979 = vrot.slane %v978, 2
      %v980 = vadd.f32 %v978, %v979
      %v981 = vrot.slane %v980, 1
      %v982 = vadd.f32 %v980, %v981
      %v983 = vmul.f32 %v660, %v660
      %v984 = vmul.f32 %v663, %v663
      %v985 = vmul.f32 %v668, %v668
      %v986 = vmul.f32 %v671, %v671
      %v987 = vmul.f32 %v676, %v676
      %v988 = vmul.f32 %v679, %v679
      %v989 = vmul.f32 %v684, %v684
      %v990 = vmul.f32 %v687, %v687
      %v991 = vmul.f32 %v692, %v692
      %v992 = vmul.f32 %v695, %v695
      %v993 = vmul.f32 %v700, %v700
      %v994 = vmul.f32 %v703, %v703
      %v995 = vmul.f32 %v708, %v708
      %v996 = vmul.f32 %v711, %v711
      %v997 = vmul.f32 %v716, %v716
      %v998 = vmul.f32 %v719, %v719
      %v999 = vmul.f32 %v724, %v724
      %v1000 = vmul.f32 %v727, %v727
      %v1001 = vmul.f32 %v732, %v732
      %v1002 = vmul.f32 %v735, %v735
      %v1003 = vmul.f32 %v740, %v740
      %v1004 = vmul.f32 %v743, %v743
      %v1005 = vmul.f32 %v748, %v748
      %v1006 = vmul.f32 %v751, %v751
      %v1007 = vmul.f32 %v756, %v756
      %v1008 = vmul.f32 %v759, %v759
      %v1009 = vmul.f32 %v764, %v764
      %v1010 = vmul.f32 %v767, %v767
      %v1011 = vmul.f32 %v772, %v772
      %v1012 = vmul.f32 %v775, %v775
      %v1013 = vmul.f32 %v780, %v780
      %v1014 = vmul.f32 %v783, %v783
      %v1015 = vadd.f32 %v983, %v984
      %v1016 = vadd.f32 %v1015, %v985
      %v1017 = vadd.f32 %v1016, %v986
      %v1018 = vadd.f32 %v1017, %v987
      %v1019 = vadd.f32 %v1018, %v988
      %v1020 = vadd.f32 %v1019, %v989
      %v1021 = vadd.f32 %v1020, %v990
      %v1022 = vadd.f32 %v1021, %v991
      %v1023 = vadd.f32 %v1022, %v992
      %v1024 = vadd.f32 %v1023, %v993
      %v1025 = vadd.f32 %v1024, %v994
      %v1026 = vadd.f32 %v1025, %v995
      %v1027 = vadd.f32 %v1026, %v996
      %v1028 = vadd.f32 %v1027, %v997
      %v1029 = vadd.f32 %v1028, %v998
      %v1030 = vadd.f32 %v1029, %v999
      %v1031 = vadd.f32 %v1030, %v1000
      %v1032 = vadd.f32 %v1031, %v1001
      %v1033 = vadd.f32 %v1032, %v1002
      %v1034 = vadd.f32 %v1033, %v1003
      %v1035 = vadd.f32 %v1034, %v1004
      %v1036 = vadd.f32 %v1035, %v1005
      %v1037 = vadd.f32 %v1036, %v1006
      %v1038 = vadd.f32 %v1037, %v1007
      %v1039 = vadd.f32 %v1038, %v1008
      %v1040 = vadd.f32 %v1039, %v1009
      %v1041 = vadd.f32 %v1040, %v1010
      %v1042 = vadd.f32 %v1041, %v1011
      %v1043 = vadd.f32 %v1042, %v1012
      %v1044 = vadd.f32 %v1043, %v1013
      %v1045 = vadd.f32 %v1044, %v1014
      %v1046 = vrot.slane %v1045, 4
      %v1047 = vadd.f32 %v1045, %v1046
      %v1048 = vrot.slane %v1047, 2
      %v1049 = vadd.f32 %v1047, %v1048
      %v1050 = vrot.slane %v1049, 1
      %v1051 = vadd.f32 %v1049, %v1050
      %vm1052 = vcmp.eq.s32.totalorder %v416, 0
      %vm1053 = vcmp.eq.s32.totalorder %v416, 1
      %v1054 = vsel %vm1053, %v1051, 0.0
      %v1055 = vsel %vm1052, %v982, %v1054
      %1056 = vst [vmem:[%s238] sm:$0xff] %v1055
      %s1057 = smul.u32 32, %s17
      %p1058 = scmp.lt.s32.totalorder %s1057, 63
      %s1059 = scalar_select %p1058, %s1057, 63
      %s1060 = smul.addr %s1059, 4
      %s1061 = scalar_lea.vmem %s4, %s1060
      %p1062 = scmp.lt.s32.totalorder %s17, 1
      %s1063 = scalar_select %p1062, %s17, 1
      %s1064 = smul.addr %s1063, 8
      %s1065 = scalar_lea.vmem %s5, %s1064
      // Predicated region
      $region37: #{gin_forward.14} parent=35 // pred_check
        %p1066 = pneg %p124
      $region38: #{gin_forward.14} parent=35 // pred_check_branch
        %1068 = sbr.rel (%p1066) target = $region40
      $region39: #{gin_forward.14} parent=35 // pred_region
        %s1069 = smul.u32 32, %s17
      $region40: #{gin_forward.14} parent=35 // pred_fallthru
        _
      // Predicated region
      $region41: #{gin_forward.14} parent=35 // pred_check
        %p1070 = pneg %p150
      $region42: #{gin_forward.14} parent=35 // pred_check_branch
        %1072 = sbr.rel (%p1070) target = $region44
      $region43: #{gin_forward.14} parent=35 // pred_region
        _
      $region44: #{gin_forward.14} parent=35 // pred_fallthru
        _
    $region36: #{gin_forward.14} parent=5 // pred_fallthru
      _
    %p1073 = scmp.le.s32.totalorder 2, %s12
    // Predicated region
    $region45: #{gin_forward.14} parent=5 // pred_check
      %p1074 = pneg %p1073
    $region46: #{gin_forward.14} parent=5 // pred_check_branch
      %1076 = sbr.rel (%p1074) target = $region48
    $region47: #{gin_forward.14} parent=5 // pred_region
      %s1077 = ssub.s32 %s12, 2
      // Predicated region
      $region49: #{gin_forward.14} parent=47 // pred_check
        %p1078 = pneg %p130
      $region50: #{gin_forward.14} parent=47 // pred_check_branch
        %1080 = sbr.rel (%p1078) target = $region52
      $region51: #{gin_forward.14} parent=47 // pred_region
        %s1081 = smul.u32 32, %s18
        %p1082 = scmp.lt.s32.totalorder %s1081, 63
        %s1083 = scalar_select %p1082, %s1081, 63
        %s1084 = smul.addr %s1083, 4
        %s1085 = scalar_lea.vmem %s4, %s1084
      $region52: #{gin_forward.14} parent=47 // pred_fallthru
        _
      // Predicated region
      $region53: #{gin_forward.14} parent=47 // pred_check
        %p1086 = pneg %p156
      $region54: #{gin_forward.14} parent=47 // pred_check_branch
        %1088 = sbr.rel (%p1086) target = $region56
      $region55: #{gin_forward.14} parent=47 // pred_region
        %p1089 = scmp.lt.s32.totalorder %s18, 1
        %s1090 = scalar_select %p1089, %s18, 1
        %s1091 = smul.addr %s1090, 8
        %s1092 = scalar_lea.vmem %s5, %s1091
      $region56: #{gin_forward.14} parent=47 // pred_fallthru
        _
    $region48: #{gin_forward.14} parent=5 // pred_fallthru
      _
  $region6: #{gin_forward.14} parent=0 // loop_footer
    %s16 = sadd.s32 1, %s12
  $region7: #{gin_forward.14} parent=0 // loop_footer_branch
    %11 = sbr.rel target = $region3
  $region8: #{gin_forward.14} parent=0 // loop_exit
    _

// kernel: gin_forward.13
$region0: #{gin_forward.13}
  #allocation0 [shape = 'u32[]', space=smem, size = 0x4, offset = 0x4, fixed_abs, tag = 'smem constant byte address 0x4 - core index']
  #allocation1 [shape = 'u32[144,128]{1,0:T(1,128)}', space=vmem, size = 0x12000, scoped, tag = 'internal scratch']
  #allocation2 [shape = 'f32[256,128]{1,0:T(8,128)}', space=vmem, size = 0x20000, scoped, tag = 'scratch operand']
  %s0 = inlined_call_operand.vmem [shape: s8[512,512], index: 0, kind: input, shape index: {}]
  %s1 = inlined_call_operand.vmem [shape: bf16[512,128], index: 1, kind: input, shape index: {}]
  %s2 = inlined_call_operand.vmem [shape: bf16[128,128], index: 2, kind: input, shape index: {}]
  %s3 = inlined_call_operand.vmem [shape: bf16[512,128], index: 3, kind: output, shape index: {0}]
  %s4 = inlined_call_operand.vmem [shape: f32[16,128], index: 4, kind: output, shape index: {1}]
  %5 = xla_tuple %s3, %s4
  %s6 = sld [smem:[#allocation0]]
  $region84: #{gin_forward.13} parent=0
    _
  %s8 = ssub.s32 1, %s6
  %s9 = scalar_select 0, %s8, %s6
  $region1: #{gin_forward.13} parent=0
    #allocation3 [shape = 'u8[131072]{0}', space=vmem, size = 0x20000, scoped, tag = 'input window, operand 0']
    loop: start=0, step=1, limit=6
    $region2: #{gin_forward.13} parent=1 // loop_pre_header
      _
    $region3: #{gin_forward.13} parent=1 // loop_header
      %s11 = sphi 0, %s15
      %p12 = scmp.ge.s32.totalorder %s11, 6
      %s18 = sphi 0, %s30
      %s19 = sphi 0, %s26
      %s20 = sphi 0, %s18
      %s21 = sphi 0, %s19
      %s22 = sphi 0, %s20
      %s23 = sphi 0, %s21
      %s35 = sphi 0, %s37
      %s38 = sphi 0, %s35
      %s39 = sphi 0, %s38
      %s55 = sphi 0, %s39
      %s59 = sphi 0, %s59
      %s61 = sphi 0, %s59
      %s62 = sphi 0, %s61
      %s76 = sphi 0, %s62
      %s80 = sphi 0, %s80
      %s82 = sphi 0, %s80
      %s83 = sphi 0, %s82
      %s97 = sphi 0, %s83
      %s103 = sphi 0, %s105
      %s106 = sphi 0, %s103
      %s107 = sphi 0, %s106
      %s123 = sphi 0, %s107
      %s129 = sphi 0, %s131
      %s132 = sphi 0, %s129
      %s133 = sphi 0, %s132
      %s149 = sphi 0, %s133
    $region4: #{gin_forward.13} parent=1 // loop_header_branch
      %14 = sbr.rel (%p12) target = $region8
    $region5: #{gin_forward.13} parent=1 // loop_body
      %s16 = ssub.s32 %s11, 1
      %s17 = ssub.s32 %s11, 2
      %s24 = sadd.s32 1, %s19
      %p25 = scmp.ge.s32.totalorder %s24, 2
      %s26 = scalar_select %p25, 0, %s24
      %s27 = sadd.s32 1, %s18
      %s28 = scalar_select %p25, %s27, %s18
      %p29 = scmp.ge.s32.totalorder %s28, 2
      %s30 = scalar_select %p29, 0, %s28
      %s31 = ssub.s32 %s18, %s30
      %s32 = ssub.s32 %s19, %s26
      %s33 = sor.u32 %s31, %s32
      %p34 = scmp.eq.s32.totalorder %s33, 0
      %s36 = sadd.s32 %s35, 1
      %s37 = scalar_select %p34, %s35, %s36
      %p40 = pneg %p34
      %p41 = scmp.eq.s32.totalorder %s11, 3
      %p42 = por %p40, %p41
      %p43 = scmp.ne.s32.totalorder %s35, %s38
      %p44 = scmp.eq.s32.totalorder %s11, 0
      %p45 = por %p43, %p44
      %p46 = scmp.ne.s32.totalorder %s35, %s38
      %p47 = scmp.eq.s32.totalorder %s16, 3
      %p48 = por %p46, %p47
      %p49 = scmp.ne.s32.totalorder %s38, %s39
      %p50 = scmp.eq.s32.totalorder %s16, 0
      %p51 = por %p49, %p50
      %p52 = scmp.ne.s32.totalorder %s38, %s39
      %p53 = scmp.eq.s32.totalorder %s17, 3
      %p54 = por %p52, %p53
      %p56 = scmp.ne.s32.totalorder %s39, %s55
      %p57 = scmp.eq.s32.totalorder %s17, 0
      %p58 = por %p56, %p57
      %s60 = sadd.s32 %s59, 1
      %p63 = scmp.eq.s32.totalorder %s11, 3
      %p64 = scmp.ne.s32.totalorder %s59, %s61
      %p65 = scmp.eq.s32.totalorder %s11, 0
      %p66 = por %p64, %p65
      %p67 = scmp.ne.s32.totalorder %s59, %s61
      %p68 = scmp.eq.s32.totalorder %s16, 3
      %p69 = por %p67, %p68
      %p70 = scmp.ne.s32.totalorder %s61, %s62
      %p71 = scmp.eq.s32.totalorder %s16, 0
      %p72 = por %p70, %p71
      %p73 = scmp.ne.s32.totalorder %s61, %s62
      %p74 = scmp.eq.s32.totalorder %s17, 3
      %p75 = por %p73, %p74
      %p77 = scmp.ne.s32.totalorder %s62, %s76
      %p78 = scmp.eq.s32.totalorder %s17, 0
      %p79 = por %p77, %p78
      %s81 = sadd.s32 %s80, 1
      %p84 = scmp.eq.s32.totalorder %s11, 3
      %p85 = scmp.ne.s32.totalorder %s80, %s82
      %p86 = scmp.eq.s32.totalorder %s11, 0
      %p87 = por %p85, %p86
      %p88 = scmp.ne.s32.totalorder %s80, %s82
      %p89 = scmp.eq.s32.totalorder %s16, 3
      %p90 = por %p88, %p89
      %p91 = scmp.ne.s32.totalorder %s82, %s83
      %p92 = scmp.eq.s32.totalorder %s16, 0
      %p93 = por %p91, %p92
      %p94 = scmp.ne.s32.totalorder %s82, %s83
      %p95 = scmp.eq.s32.totalorder %s17, 3
      %p96 = por %p94, %p95
      %p98 = scmp.ne.s32.totalorder %s83, %s97
      %p99 = scmp.eq.s32.totalorder %s17, 0
      %p100 = por %p98, %p99
      %s101 = ssub.s32 %s18, %s30
      %p102 = scmp.eq.s32.totalorder %s101, 0
      %s104 = sadd.s32 %s103, 1
      %s105 = scalar_select %p102, %s103, %s104
      %p108 = pneg %p102
      %p109 = scmp.eq.s32.totalorder %s11, 3
      %p110 = por %p108, %p109
      %p111 = scmp.ne.s32.totalorder %s103, %s106
      %p112 = scmp.eq.s32.totalorder %s11, 0
      %p113 = por %p111, %p112
      %p114 = scmp.ne.s32.totalorder %s103, %s106
      %p115 = scmp.eq.s32.totalorder %s16, 3
      %p116 = por %p114, %p115
      %p117 = scmp.ne.s32.totalorder %s106, %s107
      %p118 = scmp.eq.s32.totalorder %s16, 0
      %p119 = por %p117, %p118
      %p120 = scmp.ne.s32.totalorder %s106, %s107
      %p121 = scmp.eq.s32.totalorder %s17, 3
      %p122 = por %p120, %p121
      %p124 = scmp.ne.s32.totalorder %s107, %s123
      %p125 = scmp.eq.s32.totalorder %s17, 0
      %p126 = por %p124, %p125
      %s127 = ssub.s32 %s18, %s30
      %p128 = scmp.eq.s32.totalorder %s127, 0
      %s130 = sadd.s32 %s129, 1
      %s131 = scalar_select %p128, %s129, %s130
      %p134 = pneg %p128
      %p135 = scmp.eq.s32.totalorder %s11, 3
      %p136 = por %p134, %p135
      %p137 = scmp.ne.s32.totalorder %s129, %s132
      %p138 = scmp.eq.s32.totalorder %s11, 0
      %p139 = por %p137, %p138
      %p140 = scmp.ne.s32.totalorder %s129, %s132
      %p141 = scmp.eq.s32.totalorder %s16, 3
      %p142 = por %p140, %p141
      %p143 = scmp.ne.s32.totalorder %s132, %s133
      %p144 = scmp.eq.s32.totalorder %s16, 0
      %p145 = por %p143, %p144
      %p146 = scmp.ne.s32.totalorder %s132, %s133
      %p147 = scmp.eq.s32.totalorder %s17, 3
      %p148 = por %p146, %p147
      %p150 = scmp.ne.s32.totalorder %s133, %s149
      %p151 = scmp.eq.s32.totalorder %s17, 0
      %p152 = por %p150, %p151
      %p153 = scmp.le.s32.totalorder 1, %s11
      %p154 = scmp.lt.s32.totalorder %s11, 5
      %p155 = pnand %p153, %p154
      %p156 = pneg %p155
      // Predicated region
      $region9: #{gin_forward.13} parent=5 // pred_check
        _
      $region10: #{gin_forward.13} parent=5 // pred_check_branch
        %158 = sbr.rel (%p155) target = $region12
      $region11: #{gin_forward.13} parent=5 // pred_region
        %s159 = ssub.s32 %s11, 1
        // Predicated region
        $region13: #{gin_forward.13} parent=11 // pred_check
          %p160 = pneg %p72
        $region14: #{gin_forward.13} parent=11 // pred_check_branch
          %162 = sbr.rel (%p160) target = $region16
        $region15: #{gin_forward.13} parent=11 // pred_region
          _
        $region16: #{gin_forward.13} parent=11 // pred_fallthru
          _
        // Predicated region
        $region17: #{gin_forward.13} parent=11 // pred_check
          %p163 = pneg %p93
        $region18: #{gin_forward.13} parent=11 // pred_check_branch
          %165 = sbr.rel (%p163) target = $region20
        $region19: #{gin_forward.13} parent=11 // pred_region
          _
        $region20: #{gin_forward.13} parent=11 // pred_fallthru
          _
      $region12: #{gin_forward.13} parent=5 // pred_fallthru
        _
      %p166 = scmp.lt.s32.totalorder %s11, 4
      // Predicated region
      $region21: #{gin_forward.13} parent=5 // pred_check
        %p167 = pneg %p166
      $region22: #{gin_forward.13} parent=5 // pred_check_branch
        %169 = sbr.rel (%p167) target = $region24
      $region23: #{gin_forward.13} parent=5 // pred_region
        // Predicated region
        $region25: #{gin_forward.13} parent=23 // pred_check
          %p170 = pneg %p45
        $region26: #{gin_forward.13} parent=23 // pred_check_branch
          %172 = sbr.rel (%p170) target = $region28
        $region27: #{gin_forward.13} parent=23 // pred_region
          %s173 = sand.u32 %s35, 1
          %s174 = sand.u32 %s35, 1
          %s175 = smul.addr %s174, 128
          %s176 = scalar_lea.vmem [#allocation3], %s175
          %s177 = smul.u32 8, %s18
          %s178 = smul.u32 2, %s19
          %s179 = smul.addr %s177, 4
          %s180 = sadd.s32 %s178, %s179
          %s181 = smul.addr %s180, 8
          %s182 = scalar_lea.vmem %s0, %s181
          // Predicated region
          $region29: #{gin_forward.13} parent=27 // pred_check
            _
          $region30: #{gin_forward.13} parent=27 // pred_check_branch
            %184 = sbr.rel (0) target = $region32
          $region31: #{gin_forward.13} parent=27 // pred_region
            // Predicated region
            $region33: #{gin_forward.13} parent=31 // pred_check
              _
            $region34: #{gin_forward.13} parent=31 // pred_check_branch
              %186 = sbr.rel (0) target = $region36
            $region35: #{gin_forward.13} parent=31 // pred_region
              loop: start=0, step=1, limit=1
              $region37: #{gin_forward.13} parent=35 // loop_pre_header
                _
              $region38: #{gin_forward.13} parent=35 // loop_header
                %s188 = sphi 0, %s192
                %p189 = scmp.ge.s32.totalorder %s188, 1
                %s193 = sphi %s182, %s182
                %s194 = sphi %s176, %s176
              $region39: #{gin_forward.13} parent=35 // loop_header_branch
                %191 = sbr.rel (%p189) target = $region43
              $region40: #{gin_forward.13} parent=35 // loop_body
                %v195 = vld [vmem:[%s193] sm:$0xff]
                %196 = vst [vmem:[%s194] sm:$0xff] %v195
                %v197 = vld [vmem:[%s193 + $0x8] sm:$0xff]
                %198 = vst [vmem:[%s194 + $0x8] sm:$0xff] %v197
                %v199 = vld [vmem:[%s193 + $0x20] sm:$0xff]
                %200 = vst [vmem:[%s194 + $0x10] sm:$0xff] %v199
                %v201 = vld [vmem:[%s193 + $0x28] sm:$0xff]
                %202 = vst [vmem:[%s194 + $0x18] sm:$0xff] %v201
                %v203 = vld [vmem:[%s193 + $0x40] sm:$0xff]
                %204 = vst [vmem:[%s194 + $0x20] sm:$0xff] %v203
                %v205 = vld [vmem:[%s193 + $0x48] sm:$0xff]
                %206 = vst [vmem:[%s194 + $0x28] sm:$0xff] %v205
                %v207 = vld [vmem:[%s193 + $0x60] sm:$0xff]
                %208 = vst [vmem:[%s194 + $0x30] sm:$0xff] %v207
                %v209 = vld [vmem:[%s193 + $0x68] sm:$0xff]
                %210 = vst [vmem:[%s194 + $0x38] sm:$0xff] %v209
                %v211 = vld [vmem:[%s193 + $0x80] sm:$0xff]
                %212 = vst [vmem:[%s194 + $0x40] sm:$0xff] %v211
                %v213 = vld [vmem:[%s193 + $0x88] sm:$0xff]
                %214 = vst [vmem:[%s194 + $0x48] sm:$0xff] %v213
                %v215 = vld [vmem:[%s193 + $0xa0] sm:$0xff]
                %216 = vst [vmem:[%s194 + $0x50] sm:$0xff] %v215
                %v217 = vld [vmem:[%s193 + $0xa8] sm:$0xff]
                %218 = vst [vmem:[%s194 + $0x58] sm:$0xff] %v217
                %v219 = vld [vmem:[%s193 + $0xc0] sm:$0xff]
                %220 = vst [vmem:[%s194 + $0x60] sm:$0xff] %v219
                %v221 = vld [vmem:[%s193 + $0xc8] sm:$0xff]
                %222 = vst [vmem:[%s194 + $0x68] sm:$0xff] %v221
                %v223 = vld [vmem:[%s193 + $0xe0] sm:$0xff]
                %224 = vst [vmem:[%s194 + $0x70] sm:$0xff] %v223
                %v225 = vld [vmem:[%s193 + $0xe8] sm:$0xff]
                %226 = vst [vmem:[%s194 + $0x78] sm:$0xff] %v225
              $region41: #{gin_forward.13} parent=35 // loop_footer
                %s192 = sadd.s32 1, %s188
              $region42: #{gin_forward.13} parent=35 // loop_footer_branch
                %187 = sbr.rel target = $region38
              $region43: #{gin_forward.13} parent=35 // loop_exit
                _
            $region36: #{gin_forward.13} parent=31 // pred_fallthru
              _
            // Predicated region
            $region44: #{gin_forward.13} parent=31 // pred_check
              _
            $region45: #{gin_forward.13} parent=31 // pred_check_branch
              %228 = sbr.rel target = $region47
            $region46: #{gin_forward.13} parent=31 // pred_region
              _
            $region47: #{gin_forward.13} parent=31 // pred_fallthru
              _
          $region32: #{gin_forward.13} parent=27 // pred_fallthru
            _
          %229 = vnop
        $region28: #{gin_forward.13} parent=23 // pred_fallthru
          _
      $region24: #{gin_forward.13} parent=5 // pred_fallthru
        _
      %p230 = scmp.le.s32.totalorder 1, %s11
      %p231 = scmp.lt.s32.totalorder %s11, 5
      %p232 = pnand %p230, %p231
      %p233 = pneg %p232
      // Predicated region
      $region48: #{gin_forward.13} parent=5 // pred_check
        _
      $region49: #{gin_forward.13} parent=5 // pred_check_branch
        %235 = sbr.rel (%p232) target = $region51
      $region50: #{gin_forward.13} parent=5 // pred_region
        %s236 = ssub.s32 %s11, 1
        %s237 = sand.u32 %s38, 1
        %s238 = sand.u32 %s38, 1
        %s239 = smul.addr %s238, 128
        %s240 = scalar_lea.vmem [#allocation3], %s239
        // Predicated region
        $region52: #{gin_forward.13} parent=50 // pred_check
          %p241 = pneg %p51
        $region53: #{gin_forward.13} parent=50 // pred_check_branch
          %243 = sbr.rel (%p241) target = $region55
        $region54: #{gin_forward.13} parent=50 // pred_region
          _
        $region55: #{gin_forward.13} parent=50 // pred_fallthru
          _
        %s244 = sand.u32 %s38, 1
        %s245 = sand.u32 %s38, 1
        %s246 = smul.addr %s245, 128
        %s247 = scalar_lea.vmem [#allocation3], %s246
        %p248 = pneg %p51
        %p249 = pneg %p48
        %p250 = pneg %p72
        %p251 = pneg %p69
        %p252 = pneg %p93
        %p253 = pneg %p90
        %p254 = pneg %p119
        %p255 = pneg %p116
        %s256 = smul.u32 32, %s20
        %p257 = scmp.lt.s32.totalorder %s256, 63
        %s258 = scalar_select %p257, %s256, 63
        %s259 = smul.addr %s258, 4
        %s260 = scalar_lea.vmem %s3, %s259
        %p261 = pneg %p145
        %p262 = pneg %p142
        %p263 = scmp.lt.s32.totalorder %s20, 1
        %s264 = scalar_select %p263, %s20, 1
        %s265 = smul.addr %s264, 8
        %s266 = scalar_lea.vmem %s4, %s265
        %s267 = smul.u32 8, %s20
        %s268 = smul.u32 2, %s21
        %s269 = smul.u32 32, %s20
        %p270 = scmp.lt.s32.totalorder %s269, 63
        %s271 = scalar_select %p270, %s269, 63
        %s272 = smul.addr %s271, 4
        %s273 = scalar_lea.vmem %s3, %s272
        %s274 = smul.u32 32, %s20
        %p275 = scmp.lt.s32.totalorder %s20, 1
        %s276 = scalar_select %p275, %s20, 1
        %s277 = smul.addr %s276, 8
        %s278 = scalar_lea.vmem %s4, %s277
        %p280 = scmp.eq.s32.totalorder %s21, 0
        // Predicated region
        $region56: #{gin_forward.13} parent=50 // pred_check
          %p281 = pneg %p280
        $region57: #{gin_forward.13} parent=50 // pred_check_branch
          %283 = sbr.rel (%p281) target = $region59
        $region58: #{gin_forward.13} parent=50 // pred_region
          %284 = vst [vmem:[#allocation2] sm:$0xff] 0.0
          %285 = vst [vmem:[#allocation2 + $0x8] sm:$0xff] 0.0
          %286 = vst [vmem:[#allocation2 + $0x10] sm:$0xff] 0.0
          %287 = vst [vmem:[#allocation2 + $0x18] sm:$0xff] 0.0
          %288 = vst [vmem:[#allocation2 + $0x20] sm:$0xff] 0.0
          %289 = vst [vmem:[#allocation2 + $0x28] sm:$0xff] 0.0
          %290 = vst [vmem:[#allocation2 + $0x30] sm:$0xff] 0.0
          %291 = vst [vmem:[#allocation2 + $0x38] sm:$0xff] 0.0
          %292 = vst [vmem:[#allocation2 + $0x40] sm:$0xff] 0.0
          %293 = vst [vmem:[#allocation2 + $0x48] sm:$0xff] 0.0
          %294 = vst [vmem:[#allocation2 + $0x50] sm:$0xff] 0.0
          %295 = vst [vmem:[#allocation2 + $0x58] sm:$0xff] 0.0
          %296 = vst [vmem:[#allocation2 + $0x60] sm:$0xff] 0.0
          %297 = vst [vmem:[#allocation2 + $0x68] sm:$0xff] 0.0
          %298 = vst [vmem:[#allocation2 + $0x70] sm:$0xff] 0.0
          %299 = vst [vmem:[#allocation2 + $0x78] sm:$0xff] 0.0
          %300 = vst [vmem:[#allocation2 + $0x80] sm:$0xff] 0.0
          %301 = vst [vmem:[#allocation2 + $0x88] sm:$0xff] 0.0
          %302 = vst [vmem:[#allocation2 + $0x90] sm:$0xff] 0.0
          %303 = vst [vmem:[#allocation2 + $0x98] sm:$0xff] 0.0
          %304 = vst [vmem:[#allocation2 + $0xa0] sm:$0xff] 0.0
          %305 = vst [vmem:[#allocation2 + $0xa8] sm:$0xff] 0.0
          %306 = vst [vmem:[#allocation2 + $0xb0] sm:$0xff] 0.0
          %307 = vst [vmem:[#allocation2 + $0xb8] sm:$0xff] 0.0
          %308 = vst [vmem:[#allocation2 + $0xc0] sm:$0xff] 0.0
          %309 = vst [vmem:[#allocation2 + $0xc8] sm:$0xff] 0.0
          %310 = vst [vmem:[#allocation2 + $0xd0] sm:$0xff] 0.0
          %311 = vst [vmem:[#allocation2 + $0xd8] sm:$0xff] 0.0
          %312 = vst [vmem:[#allocation2 + $0xe0] sm:$0xff] 0.0
          %313 = vst [vmem:[#allocation2 + $0xe8] sm:$0xff] 0.0
          %314 = vst [vmem:[#allocation2 + $0xf0] sm:$0xff] 0.0
          %315 = vst [vmem:[#allocation2 + $0xf8] sm:$0xff] 0.0
        $region59: #{gin_forward.13} parent=50 // pred_fallthru
          _
        %v316 = vld [vmem:[%s240] sm:$0xff]
        %v317 = vld [vmem:[%s240 + $0x8] sm:$0xff]
        %v318 = vld [vmem:[%s240 + $0x10] sm:$0xff]
        %v319 = vld [vmem:[%s240 + $0x18] sm:$0xff]
        %v320 = vld [vmem:[%s240 + $0x20] sm:$0xff]
        %v321 = vld [vmem:[%s240 + $0x28] sm:$0xff]
        %v322 = vld [vmem:[%s240 + $0x30] sm:$0xff]
        %v323 = vld [vmem:[%s240 + $0x38] sm:$0xff]
        %v324 = vld [vmem:[%s240 + $0x40] sm:$0xff]
        %v325 = vld [vmem:[%s240 + $0x48] sm:$0xff]
        %v326 = vld [vmem:[%s240 + $0x50] sm:$0xff]
        %v327 = vld [vmem:[%s240 + $0x58] sm:$0xff]
        %v328 = vld [vmem:[%s240 + $0x60] sm:$0xff]
        %v329 = vld [vmem:[%s240 + $0x68] sm:$0xff]
        %v330 = vld [vmem:[%s240 + $0x70] sm:$0xff]
        %v331 = vld [vmem:[%s240 + $0x78] sm:$0xff]
        %v332 = vunpack.c.l.s8.bf16 %v316
        %v333 = vunpack.c.l.s8.bf16 %v317
        %v334 = vunpack.c.h.s8.bf16 %v316
        %v335 = vunpack.c.h.s8.bf16 %v317
        %v336 = vunpack.c.l.s8.bf16 %v318
        %v337 = vunpack.c.l.s8.bf16 %v319
        %v338 = vunpack.c.h.s8.bf16 %v318
        %v339 = vunpack.c.h.s8.bf16 %v319
        %v340 = vunpack.c.l.s8.bf16 %v320
        %v341 = vunpack.c.l.s8.bf16 %v321
        %v342 = vunpack.c.h.s8.bf16 %v320
        %v343 = vunpack.c.h.s8.bf16 %v321
        %v344 = vunpack.c.l.s8.bf16 %v322
        %v345 = vunpack.c.l.s8.bf16 %v323
        %v346 = vunpack.c.h.s8.bf16 %v322
        %v347 = vunpack.c.h.s8.bf16 %v323
        %v348 = vunpack.c.l.s8.bf16 %v324
        %v349 = vunpack.c.l.s8.bf16 %v325
        %v350 = vunpack.c.h.s8.bf16 %v324
        %v351 = vunpack.c.h.s8.bf16 %v325
        %v352 = vunpack.c.l.s8.bf16 %v326
        %v353 = vunpack.c.l.s8.bf16 %v327
        %v354 = vunpack.c.h.s8.bf16 %v326
        %v355 = vunpack.c.h.s8.bf16 %v327
        %v356 = vunpack.c.l.s8.bf16 %v328
        %v357 = vunpack.c.l.s8.bf16 %v329
        %v358 = vunpack.c.h.s8.bf16 %v328
        %v359 = vunpack.c.h.s8.bf16 %v329
        %v360 = vunpack.c.l.s8.bf16 %v330
        %v361 = vunpack.c.l.s8.bf16 %v331
        %v362 = vunpack.c.h.s8.bf16 %v330
        %v363 = vunpack.c.h.s8.bf16 %v331
        %s364 = smul.u32 %s21, 256
        %s365 = sshra.s32 %s364, 3
        %s366 = sand.u32 %s364, 7
        %s367 = smul.addr %s365, 4
        %s368 = scalar_lea.vmem %s1, %s367
        %v369 = vld [vmem:[%s368] sm:$0xf]
        %v370 = vld [vmem:[%s368 + $0x4] sm:$0xf]
        %v371 = vld [vmem:[%s368 + $0x8] sm:$0xf]
        %v372 = vld [vmem:[%s368 + $0xc] sm:$0xf]
        %v373 = vld [vmem:[%s368 + $0x10] sm:$0xf]
        %v374 = vld [vmem:[%s368 + $0x14] sm:$0xf]
        %v375 = vld [vmem:[%s368 + $0x18] sm:$0xf]
        %v376 = vld [vmem:[%s368 + $0x1c] sm:$0xf]
        %v377 = vld [vmem:[%s368 + $0x20] sm:$0xf]
        %v378 = vld [vmem:[%s368 + $0x24] sm:$0xf]
        %v379 = vld [vmem:[%s368 + $0x28] sm:$0xf]
        %v380 = vld [vmem:[%s368 + $0x2c] sm:$0xf]
        %v381 = vld [vmem:[%s368 + $0x30] sm:$0xf]
        %v382 = vld [vmem:[%s368 + $0x34] sm:$0xf]
        %v383 = vld [vmem:[%s368 + $0x38] sm:$0xf]
        %v384 = vld [vmem:[%s368 + $0x3c] sm:$0xf]
        %v385 = vld [vmem:[%s368 + $0x40] sm:$0xf]
        %v386 = vld [vmem:[%s368 + $0x44] sm:$0xf]
        %v387 = vld [vmem:[%s368 + $0x48] sm:$0xf]
        %v388 = vld [vmem:[%s368 + $0x4c] sm:$0xf]
        %v389 = vld [vmem:[%s368 + $0x50] sm:$0xf]
        %v390 = vld [vmem:[%s368 + $0x54] sm:$0xf]
        %v391 = vld [vmem:[%s368 + $0x58] sm:$0xf]
        %v392 = vld [vmem:[%s368 + $0x5c] sm:$0xf]
        %v393 = vld [vmem:[%s368 + $0x60] sm:$0xf]
        %v394 = vld [vmem:[%s368 + $0x64] sm:$0xf]
        %v395 = vld [vmem:[%s368 + $0x68] sm:$0xf]
        %v396 = vld [vmem:[%s368 + $0x6c] sm:$0xf]
        %v397 = vld [vmem:[%s368 + $0x70] sm:$0xf]
        %v398 = vld [vmem:[%s368 + $0x74] sm:$0xf]
        %v399 = vld [vmem:[%s368 + $0x78] sm:$0xf]
        %v400 = vld [vmem:[%s368 + $0x7c] sm:$0xf]
        %v401 = vld [vmem:[#allocation2] sm:$0xff]
        %v402 = vld [vmem:[#allocation2 + $0x8] sm:$0xff]
        %v403 = vld [vmem:[#allocation2 + $0x10] sm:$0xff]
        %v404 = vld [vmem:[#allocation2 + $0x18] sm:$0xff]
        %v405 = vld [vmem:[#allocation2 + $0x20] sm:$0xff]
        %v406 = vld [vmem:[#allocation2 + $0x28] sm:$0xff]
        %v407 = vld [vmem:[#allocation2 + $0x30] sm:$0xff]
        %v408 = vld [vmem:[#allocation2 + $0x38] sm:$0xff]
        %v409 = vld [vmem:[#allocation2 + $0x40] sm:$0xff]
        %v410 = vld [vmem:[#allocation2 + $0x48] sm:$0xff]
        %v411 = vld [vmem:[#allocation2 + $0x50] sm:$0xff]
        %v412 = vld [vmem:[#allocation2 + $0x58] sm:$0xff]
        %v413 = vld [vmem:[#allocation2 + $0x60] sm:$0xff]
        %v414 = vld [vmem:[#allocation2 + $0x68] sm:$0xff]
        %v415 = vld [vmem:[#allocation2 + $0x70] sm:$0xff]
        %v416 = vld [vmem:[#allocation2 + $0x78] sm:$0xff]
        %v417 = vld [vmem:[#allocation2 + $0x80] sm:$0xff]
        %v418 = vld [vmem:[#allocation2 + $0x88] sm:$0xff]
        %v419 = vld [vmem:[#allocation2 + $0x90] sm:$0xff]
        %v420 = vld [vmem:[#allocation2 + $0x98] sm:$0xff]
        %v421 = vld [vmem:[#allocation2 + $0xa0] sm:$0xff]
        %v422 = vld [vmem:[#allocation2 + $0xa8] sm:$0xff]
        %v423 = vld [vmem:[#allocation2 + $0xb0] sm:$0xff]
        %v424 = vld [vmem:[#allocation2 + $0xb8] sm:$0xff]
        %v425 = vld [vmem:[#allocation2 + $0xc0] sm:$0xff]
        %v426 = vld [vmem:[#allocation2 + $0xc8] sm:$0xff]
        %v427 = vld [vmem:[#allocation2 + $0xd0] sm:$0xff]
        %v428 = vld [vmem:[#allocation2 + $0xd8] sm:$0xff]
        %v429 = vld [vmem:[#allocation2 + $0xe0] sm:$0xff]
        %v430 = vld [vmem:[#allocation2 + $0xe8] sm:$0xff]
        %v431 = vld [vmem:[#allocation2 + $0xf0] sm:$0xff]
        %v432 = vld [vmem:[#allocation2 + $0xf8] sm:$0xff]
        %v465 = vunpack.c.l.b16 %v369
        %v466 = vunpack.c.l.b16 %v370
        %v467 = vunpack.c.l.b16 %v371
        %v468 = vunpack.c.l.b16 %v372
        %v469 = vunpack.c.l.b16 %v373
        %v470 = vunpack.c.l.b16 %v374
        %v471 = vunpack.c.l.b16 %v375
        %v472 = vunpack.c.l.b16 %v376
        %v473 = vunpack.c.l.b16 %v377
        %v474 = vunpack.c.l.b16 %v378
        %v475 = vunpack.c.l.b16 %v379
        %v476 = vunpack.c.l.b16 %v380
        %v477 = vunpack.c.l.b16 %v381
        %v478 = vunpack.c.l.b16 %v382
        %v479 = vunpack.c.l.b16 %v383
        %v480 = vunpack.c.l.b16 %v384
        %v481 = vunpack.c.l.b16 %v385
        %v482 = vunpack.c.l.b16 %v386
        %v483 = vunpack.c.l.b16 %v387
        %v484 = vunpack.c.l.b16 %v388
        %v485 = vunpack.c.l.b16 %v389
        %v486 = vunpack.c.l.b16 %v390
        %v487 = vunpack.c.l.b16 %v391
        %v488 = vunpack.c.l.b16 %v392
        %v489 = vunpack.c.l.b16 %v393
        %v490 = vunpack.c.l.b16 %v394
        %v491 = vunpack.c.l.b16 %v395
        %v492 = vunpack.c.l.b16 %v396
        %v493 = vunpack.c.l.b16 %v397
        %v494 = vunpack.c.l.b16 %v398
        %v495 = vunpack.c.l.b16 %v399
        %v496 = vunpack.c.l.b16 %v400
        %v497 = vpack.c.b16 %v466, %v465
        %v498 = vpack.c.b16 %v468, %v467
        %v499 = vpack.c.b16 %v470, %v469
        %v500 = vpack.c.b16 %v472, %v471
        %v501 = vpack.c.b16 %v474, %v473
        %v502 = vpack.c.b16 %v476, %v475
        %v503 = vpack.c.b16 %v478, %v477
        %v504 = vpack.c.b16 %v480, %v479
        %v505 = vpack.c.b16 %v482, %v481
        %v506 = vpack.c.b16 %v484, %v483
        %v507 = vpack.c.b16 %v486, %v485
        %v508 = vpack.c.b16 %v488, %v487
        %v509 = vpack.c.b16 %v490, %v489
        %v510 = vpack.c.b16 %v492, %v491
        %v511 = vpack.c.b16 %v494, %v493
        %v512 = vpack.c.b16 %v496, %v495
        %529 = vmatprep.subr.bf16.mxu0 0
        %530 = vmatpush1.bf16.msra.mxu0 %v504
        %531 = vmatprep.subr.bf16.mxu0 0
        %532 = vmatpush1.bf16.msra.mxu0 %v503
        %533 = vmatprep.subr.bf16.mxu0 0
        %534 = vmatpush1.bf16.msra.mxu0 %v502
        %535 = vmatprep.subr.bf16.mxu0 0
        %536 = vmatpush1.bf16.msra.mxu0 %v501
        %537 = vmatprep.subr.bf16.mxu0 0
        %538 = vmatpush1.bf16.msra.mxu0 %v500
        %539 = vmatprep.subr.bf16.mxu0 0
        %540 = vmatpush1.bf16.msra.mxu0 %v499
        %541 = vmatprep.subr.bf16.mxu0 0
        %542 = vmatpush1.bf16.msra.mxu0 %v498
        %543 = vmatprep.subr.bf16.mxu0 0
        %544 = vmatpush1.bf16.msra.mxu0 %v497
        %545 = vmatprep.subr.bf16.mxu0 0
        %546 = vmatpush2.bf16.msra.mxu0 %v512
        %547 = vmatprep.subr.bf16.mxu0 0
        %548 = vmatpush2.bf16.msra.mxu0 %v511
        %549 = vmatprep.subr.bf16.mxu0 0
        %550 = vmatpush2.bf16.msra.mxu0 %v510
        %551 = vmatprep.subr.bf16.mxu0 0
        %552 = vmatpush2.bf16.msra.mxu0 %v509
        %553 = vmatprep.subr.bf16.mxu0 0
        %554 = vmatpush2.bf16.msra.mxu0 %v508
        %555 = vmatprep.subr.bf16.mxu0 0
        %556 = vmatpush2.bf16.msra.mxu0 %v507
        %557 = vmatprep.subr.bf16.mxu0 0
        %558 = vmatpush2.bf16.msra.mxu0 %v506
        %559 = vmatprep.subr.bf16.mxu0 0
        %560 = vmatpush2.bf16.msra.mxu0 %v505
        %561 = vmatprep.mubr.bf16.mxu0 %v333
        %562 = vmatmul.mubr.bf16.gmra.mxu0 %v332
        %v563 = vpop.f32.mrf.mxu0
        %v564 = vadd.f32 0.0, %v563
        %v565 = vpop.f32.mrf.mxu0
        %v566 = vpop.f32.mrf.mxu0
        %v567 = vadd.f32 0.0, %v566
        %v568 = vpop.f32.mrf.mxu0
        %569 = vmatprep.mubr.bf16.mxu0 %v335
        %570 = vmatmul.mubr.bf16.gmra.mxu0 %v334
        %v571 = vpop.f32.mrf.mxu0
        %v572 = vadd.f32 0.0, %v571
        %v573 = vpop.f32.mrf.mxu0
        %v574 = vpop.f32.mrf.mxu0
        %v575 = vadd.f32 0.0, %v574
        %v576 = vpop.f32.mrf.mxu0
        %577 = vmatprep.mubr.bf16.mxu0 %v337
        %578 = vmatmul.mubr.bf16.gmra.mxu0 %v336
        %v579 = vpop.f32.mrf.mxu0
        %v580 = vadd.f32 0.0, %v579
        %v581 = vpop.f32.mrf.mxu0
        %v582 = vpop.f32.mrf.mxu0
        %v583 = vadd.f32 0.0, %v582
        %v584 = vpop.f32.mrf.mxu0
        %585 = vmatprep.mubr.bf16.mxu0 %v339
        %586 = vmatmul.mubr.bf16.gmra.mxu0 %v338
        %v587 = vpop.f32.mrf.mxu0
        %v588 = vadd.f32 0.0, %v587
        %v589 = vpop.f32.mrf.mxu0
        %v590 = vpop.f32.mrf.mxu0
        %v591 = vadd.f32 0.0, %v590
        %v592 = vpop.f32.mrf.mxu0
        %593 = vmatprep.mubr.bf16.mxu0 %v341
        %594 = vmatmul.mubr.bf16.gmra.mxu0 %v340
        %v595 = vpop.f32.mrf.mxu0
        %v596 = vadd.f32 0.0, %v595
        %v597 = vpop.f32.mrf.mxu0
        %v598 = vpop.f32.mrf.mxu0
        %v599 = vadd.f32 0.0, %v598
        %v600 = vpop.f32.mrf.mxu0
        %601 = vmatprep.mubr.bf16.mxu0 %v343
        %602 = vmatmul.mubr.bf16.gmra.mxu0 %v342
        %v603 = vpop.f32.mrf.mxu0
        %v604 = vadd.f32 0.0, %v603
        %v605 = vpop.f32.mrf.mxu0
        %v606 = vpop.f32.mrf.mxu0
        %v607 = vadd.f32 0.0, %v606
        %v608 = vpop.f32.mrf.mxu0
        %609 = vmatprep.mubr.bf16.mxu0 %v345
        %610 = vmatmul.mubr.bf16.gmra.mxu0 %v344
        %v611 = vpop.f32.mrf.mxu0
        %v612 = vadd.f32 0.0, %v611
        %v613 = vpop.f32.mrf.mxu0
        %v614 = vpop.f32.mrf.mxu0
        %v615 = vadd.f32 0.0, %v614
        %v616 = vpop.f32.mrf.mxu0
        %617 = vmatprep.mubr.bf16.mxu0 %v347
        %618 = vmatmul.mubr.bf16.gmra.mxu0 %v346
        %v619 = vpop.f32.mrf.mxu0
        %v620 = vadd.f32 0.0, %v619
        %v621 = vpop.f32.mrf.mxu0
        %v622 = vpop.f32.mrf.mxu0
        %v623 = vadd.f32 0.0, %v622
        %v624 = vpop.f32.mrf.mxu0
        %625 = vmatprep.mubr.bf16.mxu0 %v349
        %626 = vmatmul.mubr.bf16.gmra.mxu0 %v348
        %v627 = vpop.f32.mrf.mxu0
        %v628 = vadd.f32 0.0, %v627
        %v629 = vpop.f32.mrf.mxu0
        %v630 = vpop.f32.mrf.mxu0
        %v631 = vadd.f32 0.0, %v630
        %v632 = vpop.f32.mrf.mxu0
        %633 = vmatprep.mubr.bf16.mxu0 %v351
        %634 = vmatmul.mubr.bf16.gmra.mxu0 %v350
        %v635 = vpop.f32.mrf.mxu0
        %v636 = vadd.f32 0.0, %v635
        %v637 = vpop.f32.mrf.mxu0
        %v638 = vpop.f32.mrf.mxu0
        %v639 = vadd.f32 0.0, %v638
        %v640 = vpop.f32.mrf.mxu0
        %641 = vmatprep.mubr.bf16.mxu0 %v353
        %642 = vmatmul.mubr.bf16.gmra.mxu0 %v352
        %v643 = vpop.f32.mrf.mxu0
        %v644 = vadd.f32 0.0, %v643
        %v645 = vpop.f32.mrf.mxu0
        %v646 = vpop.f32.mrf.mxu0
        %v647 = vadd.f32 0.0, %v646
        %v648 = vpop.f32.mrf.mxu0
        %649 = vmatprep.mubr.bf16.mxu0 %v355
        %650 = vmatmul.mubr.bf16.gmra.mxu0 %v354
        %v651 = vpop.f32.mrf.mxu0
        %v652 = vadd.f32 0.0, %v651
        %v653 = vpop.f32.mrf.mxu0
        %v654 = vpop.f32.mrf.mxu0
        %v655 = vadd.f32 0.0, %v654
        %v656 = vpop.f32.mrf.mxu0
        %657 = vmatprep.mubr.bf16.mxu0 %v357
        %658 = vmatmul.mubr.bf16.gmra.mxu0 %v356
        %v659 = vpop.f32.mrf.mxu0
        %v660 = vadd.f32 0.0, %v659
        %v661 = vpop.f32.mrf.mxu0
        %v662 = vpop.f32.mrf.mxu0
        %v663 = vadd.f32 0.0, %v662
        %v664 = vpop.f32.mrf.mxu0
        %665 = vmatprep.mubr.bf16.mxu0 %v359
        %666 = vmatmul.mubr.bf16.gmra.mxu0 %v358
        %v667 = vpop.f32.mrf.mxu0
        %v668 = vadd.f32 0.0, %v667
        %v669 = vpop.f32.mrf.mxu0
        %v670 = vpop.f32.mrf.mxu0
        %v671 = vadd.f32 0.0, %v670
        %v672 = vpop.f32.mrf.mxu0
        %673 = vmatprep.mubr.bf16.mxu0 %v361
        %674 = vmatmul.mubr.bf16.gmra.mxu0 %v360
        %v675 = vpop.f32.mrf.mxu0
        %v676 = vadd.f32 0.0, %v675
        %v677 = vpop.f32.mrf.mxu0
        %v678 = vpop.f32.mrf.mxu0
        %v679 = vadd.f32 0.0, %v678
        %v680 = vpop.f32.mrf.mxu0
        %681 = vmatprep.mubr.bf16.mxu0 %v363
        %682 = vmatmul.mubr.bf16.gmra.mxu0 %v362
        %v683 = vpop.f32.mrf.mxu0
        %v684 = vadd.f32 0.0, %v683
        %v685 = vpop.f32.mrf.mxu0
        %v686 = vpop.f32.mrf.mxu0
        %v687 = vadd.f32 0.0, %v686
        %v688 = vpop.f32.mrf.mxu0
        %689 = vdwg.mxu0
        %v690 = vadd.f32 %v401, %v564
        %v691 = vadd.f32 %v402, %v567
        %v692 = vadd.f32 %v403, %v572
        %v693 = vadd.f32 %v404, %v575
        %v694 = vadd.f32 %v405, %v580
        %v695 = vadd.f32 %v406, %v583
        %v696 = vadd.f32 %v407, %v588
        %v697 = vadd.f32 %v408, %v591
        %v698 = vadd.f32 %v409, %v596
        %v699 = vadd.f32 %v410, %v599
        %v700 = vadd.f32 %v411, %v604
        %v701 = vadd.f32 %v412, %v607
        %v702 = vadd.f32 %v413, %v612
        %v703 = vadd.f32 %v414, %v615
        %v704 = vadd.f32 %v415, %v620
        %v705 = vadd.f32 %v416, %v623
        %v706 = vadd.f32 %v417, %v628
        %v707 = vadd.f32 %v418, %v631
        %v708 = vadd.f32 %v419, %v636
        %v709 = vadd.f32 %v420, %v639
        %v710 = vadd.f32 %v421, %v644
        %v711 = vadd.f32 %v422, %v647
        %v712 = vadd.f32 %v423, %v652
        %v713 = vadd.f32 %v424, %v655
        %v714 = vadd.f32 %v425, %v660
        %v715 = vadd.f32 %v426, %v663
        %v716 = vadd.f32 %v427, %v668
        %v717 = vadd.f32 %v428, %v671
        %v718 = vadd.f32 %v429, %v676
        %v719 = vadd.f32 %v430, %v679
        %v720 = vadd.f32 %v431, %v684
        %v721 = vadd.f32 %v432, %v687
        %722 = vst [vmem:[#allocation2] sm:$0xff] %v690
        %723 = vst [vmem:[#allocation2 + $0x8] sm:$0xff] %v691
        %724 = vst [vmem:[#allocation2 + $0x10] sm:$0xff] %v692
        %725 = vst [vmem:[#allocation2 + $0x18] sm:$0xff] %v693
        %726 = vst [vmem:[#allocation2 + $0x20] sm:$0xff] %v694
        %727 = vst [vmem:[#allocation2 + $0x28] sm:$0xff] %v695
        %728 = vst [vmem:[#allocation2 + $0x30] sm:$0xff] %v696
        %729 = vst [vmem:[#allocation2 + $0x38] sm:$0xff] %v697
        %730 = vst [vmem:[#allocation2 + $0x40] sm:$0xff] %v698
        %731 = vst [vmem:[#allocation2 + $0x48] sm:$0xff] %v699
        %732 = vst [vmem:[#allocation2 + $0x50] sm:$0xff] %v700
        %733 = vst [vmem:[#allocation2 + $0x58] sm:$0xff] %v701
        %734 = vst [vmem:[#allocation2 + $0x60] sm:$0xff] %v702
        %735 = vst [vmem:[#allocation2 + $0x68] sm:$0xff] %v703
        %736 = vst [vmem:[#allocation2 + $0x70] sm:$0xff] %v704
        %737 = vst [vmem:[#allocation2 + $0x78] sm:$0xff] %v705
        %738 = vst [vmem:[#allocation2 + $0x80] sm:$0xff] %v706
        %739 = vst [vmem:[#allocation2 + $0x88] sm:$0xff] %v707
        %740 = vst [vmem:[#allocation2 + $0x90] sm:$0xff] %v708
        %741 = vst [vmem:[#allocation2 + $0x98] sm:$0xff] %v709
        %742 = vst [vmem:[#allocation2 + $0xa0] sm:$0xff] %v710
        %743 = vst [vmem:[#allocation2 + $0xa8] sm:$0xff] %v711
        %744 = vst [vmem:[#allocation2 + $0xb0] sm:$0xff] %v712
        %745 = vst [vmem:[#allocation2 + $0xb8] sm:$0xff] %v713
        %746 = vst [vmem:[#allocation2 + $0xc0] sm:$0xff] %v714
        %747 = vst [vmem:[#allocation2 + $0xc8] sm:$0xff] %v715
        %748 = vst [vmem:[#allocation2 + $0xd0] sm:$0xff] %v716
        %749 = vst [vmem:[#allocation2 + $0xd8] sm:$0xff] %v717
        %750 = vst [vmem:[#allocation2 + $0xe0] sm:$0xff] %v718
        %751 = vst [vmem:[#allocation2 + $0xe8] sm:$0xff] %v719
        %752 = vst [vmem:[#allocation2 + $0xf0] sm:$0xff] %v720
        %753 = vst [vmem:[#allocation2 + $0xf8] sm:$0xff] %v721
        %p754 = scmp.eq.s32.totalorder %s21, 1
        // Predicated region
        $region60: #{gin_forward.13} parent=50 // pred_check
          %p755 = pneg %p754
        $region61: #{gin_forward.13} parent=50 // pred_check_branch
          %757 = sbr.rel (%p755) target = $region63
        $region62: #{gin_forward.13} parent=50 // pred_region
          %v758 = vld [vmem:[#allocation2] sm:$0xff]
          %v759 = vld [vmem:[#allocation2 + $0x8] sm:$0xff]
          %v760 = vld [vmem:[#allocation2 + $0x10] sm:$0xff]
          %v761 = vld [vmem:[#allocation2 + $0x18] sm:$0xff]
          %v762 = vld [vmem:[#allocation2 + $0x20] sm:$0xff]
          %v763 = vld [vmem:[#allocation2 + $0x28] sm:$0xff]
          %v764 = vld [vmem:[#allocation2 + $0x30] sm:$0xff]
          %v765 = vld [vmem:[#allocation2 + $0x38] sm:$0xff]
          %v766 = vld [vmem:[#allocation2 + $0x40] sm:$0xff]
          %v767 = vld [vmem:[#allocation2 + $0x48] sm:$0xff]
          %v768 = vld [vmem:[#allocation2 + $0x50] sm:$0xff]
          %v769 = vld [vmem:[#allocation2 + $0x58] sm:$0xff]
          %v770 = vld [vmem:[#allocation2 + $0x60] sm:$0xff]
          %v771 = vld [vmem:[#allocation2 + $0x68] sm:$0xff]
          %v772 = vld [vmem:[#allocation2 + $0x70] sm:$0xff]
          %v773 = vld [vmem:[#allocation2 + $0x78] sm:$0xff]
          %v774 = vld [vmem:[#allocation2 + $0x80] sm:$0xff]
          %v775 = vld [vmem:[#allocation2 + $0x88] sm:$0xff]
          %v776 = vld [vmem:[#allocation2 + $0x90] sm:$0xff]
          %v777 = vld [vmem:[#allocation2 + $0x98] sm:$0xff]
          %v778 = vld [vmem:[#allocation2 + $0xa0] sm:$0xff]
          %v779 = vld [vmem:[#allocation2 + $0xa8] sm:$0xff]
          %v780 = vld [vmem:[#allocation2 + $0xb0] sm:$0xff]
          %v781 = vld [vmem:[#allocation2 + $0xb8] sm:$0xff]
          %v782 = vld [vmem:[#allocation2 + $0xc0] sm:$0xff]
          %v783 = vld [vmem:[#allocation2 + $0xc8] sm:$0xff]
          %v784 = vld [vmem:[#allocation2 + $0xd0] sm:$0xff]
          %v785 = vld [vmem:[#allocation2 + $0xd8] sm:$0xff]
          %v786 = vld [vmem:[#allocation2 + $0xe0] sm:$0xff]
          %v787 = vld [vmem:[#allocation2 + $0xe8] sm:$0xff]
          %v788 = vld [vmem:[#allocation2 + $0xf0] sm:$0xff]
          %v789 = vld [vmem:[#allocation2 + $0xf8] sm:$0xff]
          %v790 = vpack.c.bf16 %v759, %v758
          %v791 = vpack.c.bf16 %v761, %v760
          %v792 = vpack.c.bf16 %v763, %v762
          %v793 = vpack.c.bf16 %v765, %v764
          %v794 = vpack.c.bf16 %v767, %v766
          %v795 = vpack.c.bf16 %v769, %v768
          %v796 = vpack.c.bf16 %v771, %v770
          %v797 = vpack.c.bf16 %v773, %v772
          %v798 = vpack.c.bf16 %v775, %v774
          %v799 = vpack.c.bf16 %v777, %v776
          %v800 = vpack.c.bf16 %v779, %v778
          %v801 = vpack.c.bf16 %v781, %v780
          %v802 = vpack.c.bf16 %v783, %v782
          %v803 = vpack.c.bf16 %v785, %v784
          %v804 = vpack.c.bf16 %v787, %v786
          %v805 = vpack.c.bf16 %v789, %v788
          %v806 = vld [vmem:[%s2] sm:$0xf]
          %v807 = vld [vmem:[%s2 + $0x4] sm:$0xf]
          %v808 = vld [vmem:[%s2 + $0x8] sm:$0xf]
          %v809 = vld [vmem:[%s2 + $0xc] sm:$0xf]
          %v810 = vld [vmem:[%s2 + $0x10] sm:$0xf]
          %v811 = vld [vmem:[%s2 + $0x14] sm:$0xf]
          %v812 = vld [vmem:[%s2 + $0x18] sm:$0xf]
          %v813 = vld [vmem:[%s2 + $0x1c] sm:$0xf]
          %v814 = vld [vmem:[%s2 + $0x20] sm:$0xf]
          %v815 = vld [vmem:[%s2 + $0x24] sm:$0xf]
          %v816 = vld [vmem:[%s2 + $0x28] sm:$0xf]
          %v817 = vld [vmem:[%s2 + $0x2c] sm:$0xf]
          %v818 = vld [vmem:[%s2 + $0x30] sm:$0xf]
          %v819 = vld [vmem:[%s2 + $0x34] sm:$0xf]
          %v820 = vld [vmem:[%s2 + $0x38] sm:$0xf]
          %v821 = vld [vmem:[%s2 + $0x3c] sm:$0xf]
          %v838 = vunpack.c.l.b16 %v806
          %v839 = vunpack.c.l.b16 %v807
          %v840 = vunpack.c.l.b16 %v808
          %v841 = vunpack.c.l.b16 %v809
          %v842 = vunpack.c.l.b16 %v810
          %v843 = vunpack.c.l.b16 %v811
          %v844 = vunpack.c.l.b16 %v812
          %v845 = vunpack.c.l.b16 %v813
          %v846 = vunpack.c.l.b16 %v814
          %v847 = vunpack.c.l.b16 %v815
          %v848 = vunpack.c.l.b16 %v816
          %v849 = vunpack.c.l.b16 %v817
          %v850 = vunpack.c.l.b16 %v818
          %v851 = vunpack.c.l.b16 %v819
          %v852 = vunpack.c.l.b16 %v820
          %v853 = vunpack.c.l.b16 %v821
          %v854 = vpack.c.b16 %v839, %v838
          %v855 = vpack.c.b16 %v841, %v840
          %v856 = vpack.c.b16 %v843, %v842
          %v857 = vpack.c.b16 %v845, %v844
          %v858 = vpack.c.b16 %v847, %v846
          %v859 = vpack.c.b16 %v849, %v848
          %v860 = vpack.c.b16 %v851, %v850
          %v861 = vpack.c.b16 %v853, %v852
          %870 = vmatprep.subr.bf16.mxu0 0
          %871 = vmatpush1.bf16.msra.mxu0 %v861
          %872 = vmatprep.subr.bf16.mxu0 0
          %873 = vmatpush1.bf16.msra.mxu0 %v860
          %874 = vmatprep.subr.bf16.mxu0 0
          %875 = vmatpush1.bf16.msra.mxu0 %v859
          %876 = vmatprep.subr.bf16.mxu0 0
          %877 = vmatpush1.bf16.msra.mxu0 %v858
          %878 = vmatprep.subr.bf16.mxu0 0
          %879 = vmatpush1.bf16.msra.mxu0 %v857
          %880 = vmatprep.subr.bf16.mxu0 0
          %881 = vmatpush1.bf16.msra.mxu0 %v856
          %882 = vmatprep.subr.bf16.mxu0 0
          %883 = vmatpush1.bf16.msra.mxu0 %v855
          %884 = vmatprep.subr.bf16.mxu0 0
          %885 = vmatpush1.bf16.msra.mxu0 %v854
          %886 = vmatprep.subr.bf16.mxu0 0
          %887 = vmatpush2.bf16.msra.mxu0 0
          %888 = vmatprep.subr.bf16.mxu0 0
          %889 = vmatpush2.bf16.msra.mxu0 0
          %890 = vmatprep.subr.bf16.mxu0 0
          %891 = vmatpush2.bf16.msra.mxu0 0
          %892 = vmatprep.subr.bf16.mxu0 0
          %893 = vmatpush2.bf16.msra.mxu0 0
          %894 = vmatprep.subr.bf16.mxu0 0
          %895 = vmatpush2.bf16.msra.mxu0 0
          %896 = vmatprep.subr.bf16.mxu0 0
          %897 = vmatpush2.bf16.msra.mxu0 0
          %898 = vmatprep.subr.bf16.mxu0 0
          %899 = vmatpush2.bf16.msra.mxu0 0
          %900 = vmatprep.subr.bf16.mxu0 0
          %901 = vmatpush2.bf16.msra.mxu0 0
          %902 = vmatprep.mubr.bf16.mxu0 0
          %903 = vmatmul.mubr.bf16.gmra.mxu0 %v790
          %v904 = vpop.f32.mrf.mxu0
          %v905 = vadd.f32 0.0, %v904
          %v906 = vpop.f32.mrf.mxu0
          %v907 = vpop.f32.mrf.mxu0
          %v908 = vadd.f32 0.0, %v907
          %v909 = vpop.f32.mrf.mxu0
          %910 = vmatprep.mubr.bf16.mxu0 0
          %911 = vmatmul.mubr.bf16.gmra.mxu0 %v791
          %v912 = vpop.f32.mrf.mxu0
          %v913 = vadd.f32 0.0, %v912
          %v914 = vpop.f32.mrf.mxu0
          %v915 = vpop.f32.mrf.mxu0
          %v916 = vadd.f32 0.0, %v915
          %v917 = vpop.f32.mrf.mxu0
          %918 = vmatprep.mubr.bf16.mxu0 0
          %919 = vmatmul.mubr.bf16.gmra.mxu0 %v792
          %v920 = vpop.f32.mrf.mxu0
          %v921 = vadd.f32 0.0, %v920
          %v922 = vpop.f32.mrf.mxu0
          %v923 = vpop.f32.mrf.mxu0
          %v924 = vadd.f32 0.0, %v923
          %v925 = vpop.f32.mrf.mxu0
          %926 = vmatprep.mubr.bf16.mxu0 0
          %927 = vmatmul.mubr.bf16.gmra.mxu0 %v793
          %v928 = vpop.f32.mrf.mxu0
          %v929 = vadd.f32 0.0, %v928
          %v930 = vpop.f32.mrf.mxu0
          %v931 = vpop.f32.mrf.mxu0
          %v932 = vadd.f32 0.0, %v931
          %v933 = vpop.f32.mrf.mxu0
          %934 = vmatprep.mubr.bf16.mxu0 0
          %935 = vmatmul.mubr.bf16.gmra.mxu0 %v794
          %v936 = vpop.f32.mrf.mxu0
          %v937 = vadd.f32 0.0, %v936
          %v938 = vpop.f32.mrf.mxu0
          %v939 = vpop.f32.mrf.mxu0
          %v940 = vadd.f32 0.0, %v939
          %v941 = vpop.f32.mrf.mxu0
          %942 = vmatprep.mubr.bf16.mxu0 0
          %943 = vmatmul.mubr.bf16.gmra.mxu0 %v795
          %v944 = vpop.f32.mrf.mxu0
          %v945 = vadd.f32 0.0, %v944
          %v946 = vpop.f32.mrf.mxu0
          %v947 = vpop.f32.mrf.mxu0
          %v948 = vadd.f32 0.0, %v947
          %v949 = vpop.f32.mrf.mxu0
          %950 = vmatprep.mubr.bf16.mxu0 0
          %951 = vmatmul.mubr.bf16.gmra.mxu0 %v796
          %v952 = vpop.f32.mrf.mxu0
          %v953 = vadd.f32 0.0, %v952
          %v954 = vpop.f32.mrf.mxu0
          %v955 = vpop.f32.mrf.mxu0
          %v956 = vadd.f32 0.0, %v955
          %v957 = vpop.f32.mrf.mxu0
          %958 = vmatprep.mubr.bf16.mxu0 0
          %959 = vmatmul.mubr.bf16.gmra.mxu0 %v797
          %v960 = vpop.f32.mrf.mxu0
          %v961 = vadd.f32 0.0, %v960
          %v962 = vpop.f32.mrf.mxu0
          %v963 = vpop.f32.mrf.mxu0
          %v964 = vadd.f32 0.0, %v963
          %v965 = vpop.f32.mrf.mxu0
          %966 = vmatprep.mubr.bf16.mxu0 0
          %967 = vmatmul.mubr.bf16.gmra.mxu0 %v798
          %v968 = vpop.f32.mrf.mxu0
          %v969 = vadd.f32 0.0, %v968
          %v970 = vpop.f32.mrf.mxu0
          %v971 = vpop.f32.mrf.mxu0
          %v972 = vadd.f32 0.0, %v971
          %v973 = vpop.f32.mrf.mxu0
          %974 = vmatprep.mubr.bf16.mxu0 0
          %975 = vmatmul.mubr.bf16.gmra.mxu0 %v799
          %v976 = vpop.f32.mrf.mxu0
          %v977 = vadd.f32 0.0, %v976
          %v978 = vpop.f32.mrf.mxu0
          %v979 = vpop.f32.mrf.mxu0
          %v980 = vadd.f32 0.0, %v979
          %v981 = vpop.f32.mrf.mxu0
          %982 = vmatprep.mubr.bf16.mxu0 0
          %983 = vmatmul.mubr.bf16.gmra.mxu0 %v800
          %v984 = vpop.f32.mrf.mxu0
          %v985 = vadd.f32 0.0, %v984
          %v986 = vpop.f32.mrf.mxu0
          %v987 = vpop.f32.mrf.mxu0
          %v988 = vadd.f32 0.0, %v987
          %v989 = vpop.f32.mrf.mxu0
          %990 = vmatprep.mubr.bf16.mxu0 0
          %991 = vmatmul.mubr.bf16.gmra.mxu0 %v801
          %v992 = vpop.f32.mrf.mxu0
          %v993 = vadd.f32 0.0, %v992
          %v994 = vpop.f32.mrf.mxu0
          %v995 = vpop.f32.mrf.mxu0
          %v996 = vadd.f32 0.0, %v995
          %v997 = vpop.f32.mrf.mxu0
          %998 = vmatprep.mubr.bf16.mxu0 0
          %999 = vmatmul.mubr.bf16.gmra.mxu0 %v802
          %v1000 = vpop.f32.mrf.mxu0
          %v1001 = vadd.f32 0.0, %v1000
          %v1002 = vpop.f32.mrf.mxu0
          %v1003 = vpop.f32.mrf.mxu0
          %v1004 = vadd.f32 0.0, %v1003
          %v1005 = vpop.f32.mrf.mxu0
          %1006 = vmatprep.mubr.bf16.mxu0 0
          %1007 = vmatmul.mubr.bf16.gmra.mxu0 %v803
          %v1008 = vpop.f32.mrf.mxu0
          %v1009 = vadd.f32 0.0, %v1008
          %v1010 = vpop.f32.mrf.mxu0
          %v1011 = vpop.f32.mrf.mxu0
          %v1012 = vadd.f32 0.0, %v1011
          %v1013 = vpop.f32.mrf.mxu0
          %1014 = vmatprep.mubr.bf16.mxu0 0
          %1015 = vmatmul.mubr.bf16.gmra.mxu0 %v804
          %v1016 = vpop.f32.mrf.mxu0
          %v1017 = vadd.f32 0.0, %v1016
          %v1018 = vpop.f32.mrf.mxu0
          %v1019 = vpop.f32.mrf.mxu0
          %v1020 = vadd.f32 0.0, %v1019
          %v1021 = vpop.f32.mrf.mxu0
          %1022 = vmatprep.mubr.bf16.mxu0 0
          %1023 = vmatmul.mubr.bf16.gmra.mxu0 %v805
          %v1024 = vpop.f32.mrf.mxu0
          %v1025 = vadd.f32 0.0, %v1024
          %v1026 = vpop.f32.mrf.mxu0
          %v1027 = vpop.f32.mrf.mxu0
          %v1028 = vadd.f32 0.0, %v1027
          %v1029 = vpop.f32.mrf.mxu0
          %1030 = vdwg.mxu0
          %v1031 = vpack.c.bf16 %v908, %v905
          %v1032 = vpack.c.bf16 %v916, %v913
          %v1033 = vpack.c.bf16 %v924, %v921
          %v1034 = vpack.c.bf16 %v932, %v929
          %v1035 = vpack.c.bf16 %v940, %v937
          %v1036 = vpack.c.bf16 %v948, %v945
          %v1037 = vpack.c.bf16 %v956, %v953
          %v1038 = vpack.c.bf16 %v964, %v961
          %v1039 = vpack.c.bf16 %v972, %v969
          %v1040 = vpack.c.bf16 %v980, %v977
          %v1041 = vpack.c.bf16 %v988, %v985
          %v1042 = vpack.c.bf16 %v996, %v993
          %v1043 = vpack.c.bf16 %v1004, %v1001
          %v1044 = vpack.c.bf16 %v1012, %v1009
          %v1045 = vpack.c.bf16 %v1020, %v1017
          %v1046 = vpack.c.bf16 %v1028, %v1025
          %v1063 = vunpack.c.l.b16 %v1031
          %v1064 = vunpack.c.h.b16 %v1031
          %v1065 = vunpack.c.l.b16 %v1032
          %v1066 = vunpack.c.h.b16 %v1032
          %v1067 = vunpack.c.l.b16 %v1033
          %v1068 = vunpack.c.h.b16 %v1033
          %v1069 = vunpack.c.l.b16 %v1034
          %v1070 = vunpack.c.h.b16 %v1034
          %v1071 = vunpack.c.l.b16 %v1035
          %v1072 = vunpack.c.h.b16 %v1035
          %v1073 = vunpack.c.l.b16 %v1036
          %v1074 = vunpack.c.h.b16 %v1036
          %v1075 = vunpack.c.l.b16 %v1037
          %v1076 = vunpack.c.h.b16 %v1037
          %v1077 = vunpack.c.l.b16 %v1038
          %v1078 = vunpack.c.h.b16 %v1038
          %v1079 = vunpack.c.l.b16 %v1039
          %v1080 = vunpack.c.h.b16 %v1039
          %v1081 = vunpack.c.l.b16 %v1040
          %v1082 = vunpack.c.h.b16 %v1040
          %v1083 = vunpack.c.l.b16 %v1041
          %v1084 = vunpack.c.h.b16 %v1041
          %v1085 = vunpack.c.l.b16 %v1042
          %v1086 = vunpack.c.h.b16 %v1042
          %v1087 = vunpack.c.l.b16 %v1043
          %v1088 = vunpack.c.h.b16 %v1043
          %v1089 = vunpack.c.l.b16 %v1044
          %v1090 = vunpack.c.h.b16 %v1044
          %v1091 = vunpack.c.l.b16 %v1045
          %v1092 = vunpack.c.h.b16 %v1045
          %v1093 = vunpack.c.l.b16 %v1046
          %v1094 = vunpack.c.h.b16 %v1046
          %v1095 = vpack.c.b16 %v1063, %v1063
          %v1096 = vpack.c.b16 %v1064, %v1064
          %v1097 = vpack.c.b16 %v1065, %v1065
          %v1098 = vpack.c.b16 %v1066, %v1066
          %v1099 = vpack.c.b16 %v1067, %v1067
          %v1100 = vpack.c.b16 %v1068, %v1068
          %v1101 = vpack.c.b16 %v1069, %v1069
          %v1102 = vpack.c.b16 %v1070, %v1070
          %v1103 = vpack.c.b16 %v1071, %v1071
          %v1104 = vpack.c.b16 %v1072, %v1072
          %v1105 = vpack.c.b16 %v1073, %v1073
          %v1106 = vpack.c.b16 %v1074, %v1074
          %v1107 = vpack.c.b16 %v1075, %v1075
          %v1108 = vpack.c.b16 %v1076, %v1076
          %v1109 = vpack.c.b16 %v1077, %v1077
          %v1110 = vpack.c.b16 %v1078, %v1078
          %v1111 = vpack.c.b16 %v1079, %v1079
          %v1112 = vpack.c.b16 %v1080, %v1080
          %v1113 = vpack.c.b16 %v1081, %v1081
          %v1114 = vpack.c.b16 %v1082, %v1082
          %v1115 = vpack.c.b16 %v1083, %v1083
          %v1116 = vpack.c.b16 %v1084, %v1084
          %v1117 = vpack.c.b16 %v1085, %v1085
          %v1118 = vpack.c.b16 %v1086, %v1086
          %v1119 = vpack.c.b16 %v1087, %v1087
          %v1120 = vpack.c.b16 %v1088, %v1088
          %v1121 = vpack.c.b16 %v1089, %v1089
          %v1122 = vpack.c.b16 %v1090, %v1090
          %v1123 = vpack.c.b16 %v1091, %v1091
          %v1124 = vpack.c.b16 %v1092, %v1092
          %v1125 = vpack.c.b16 %v1093, %v1093
          %v1126 = vpack.c.b16 %v1094, %v1094
          %1159 = vst [vmem:[%s273] sm:$0xf] %v1095
          %1160 = vst [vmem:[%s273 + $0x4] sm:$0xf] %v1096
          %1161 = vst [vmem:[%s273 + $0x8] sm:$0xf] %v1097
          %1162 = vst [vmem:[%s273 + $0xc] sm:$0xf] %v1098
          %1163 = vst [vmem:[%s273 + $0x10] sm:$0xf] %v1099
          %1164 = vst [vmem:[%s273 + $0x14] sm:$0xf] %v1100
          %1165 = vst [vmem:[%s273 + $0x18] sm:$0xf] %v1101
          %1166 = vst [vmem:[%s273 + $0x1c] sm:$0xf] %v1102
          %1167 = vst [vmem:[%s273 + $0x20] sm:$0xf] %v1103
          %1168 = vst [vmem:[%s273 + $0x24] sm:$0xf] %v1104
          %1169 = vst [vmem:[%s273 + $0x28] sm:$0xf] %v1105
          %1170 = vst [vmem:[%s273 + $0x2c] sm:$0xf] %v1106
          %1171 = vst [vmem:[%s273 + $0x30] sm:$0xf] %v1107
          %1172 = vst [vmem:[%s273 + $0x34] sm:$0xf] %v1108
          %1173 = vst [vmem:[%s273 + $0x38] sm:$0xf] %v1109
          %1174 = vst [vmem:[%s273 + $0x3c] sm:$0xf] %v1110
          %1175 = vst [vmem:[%s273 + $0x40] sm:$0xf] %v1111
          %1176 = vst [vmem:[%s273 + $0x44] sm:$0xf] %v1112
          %1177 = vst [vmem:[%s273 + $0x48] sm:$0xf] %v1113
          %1178 = vst [vmem:[%s273 + $0x4c] sm:$0xf] %v1114
          %1179 = vst [vmem:[%s273 + $0x50] sm:$0xf] %v1115
          %1180 = vst [vmem:[%s273 + $0x54] sm:$0xf] %v1116
          %1181 = vst [vmem:[%s273 + $0x58] sm:$0xf] %v1117
          %1182 = vst [vmem:[%s273 + $0x5c] sm:$0xf] %v1118
          %1183 = vst [vmem:[%s273 + $0x60] sm:$0xf] %v1119
          %1184 = vst [vmem:[%s273 + $0x64] sm:$0xf] %v1120
          %1185 = vst [vmem:[%s273 + $0x68] sm:$0xf] %v1121
          %1186 = vst [vmem:[%s273 + $0x6c] sm:$0xf] %v1122
          %1187 = vst [vmem:[%s273 + $0x70] sm:$0xf] %v1123
          %1188 = vst [vmem:[%s273 + $0x74] sm:$0xf] %v1124
          %1189 = vst [vmem:[%s273 + $0x78] sm:$0xf] %v1125
          %1190 = vst [vmem:[%s273 + $0x7c] sm:$0xf] %v1126
          %v1191 = vadd.f32 %v905, %v908
          %v1192 = vadd.f32 %v1191, %v913
          %v1193 = vadd.f32 %v1192, %v916
          %v1194 = vadd.f32 %v1193, %v921
          %v1195 = vadd.f32 %v1194, %v924
          %v1196 = vadd.f32 %v1195, %v929
          %v1197 = vadd.f32 %v1196, %v932
          %v1198 = vadd.f32 %v1197, %v937
          %v1199 = vadd.f32 %v1198, %v940
          %v1200 = vadd.f32 %v1199, %v945
          %v1201 = vadd.f32 %v1200, %v948
          %v1202 = vadd.f32 %v1201, %v953
          %v1203 = vadd.f32 %v1202, %v956
          %v1204 = vadd.f32 %v1203, %v961
          %v1205 = vadd.f32 %v1204, %v964
          %v1206 = vadd.f32 %v1205, %v969
          %v1207 = vadd.f32 %v1206, %v972
          %v1208 = vadd.f32 %v1207, %v977
          %v1209 = vadd.f32 %v1208, %v980
          %v1210 = vadd.f32 %v1209, %v985
          %v1211 = vadd.f32 %v1210, %v988
          %v1212 = vadd.f32 %v1211, %v993
          %v1213 = vadd.f32 %v1212, %v996
          %v1214 = vadd.f32 %v1213, %v1001
          %v1215 = vadd.f32 %v1214, %v1004
          %v1216 = vadd.f32 %v1215, %v1009
          %v1217 = vadd.f32 %v1216, %v1012
          %v1218 = vadd.f32 %v1217, %v1017
          %v1219 = vadd.f32 %v1218, %v1020
          %v1220 = vadd.f32 %v1219, %v1025
          %v1221 = vadd.f32 %v1220, %v1028
          %v1222 = vrot.slane %v1221, 4
          %v1223 = vadd.f32 %v1221, %v1222
          %v1224 = vrot.slane %v1223, 2
          %v1225 = vadd.f32 %v1223, %v1224
          %v1226 = vrot.slane %v1225, 1
          %v1227 = vadd.f32 %v1225, %v1226
          %v1228 = vmul.f32 %v905, %v905
          %v1229 = vmul.f32 %v908, %v908
          %v1230 = vmul.f32 %v913, %v913
          %v1231 = vmul.f32 %v916, %v916
          %v1232 = vmul.f32 %v921, %v921
          %v1233 = vmul.f32 %v924, %v924
          %v1234 = vmul.f32 %v929, %v929
          %v1235 = vmul.f32 %v932, %v932
          %v1236 = vmul.f32 %v937, %v937
          %v1237 = vmul.f32 %v940, %v940
          %v1238 = vmul.f32 %v945, %v945
          %v1239 = vmul.f32 %v948, %v948
          %v1240 = vmul.f32 %v953, %v953
          %v1241 = vmul.f32 %v956, %v956
          %v1242 = vmul.f32 %v961, %v961
          %v1243 = vmul.f32 %v964, %v964
          %v1244 = vmul.f32 %v969, %v969
          %v1245 = vmul.f32 %v972, %v972
          %v1246 = vmul.f32 %v977, %v977
          %v1247 = vmul.f32 %v980, %v980
          %v1248 = vmul.f32 %v985, %v985
          %v1249 = vmul.f32 %v988, %v988
          %v1250 = vmul.f32 %v993, %v993
          %v1251 = vmul.f32 %v996, %v996
          %v1252 = vmul.f32 %v1001, %v1001
          %v1253 = vmul.f32 %v1004, %v1004
          %v1254 = vmul.f32 %v1009, %v1009
          %v1255 = vmul.f32 %v1012, %v1012
          %v1256 = vmul.f32 %v1017, %v1017
          %v1257 = vmul.f32 %v1020, %v1020
          %v1258 = vmul.f32 %v1025, %v1025
          %v1259 = vmul.f32 %v1028, %v1028
          %v1260 = vadd.f32 %v1228, %v1229
          %v1261 = vadd.f32 %v1260, %v1230
          %v1262 = vadd.f32 %v1261, %v1231
          %v1263 = vadd.f32 %v1262, %v1232
          %v1264 = vadd.f32 %v1263, %v1233
          %v1265 = vadd.f32 %v1264, %v1234
          %v1266 = vadd.f32 %v1265, %v1235
          %v1267 = vadd.f32 %v1266, %v1236
          %v1268 = vadd.f32 %v1267, %v1237
          %v1269 = vadd.f32 %v1268, %v1238
          %v1270 = vadd.f32 %v1269, %v1239
          %v1271 = vadd.f32 %v1270, %v1240
          %v1272 = vadd.f32 %v1271, %v1241
          %v1273 = vadd.f32 %v1272, %v1242
          %v1274 = vadd.f32 %v1273, %v1243
          %v1275 = vadd.f32 %v1274, %v1244
          %v1276 = vadd.f32 %v1275, %v1245
          %v1277 = vadd.f32 %v1276, %v1246
          %v1278 = vadd.f32 %v1277, %v1247
          %v1279 = vadd.f32 %v1278, %v1248
          %v1280 = vadd.f32 %v1279, %v1249
          %v1281 = vadd.f32 %v1280, %v1250
          %v1282 = vadd.f32 %v1281, %v1251
          %v1283 = vadd.f32 %v1282, %v1252
          %v1284 = vadd.f32 %v1283, %v1253
          %v1285 = vadd.f32 %v1284, %v1254
          %v1286 = vadd.f32 %v1285, %v1255
          %v1287 = vadd.f32 %v1286, %v1256
          %v1288 = vadd.f32 %v1287, %v1257
          %v1289 = vadd.f32 %v1288, %v1258
          %v1290 = vadd.f32 %v1289, %v1259
          %v1291 = vrot.slane %v1290, 4
          %v1292 = vadd.f32 %v1290, %v1291
          %v1293 = vrot.slane %v1292, 2
          %v1294 = vadd.f32 %v1292, %v1293
          %v1295 = vrot.slane %v1294, 1
          %v1296 = vadd.f32 %v1294, %v1295
          %v1297 = vlaneseq
          %v1298 = vshrl.u32 %v1297, 7
          %vm1299 = vcmp.eq.s32.totalorder %v1298, 0
          %vm1300 = vcmp.eq.s32.totalorder %v1298, 1
          %v1301 = vsel %vm1300, %v1296, 0.0
          %v1302 = vsel %vm1299, %v1227, %v1301
          %1303 = vst [vmem:[%s278] sm:$0xff] %v1302
        $region63: #{gin_forward.13} parent=50 // pred_fallthru
          _
        %s1304 = smul.u32 32, %s20
        %p1305 = scmp.lt.s32.totalorder %s1304, 63
        %s1306 = scalar_select %p1305, %s1304, 63
        %s1307 = smul.addr %s1306, 4
        %s1308 = scalar_lea.vmem %s3, %s1307
        %p1309 = scmp.lt.s32.totalorder %s20, 1
        %s1310 = scalar_select %p1309, %s20, 1
        %s1311 = smul.addr %s1310, 8
        %s1312 = scalar_lea.vmem %s4, %s1311
        // Predicated region
        $region64: #{gin_forward.13} parent=50 // pred_check
          %p1313 = pneg %p116
        $region65: #{gin_forward.13} parent=50 // pred_check_branch
          %1315 = sbr.rel (%p1313) target = $region67
        $region66: #{gin_forward.13} parent=50 // pred_region
          %s1316 = smul.u32 32, %s20
        $region67: #{gin_forward.13} parent=50 // pred_fallthru
          _
        // Predicated region
        $region68: #{gin_forward.13} parent=50 // pred_check
          %p1317 = pneg %p142
        $region69: #{gin_forward.13} parent=50 // pred_check_branch
          %1319 = sbr.rel (%p1317) target = $region71
        $region70: #{gin_forward.13} parent=50 // pred_region
          _
        $region71: #{gin_forward.13} parent=50 // pred_fallthru
          _
      $region51: #{gin_forward.13} parent=5 // pred_fallthru
        _
      %p1320 = scmp.le.s32.totalorder 2, %s11
      // Predicated region
      $region72: #{gin_forward.13} parent=5 // pred_check
        %p1321 = pneg %p1320
      $region73: #{gin_forward.13} parent=5 // pred_check_branch
        %1323 = sbr.rel (%p1321) target = $region75
      $region74: #{gin_forward.13} parent=5 // pred_region
        %s1324 = ssub.s32 %s11, 2
        // Predicated region
        $region76: #{gin_forward.13} parent=74 // pred_check
          %p1325 = pneg %p122
        $region77: #{gin_forward.13} parent=74 // pred_check_branch
          %1327 = sbr.rel (%p1325) target = $region79
        $region78: #{gin_forward.13} parent=74 // pred_region
          %s1328 = smul.u32 32, %s22
          %p1329 = scmp.lt.s32.totalorder %s1328, 63
          %s1330 = scalar_select %p1329, %s1328, 63
          %s1331 = smul.addr %s1330, 4
          %s1332 = scalar_lea.vmem %s3, %s1331
        $region79: #{gin_forward.13} parent=74 // pred_fallthru
          _
        // Predicated region
        $region80: #{gin_forward.13} parent=74 // pred_check
          %p1333 = pneg %p148
        $region81: #{gin_forward.13} parent=74 // pred_check_branch
          %1335 = sbr.rel (%p1333) target = $region83
        $region82: #{gin_forward.13} parent=74 // pred_region
          %p1336 = scmp.lt.s32.totalorder %s22, 1
          %s1337 = scalar_select %p1336, %s22, 1
          %s1338 = smul.addr %s1337, 8
          %s1339 = scalar_lea.vmem %s4, %s1338
        $region83: #{gin_forward.13} parent=74 // pred_fallthru
          _
      $region75: #{gin_forward.13} parent=5 // pred_fallthru
        _
    $region6: #{gin_forward.13} parent=1 // loop_footer
      %s15 = sadd.s32 1, %s11
    $region7: #{gin_forward.13} parent=1 // loop_footer_branch
      %10 = sbr.rel target = $region3
    $region8: #{gin_forward.13} parent=1 // loop_exit
      _

// kernel: gin_forward.25
$region0: #{gin_forward.25}
  #allocation0 [shape = 'u32[]', space=smem, size = 0x4, offset = 0x4, fixed_abs, tag = 'smem constant byte address 0x4 - core index']
  #allocation1 [shape = 'u32[144,128]{1,0:T(1,128)}', space=vmem, size = 0x12000, scoped, tag = 'internal scratch']
  %s0 = inlined_call_operand.vmem [shape: bf16[512,128], index: 0, kind: input, shape index: {}]
  %s1 = inlined_call_operand.vmem [shape: bf16[512,128], index: 1, kind: input, shape index: {}]
  %s2 = inlined_call_operand.vmem [shape: bf16[512,128], index: 2, kind: input, shape index: {}]
  %s3 = inlined_call_operand.vmem [shape: bf16[512,128], index: 3, kind: input, shape index: {}]
  %s4 = inlined_call_operand.vmem [shape: bf16[512,128], index: 4, kind: input, shape index: {}]
  %s5 = inlined_call_operand.vmem [shape: bf16[640,128], index: 5, kind: input, shape index: {}]
  %s6 = inlined_call_operand.vmem [shape: f32[1,128], index: 6, kind: input, shape index: {}]
  %s7 = inlined_call_operand.vmem [shape: f32[512,128], index: 7, kind: output, shape index: {}]
  %s8 = sld [smem:[#allocation0]]
  $region61: #{gin_forward.25} parent=0
    _
  %s10 = ssub.s32 1, %s8
  %s11 = scalar_select 0, %s10, %s8
  loop: start=0, step=1, limit=4
  $region2: #{gin_forward.25} parent=0 // loop_pre_header
    _
  $region3: #{gin_forward.25} parent=0 // loop_header
    %s13 = sphi 0, %s17
    %p14 = scmp.ge.s32.totalorder %s13, 4
    %s23 = sphi 0, %s25
    %s26 = sphi 0, %s23
    %s27 = sphi 0, %s26
    %s43 = sphi 0, %s27
    %s49 = sphi 0, %s51
    %s52 = sphi 0, %s49
    %s53 = sphi 0, %s52
    %s69 = sphi 0, %s53
    %s75 = sphi 0, %s77
    %s78 = sphi 0, %s75
    %s79 = sphi 0, %s78
    %s95 = sphi 0, %s79
    %s101 = sphi 0, %s103
    %s104 = sphi 0, %s101
    %s105 = sphi 0, %s104
    %s121 = sphi 0, %s105
    %s127 = sphi 0, %s129
    %s130 = sphi 0, %s127
    %s131 = sphi 0, %s130
    %s147 = sphi 0, %s131
    %s151 = sphi 0, %s151
    %s153 = sphi 0, %s151
    %s154 = sphi 0, %s153
    %s168 = sphi 0, %s154
    %s172 = sphi 0, %s172
    %s174 = sphi 0, %s172
    %s175 = sphi 0, %s174
    %s189 = sphi 0, %s175
    %s195 = sphi 0, %s197
    %s198 = sphi 0, %s195
    %s199 = sphi 0, %s198
    %s215 = sphi 0, %s199
  $region4: #{gin_forward.25} parent=0 // loop_header_branch
    %16 = sbr.rel (%p14) target = $region8
  $region5: #{gin_forward.25} parent=0 // loop_body
    %s18 = ssub.s32 %s13, 1
    %s19 = ssub.s32 %s13, 2
    %s20 = sadd.s32 %s13, 1
    %s21 = ssub.s32 %s13, %s20
    %p22 = scmp.eq.s32.totalorder %s21, 0
    %s24 = sadd.s32 %s23, 1
    %s25 = scalar_select %p22, %s23, %s24
    %p28 = pneg %p22
    %p29 = scmp.eq.s32.totalorder %s13, 1
    %p30 = por %p28, %p29
    %p31 = scmp.ne.s32.totalorder %s23, %s26
    %p32 = scmp.eq.s32.totalorder %s13, 0
    %p33 = por %p31, %p32
    %p34 = scmp.ne.s32.totalorder %s23, %s26
    %p35 = scmp.eq.s32.totalorder %s18, 1
    %p36 = por %p34, %p35
    %p37 = scmp.ne.s32.totalorder %s26, %s27
    %p38 = scmp.eq.s32.totalorder %s18, 0
    %p39 = por %p37, %p38
    %p40 = scmp.ne.s32.totalorder %s26, %s27
    %p41 = scmp.eq.s32.totalorder %s19, 1
    %p42 = por %p40, %p41
    %p44 = scmp.ne.s32.totalorder %s27, %s43
    %p45 = scmp.eq.s32.totalorder %s19, 0
    %p46 = por %p44, %p45
    %s47 = ssub.s32 %s13, %s20
    %p48 = scmp.eq.s32.totalorder %s47, 0
    %s50 = sadd.s32 %s49, 1
    %s51 = scalar_select %p48, %s49, %s50
    %p54 = pneg %p48
    %p55 = scmp.eq.s32.totalorder %s13, 1
    %p56 = por %p54, %p55
    %p57 = scmp.ne.s32.totalorder %s49, %s52
    %p58 = scmp.eq.s32.totalorder %s13, 0
    %p59 = por %p57, %p58
    %p60 = scmp.ne.s32.totalorder %s49, %s52
    %p61 = scmp.eq.s32.totalorder %s18, 1
    %p62 = por %p60, %p61
    %p63 = scmp.ne.s32.totalorder %s52, %s53
    %p64 = scmp.eq.s32.totalorder %s18, 0
    %p65 = por %p63, %p64
    %p66 = scmp.ne.s32.totalorder %s52, %s53
    %p67 = scmp.eq.s32.totalorder %s19, 1
    %p68 = por %p66, %p67
    %p70 = scmp.ne.s32.totalorder %s53, %s69
    %p71 = scmp.eq.s32.totalorder %s19, 0
    %p72 = por %p70, %p71
    %s73 = ssub.s32 %s13, %s20
    %p74 = scmp.eq.s32.totalorder %s73, 0
    %s76 = sadd.s32 %s75, 1
    %s77 = scalar_select %p74, %s75, %s76
    %p80 = pneg %p74
    %p81 = scmp.eq.s32.totalorder %s13, 1
    %p82 = por %p80, %p81
    %p83 = scmp.ne.s32.totalorder %s75, %s78
    %p84 = scmp.eq.s32.totalorder %s13, 0
    %p85 = por %p83, %p84
    %p86 = scmp.ne.s32.totalorder %s75, %s78
    %p87 = scmp.eq.s32.totalorder %s18, 1
    %p88 = por %p86, %p87
    %p89 = scmp.ne.s32.totalorder %s78, %s79
    %p90 = scmp.eq.s32.totalorder %s18, 0
    %p91 = por %p89, %p90
    %p92 = scmp.ne.s32.totalorder %s78, %s79
    %p93 = scmp.eq.s32.totalorder %s19, 1
    %p94 = por %p92, %p93
    %p96 = scmp.ne.s32.totalorder %s79, %s95
    %p97 = scmp.eq.s32.totalorder %s19, 0
    %p98 = por %p96, %p97
    %s99 = ssub.s32 %s13, %s20
    %p100 = scmp.eq.s32.totalorder %s99, 0
    %s102 = sadd.s32 %s101, 1
    %s103 = scalar_select %p100, %s101, %s102
    %p106 = pneg %p100
    %p107 = scmp.eq.s32.totalorder %s13, 1
    %p108 = por %p106, %p107
    %p109 = scmp.ne.s32.totalorder %s101, %s104
    %p110 = scmp.eq.s32.totalorder %s13, 0
    %p111 = por %p109, %p110
    %p112 = scmp.ne.s32.totalorder %s101, %s104
    %p113 = scmp.eq.s32.totalorder %s18, 1
    %p114 = por %p112, %p113
    %p115 = scmp.ne.s32.totalorder %s104, %s105
    %p116 = scmp.eq.s32.totalorder %s18, 0
    %p117 = por %p115, %p116
    %p118 = scmp.ne.s32.totalorder %s104, %s105
    %p119 = scmp.eq.s32.totalorder %s19, 1
    %p120 = por %p118, %p119
    %p122 = scmp.ne.s32.totalorder %s105, %s121
    %p123 = scmp.eq.s32.totalorder %s19, 0
    %p124 = por %p122, %p123
    %s125 = ssub.s32 %s13, %s20
    %p126 = scmp.eq.s32.totalorder %s125, 0
    %s128 = sadd.s32 %s127, 1
    %s129 = scalar_select %p126, %s127, %s128
    %p132 = pneg %p126
    %p133 = scmp.eq.s32.totalorder %s13, 1
    %p134 = por %p132, %p133
    %p135 = scmp.ne.s32.totalorder %s127, %s130
    %p136 = scmp.eq.s32.totalorder %s13, 0
    %p137 = por %p135, %p136
    %p138 = scmp.ne.s32.totalorder %s127, %s130
    %p139 = scmp.eq.s32.totalorder %s18, 1
    %p140 = por %p138, %p139
    %p141 = scmp.ne.s32.totalorder %s130, %s131
    %p142 = scmp.eq.s32.totalorder %s18, 0
    %p143 = por %p141, %p142
    %p144 = scmp.ne.s32.totalorder %s130, %s131
    %p145 = scmp.eq.s32.totalorder %s19, 1
    %p146 = por %p144, %p145
    %p148 = scmp.ne.s32.totalorder %s131, %s147
    %p149 = scmp.eq.s32.totalorder %s19, 0
    %p150 = por %p148, %p149
    %s152 = sadd.s32 %s151, 1
    %p155 = scmp.eq.s32.totalorder %s13, 1
    %p156 = scmp.ne.s32.totalorder %s151, %s153
    %p157 = scmp.eq.s32.totalorder %s13, 0
    %p158 = por %p156, %p157
    %p159 = scmp.ne.s32.totalorder %s151, %s153
    %p160 = scmp.eq.s32.totalorder %s18, 1
    %p161 = por %p159, %p160
    %p162 = scmp.ne.s32.totalorder %s153, %s154
    %p163 = scmp.eq.s32.totalorder %s18, 0
    %p164 = por %p162, %p163
    %p165 = scmp.ne.s32.totalorder %s153, %s154
    %p166 = scmp.eq.s32.totalorder %s19, 1
    %p167 = por %p165, %p166
    %p169 = scmp.ne.s32.totalorder %s154, %s168
    %p170 = scmp.eq.s32.totalorder %s19, 0
    %p171 = por %p169, %p170
    %s173 = sadd.s32 %s172, 1
    %p176 = scmp.eq.s32.totalorder %s13, 1
    %p177 = scmp.ne.s32.totalorder %s172, %s174
    %p178 = scmp.eq.s32.totalorder %s13, 0
    %p179 = por %p177, %p178
    %p180 = scmp.ne.s32.totalorder %s172, %s174
    %p181 = scmp.eq.s32.totalorder %s18, 1
    %p182 = por %p180, %p181
    %p183 = scmp.ne.s32.totalorder %s174, %s175
    %p184 = scmp.eq.s32.totalorder %s18, 0
    %p185 = por %p183, %p184
    %p186 = scmp.ne.s32.totalorder %s174, %s175
    %p187 = scmp.eq.s32.totalorder %s19, 1
    %p188 = por %p186, %p187
    %p190 = scmp.ne.s32.totalorder %s175, %s189
    %p191 = scmp.eq.s32.totalorder %s19, 0
    %p192 = por %p190, %p191
    %s193 = ssub.s32 %s13, %s20
    %p194 = scmp.eq.s32.totalorder %s193, 0
    %s196 = sadd.s32 %s195, 1
    %s197 = scalar_select %p194, %s195, %s196
    %p200 = pneg %p194
    %p201 = scmp.eq.s32.totalorder %s13, 1
    %p202 = por %p200, %p201
    %p203 = scmp.ne.s32.totalorder %s195, %s198
    %p204 = scmp.eq.s32.totalorder %s13, 0
    %p205 = por %p203, %p204
    %p206 = scmp.ne.s32.totalorder %s195, %s198
    %p207 = scmp.eq.s32.totalorder %s18, 1
    %p208 = por %p206, %p207
    %p209 = scmp.ne.s32.totalorder %s198, %s199
    %p210 = scmp.eq.s32.totalorder %s18, 0
    %p211 = por %p209, %p210
    %p212 = scmp.ne.s32.totalorder %s198, %s199
    %p213 = scmp.eq.s32.totalorder %s19, 1
    %p214 = por %p212, %p213
    %p216 = scmp.ne.s32.totalorder %s199, %s215
    %p217 = scmp.eq.s32.totalorder %s19, 0
    %p218 = por %p216, %p217
    %p219 = scmp.le.s32.totalorder 1, %s13
    %p220 = scmp.lt.s32.totalorder %s13, 3
    %p221 = pnand %p219, %p220
    %p222 = pneg %p221
    // Predicated region
    $region9: #{gin_forward.25} parent=5 // pred_check
      _
    $region10: #{gin_forward.25} parent=5 // pred_check_branch
      %224 = sbr.rel (%p221) target = $region12
    $region11: #{gin_forward.25} parent=5 // pred_region
      %s225 = ssub.s32 %s13, 1
      // Predicated region
      $region13: #{gin_forward.25} parent=11 // pred_check
        %p226 = pneg %p164
      $region14: #{gin_forward.25} parent=11 // pred_check_branch
        %228 = sbr.rel (%p226) target = $region16
      $region15: #{gin_forward.25} parent=11 // pred_region
        _
      $region16: #{gin_forward.25} parent=11 // pred_fallthru
        _
      // Predicated region
      $region17: #{gin_forward.25} parent=11 // pred_check
        %p229 = pneg %p185
      $region18: #{gin_forward.25} parent=11 // pred_check_branch
        %231 = sbr.rel (%p229) target = $region20
      $region19: #{gin_forward.25} parent=11 // pred_region
        _
      $region20: #{gin_forward.25} parent=11 // pred_fallthru
        _
    $region12: #{gin_forward.25} parent=5 // pred_fallthru
      _
    %p232 = scmp.lt.s32.totalorder %s13, 2
    // Predicated region
    $region21: #{gin_forward.25} parent=5 // pred_check
      %p233 = pneg %p232
    $region22: #{gin_forward.25} parent=5 // pred_check_branch
      %235 = sbr.rel (%p233) target = $region24
    $region23: #{gin_forward.25} parent=5 // pred_region
      // Predicated region
      $region25: #{gin_forward.25} parent=23 // pred_check
        %p236 = pneg %p33
      $region26: #{gin_forward.25} parent=23 // pred_check_branch
        %238 = sbr.rel (%p236) target = $region28
      $region27: #{gin_forward.25} parent=23 // pred_region
        %s239 = smul.u32 32, %s13
        %p240 = scmp.lt.s32.totalorder %s239, 63
        %s241 = scalar_select %p240, %s239, 63
        %s242 = smul.addr %s241, 4
        %s243 = scalar_lea.vmem %s0, %s242
        %s244 = smul.u32 32, %s13
      $region28: #{gin_forward.25} parent=23 // pred_fallthru
        _
      // Predicated region
      $region29: #{gin_forward.25} parent=23 // pred_check
        %p245 = pneg %p59
      $region30: #{gin_forward.25} parent=23 // pred_check_branch
        %247 = sbr.rel (%p245) target = $region32
      $region31: #{gin_forward.25} parent=23 // pred_region
        %s248 = smul.u32 32, %s13
        %p249 = scmp.lt.s32.totalorder %s248, 63
        %s250 = scalar_select %p249, %s248, 63
        %s251 = smul.addr %s250, 4
        %s252 = scalar_lea.vmem %s1, %s251
        %s253 = smul.u32 32, %s13
      $region32: #{gin_forward.25} parent=23 // pred_fallthru
        _
      // Predicated region
      $region33: #{gin_forward.25} parent=23 // pred_check
        %p254 = pneg %p85
      $region34: #{gin_forward.25} parent=23 // pred_check_branch
        %256 = sbr.rel (%p254) target = $region36
      $region35: #{gin_forward.25} parent=23 // pred_region
        %s257 = smul.u32 32, %s13
        %p258 = scmp.lt.s32.totalorder %s257, 63
        %s259 = scalar_select %p258, %s257, 63
        %s260 = smul.addr %s259, 4
        %s261 = scalar_lea.vmem %s2, %s260
        %s262 = smul.u32 32, %s13
      $region36: #{gin_forward.25} parent=23 // pred_fallthru
        _
      // Predicated region
      $region37: #{gin_forward.25} parent=23 // pred_check
        %p263 = pneg %p111
      $region38: #{gin_forward.25} parent=23 // pred_check_branch
        %265 = sbr.rel (%p263) target = $region40
      $region39: #{gin_forward.25} parent=23 // pred_region
        %s266 = smul.u32 32, %s13
        %p267 = scmp.lt.s32.totalorder %s266, 63
        %s268 = scalar_select %p267, %s266, 63
        %s269 = smul.addr %s268, 4
        %s270 = scalar_lea.vmem %s3, %s269
        %s271 = smul.u32 32, %s13
      $region40: #{gin_forward.25} parent=23 // pred_fallthru
        _
      // Predicated region
      $region41: #{gin_forward.25} parent=23 // pred_check
        %p272 = pneg %p137
      $region42: #{gin_forward.25} parent=23 // pred_check_branch
        %274 = sbr.rel (%p272) target = $region44
      $region43: #{gin_forward.25} parent=23 // pred_region
        %s275 = smul.u32 32, %s13
        %p276 = scmp.lt.s32.totalorder %s275, 63
        %s277 = scalar_select %p276, %s275, 63
        %s278 = smul.addr %s277, 4
        %s279 = scalar_lea.vmem %s4, %s278
        %s280 = smul.u32 32, %s13
      $region44: #{gin_forward.25} parent=23 // pred_fallthru
        _
    $region24: #{gin_forward.25} parent=5 // pred_fallthru
      _
    %p281 = scmp.le.s32.totalorder 1, %s13
    %p282 = scmp.lt.s32.totalorder %s13, 3
    %p283 = pnand %p281, %p282
    %p284 = pneg %p283
    // Predicated region
    $region45: #{gin_forward.25} parent=5 // pred_check
      _
    $region46: #{gin_forward.25} parent=5 // pred_check_branch
      %286 = sbr.rel (%p283) target = $region48
    $region47: #{gin_forward.25} parent=5 // pred_region
      %s287 = ssub.s32 %s13, 1
      %s288 = smul.u32 32, %s18
      %p289 = scmp.lt.s32.totalorder %s288, 63
      %s290 = scalar_select %p289, %s288, 63
      %s291 = smul.addr %s290, 4
      %s292 = scalar_lea.vmem %s0, %s291
      %p293 = pneg %p39
      %p294 = pneg %p36
      %s295 = smul.u32 32, %s18
      %p296 = scmp.lt.s32.totalorder %s295, 63
      %s297 = scalar_select %p296, %s295, 63
      %s298 = smul.addr %s297, 4
      %s299 = scalar_lea.vmem %s1, %s298
      %p300 = pneg %p65
      %p301 = pneg %p62
      %s302 = smul.u32 32, %s18
      %p303 = scmp.lt.s32.totalorder %s302, 63
      %s304 = scalar_select %p303, %s302, 63
      %s305 = smul.addr %s304, 4
      %s306 = scalar_lea.vmem %s2, %s305
      %p307 = pneg %p91
      %p308 = pneg %p88
      %s309 = smul.u32 32, %s18
      %p310 = scmp.lt.s32.totalorder %s309, 63
      %s311 = scalar_select %p310, %s309, 63
      %s312 = smul.addr %s311, 4
      %s313 = scalar_lea.vmem %s3, %s312
      %p314 = pneg %p117
      %p315 = pneg %p114
      %s316 = smul.u32 32, %s18
      %p317 = scmp.lt.s32.totalorder %s316, 63
      %s318 = scalar_select %p317, %s316, 63
      %s319 = smul.addr %s318, 4
      %s320 = scalar_lea.vmem %s4, %s319
      %p321 = pneg %p143
      %p322 = pneg %p140
      %p323 = pneg %p164
      %p324 = pneg %p161
      %p325 = pneg %p185
      %p326 = pneg %p182
      %p327 = pneg %p211
      %p328 = pneg %p208
      %s329 = smul.u32 32, %s18
      %p330 = scmp.lt.s32.totalorder %s329, 63
      %s331 = scalar_select %p330, %s329, 63
      %s332 = smul.addr %s331, 8
      %s333 = scalar_lea.vmem %s7, %s332
      %s334 = smul.u32 32, %s18
      %p335 = scmp.lt.s32.totalorder %s334, 63
      %s336 = scalar_select %p335, %s334, 63
      %s337 = smul.addr %s336, 4
      %s338 = scalar_lea.vmem %s0, %s337
      %s339 = smul.u32 32, %s18
      %s340 = smul.u32 32, %s18
      %p341 = scmp.lt.s32.totalorder %s340, 63
      %s342 = scalar_select %p341, %s340, 63
      %s343 = smul.addr %s342, 4
      %s344 = scalar_lea.vmem %s1, %s343
      %s345 = smul.u32 32, %s18
      %s346 = smul.u32 32, %s18
      %p347 = scmp.lt.s32.totalorder %s346, 63
      %s348 = scalar_select %p347, %s346, 63
      %s349 = smul.addr %s348, 4
      %s350 = scalar_lea.vmem %s2, %s349
      %s351 = smul.u32 32, %s18
      %s352 = smul.u32 32, %s18
      %p353 = scmp.lt.s32.totalorder %s352, 63
      %s354 = scalar_select %p353, %s352, 63
      %s355 = smul.addr %s354, 4
      %s356 = scalar_lea.vmem %s3, %s355
      %s357 = smul.u32 32, %s18
      %s358 = smul.u32 32, %s18
      %p359 = scmp.lt.s32.totalorder %s358, 63
      %s360 = scalar_select %p359, %s358, 63
      %s361 = smul.addr %s360, 4
      %s362 = scalar_lea.vmem %s4, %s361
      %s363 = smul.u32 32, %s18
      %s364 = smul.u32 32, %s18
      %p365 = scmp.lt.s32.totalorder %s364, 63
      %s366 = scalar_select %p365, %s364, 63
      %s367 = smul.addr %s366, 8
      %s368 = scalar_lea.vmem %s7, %s367
      %s369 = smul.u32 32, %s18
      %v371 = vld [vmem:[%s338] sm:$0xf]
      %v372 = vld [vmem:[%s338 + $0x4] sm:$0xf]
      %v373 = vld [vmem:[%s338 + $0x8] sm:$0xf]
      %v374 = vld [vmem:[%s338 + $0xc] sm:$0xf]
      %v375 = vld [vmem:[%s338 + $0x10] sm:$0xf]
      %v376 = vld [vmem:[%s338 + $0x14] sm:$0xf]
      %v377 = vld [vmem:[%s338 + $0x18] sm:$0xf]
      %v378 = vld [vmem:[%s338 + $0x1c] sm:$0xf]
      %v379 = vld [vmem:[%s338 + $0x20] sm:$0xf]
      %v380 = vld [vmem:[%s338 + $0x24] sm:$0xf]
      %v381 = vld [vmem:[%s338 + $0x28] sm:$0xf]
      %v382 = vld [vmem:[%s338 + $0x2c] sm:$0xf]
      %v383 = vld [vmem:[%s338 + $0x30] sm:$0xf]
      %v384 = vld [vmem:[%s338 + $0x34] sm:$0xf]
      %v385 = vld [vmem:[%s338 + $0x38] sm:$0xf]
      %v386 = vld [vmem:[%s338 + $0x3c] sm:$0xf]
      %v387 = vld [vmem:[%s338 + $0x40] sm:$0xf]
      %v388 = vld [vmem:[%s338 + $0x44] sm:$0xf]
      %v389 = vld [vmem:[%s338 + $0x48] sm:$0xf]
      %v390 = vld [vmem:[%s338 + $0x4c] sm:$0xf]
      %v391 = vld [vmem:[%s338 + $0x50] sm:$0xf]
      %v392 = vld [vmem:[%s338 + $0x54] sm:$0xf]
      %v393 = vld [vmem:[%s338 + $0x58] sm:$0xf]
      %v394 = vld [vmem:[%s338 + $0x5c] sm:$0xf]
      %v395 = vld [vmem:[%s338 + $0x60] sm:$0xf]
      %v396 = vld [vmem:[%s338 + $0x64] sm:$0xf]
      %v397 = vld [vmem:[%s338 + $0x68] sm:$0xf]
      %v398 = vld [vmem:[%s338 + $0x6c] sm:$0xf]
      %v399 = vld [vmem:[%s338 + $0x70] sm:$0xf]
      %v400 = vld [vmem:[%s338 + $0x74] sm:$0xf]
      %v401 = vld [vmem:[%s338 + $0x78] sm:$0xf]
      %v402 = vld [vmem:[%s338 + $0x7c] sm:$0xf]
      %v403 = vld [vmem:[%s344] sm:$0xf]
      %v404 = vld [vmem:[%s344 + $0x4] sm:$0xf]
      %v405 = vld [vmem:[%s344 + $0x8] sm:$0xf]
      %v406 = vld [vmem:[%s344 + $0xc] sm:$0xf]
      %v407 = vld [vmem:[%s344 + $0x10] sm:$0xf]
      %v408 = vld [vmem:[%s344 + $0x14] sm:$0xf]
      %v409 = vld [vmem:[%s344 + $0x18] sm:$0xf]
      %v410 = vld [vmem:[%s344 + $0x1c] sm:$0xf]
      %v411 = vld [vmem:[%s344 + $0x20] sm:$0xf]
      %v412 = vld [vmem:[%s344 + $0x24] sm:$0xf]
      %v413 = vld [vmem:[%s344 + $0x28] sm:$0xf]
      %v414 = vld [vmem:[%s344 + $0x2c] sm:$0xf]
      %v415 = vld [vmem:[%s344 + $0x30] sm:$0xf]
      %v416 = vld [vmem:[%s344 + $0x34] sm:$0xf]
      %v417 = vld [vmem:[%s344 + $0x38] sm:$0xf]
      %v418 = vld [vmem:[%s344 + $0x3c] sm:$0xf]
      %v419 = vld [vmem:[%s344 + $0x40] sm:$0xf]
      %v420 = vld [vmem:[%s344 + $0x44] sm:$0xf]
      %v421 = vld [vmem:[%s344 + $0x48] sm:$0xf]
      %v422 = vld [vmem:[%s344 + $0x4c] sm:$0xf]
      %v423 = vld [vmem:[%s344 + $0x50] sm:$0xf]
      %v424 = vld [vmem:[%s344 + $0x54] sm:$0xf]
      %v425 = vld [vmem:[%s344 + $0x58] sm:$0xf]
      %v426 = vld [vmem:[%s344 + $0x5c] sm:$0xf]
      %v427 = vld [vmem:[%s344 + $0x60] sm:$0xf]
      %v428 = vld [vmem:[%s344 + $0x64] sm:$0xf]
      %v429 = vld [vmem:[%s344 + $0x68] sm:$0xf]
      %v430 = vld [vmem:[%s344 + $0x6c] sm:$0xf]
      %v431 = vld [vmem:[%s344 + $0x70] sm:$0xf]
      %v432 = vld [vmem:[%s344 + $0x74] sm:$0xf]
      %v433 = vld [vmem:[%s344 + $0x78] sm:$0xf]
      %v434 = vld [vmem:[%s344 + $0x7c] sm:$0xf]
      %v435 = vld [vmem:[%s350] sm:$0xf]
      %v436 = vld [vmem:[%s350 + $0x4] sm:$0xf]
      %v437 = vld [vmem:[%s350 + $0x8] sm:$0xf]
      %v438 = vld [vmem:[%s350 + $0xc] sm:$0xf]
      %v439 = vld [vmem:[%s350 + $0x10] sm:$0xf]
      %v440 = vld [vmem:[%s350 + $0x14] sm:$0xf]
      %v441 = vld [vmem:[%s350 + $0x18] sm:$0xf]
      %v442 = vld [vmem:[%s350 + $0x1c] sm:$0xf]
      %v443 = vld [vmem:[%s350 + $0x20] sm:$0xf]
      %v444 = vld [vmem:[%s350 + $0x24] sm:$0xf]
      %v445 = vld [vmem:[%s350 + $0x28] sm:$0xf]
      %v446 = vld [vmem:[%s350 + $0x2c] sm:$0xf]
      %v447 = vld [vmem:[%s350 + $0x30] sm:$0xf]
      %v448 = vld [vmem:[%s350 + $0x34] sm:$0xf]
      %v449 = vld [vmem:[%s350 + $0x38] sm:$0xf]
      %v450 = vld [vmem:[%s350 + $0x3c] sm:$0xf]
      %v451 = vld [vmem:[%s350 + $0x40] sm:$0xf]
      %v452 = vld [vmem:[%s350 + $0x44] sm:$0xf]
      %v453 = vld [vmem:[%s350 + $0x48] sm:$0xf]
      %v454 = vld [vmem:[%s350 + $0x4c] sm:$0xf]
      %v455 = vld [vmem:[%s350 + $0x50] sm:$0xf]
      %v456 = vld [vmem:[%s350 + $0x54] sm:$0xf]
      %v457 = vld [vmem:[%s350 + $0x58] sm:$0xf]
      %v458 = vld [vmem:[%s350 + $0x5c] sm:$0xf]
      %v459 = vld [vmem:[%s350 + $0x60] sm:$0xf]
      %v460 = vld [vmem:[%s350 + $0x64] sm:$0xf]
      %v461 = vld [vmem:[%s350 + $0x68] sm:$0xf]
      %v462 = vld [vmem:[%s350 + $0x6c] sm:$0xf]
      %v463 = vld [vmem:[%s350 + $0x70] sm:$0xf]
      %v464 = vld [vmem:[%s350 + $0x74] sm:$0xf]
      %v465 = vld [vmem:[%s350 + $0x78] sm:$0xf]
      %v466 = vld [vmem:[%s350 + $0x7c] sm:$0xf]
      %v467 = vld [vmem:[%s356] sm:$0xf]
      %v468 = vld [vmem:[%s356 + $0x4] sm:$0xf]
      %v469 = vld [vmem:[%s356 + $0x8] sm:$0xf]
      %v470 = vld [vmem:[%s356 + $0xc] sm:$0xf]
      %v471 = vld [vmem:[%s356 + $0x10] sm:$0xf]
      %v472 = vld [vmem:[%s356 + $0x14] sm:$0xf]
      %v473 = vld [vmem:[%s356 + $0x18] sm:$0xf]
      %v474 = vld [vmem:[%s356 + $0x1c] sm:$0xf]
      %v475 = vld [vmem:[%s356 + $0x20] sm:$0xf]
      %v476 = vld [vmem:[%s356 + $0x24] sm:$0xf]
      %v477 = vld [vmem:[%s356 + $0x28] sm:$0xf]
      %v478 = vld [vmem:[%s356 + $0x2c] sm:$0xf]
      %v479 = vld [vmem:[%s356 + $0x30] sm:$0xf]
      %v480 = vld [vmem:[%s356 + $0x34] sm:$0xf]
      %v481 = vld [vmem:[%s356 + $0x38] sm:$0xf]
      %v482 = vld [vmem:[%s356 + $0x3c] sm:$0xf]
      %v483 = vld [vmem:[%s356 + $0x40] sm:$0xf]
      %v484 = vld [vmem:[%s356 + $0x44] sm:$0xf]
      %v485 = vld [vmem:[%s356 + $0x48] sm:$0xf]
      %v486 = vld [vmem:[%s356 + $0x4c] sm:$0xf]
      %v487 = vld [vmem:[%s356 + $0x50] sm:$0xf]
      %v488 = vld [vmem:[%s356 + $0x54] sm:$0xf]
      %v489 = vld [vmem:[%s356 + $0x58] sm:$0xf]
      %v490 = vld [vmem:[%s356 + $0x5c] sm:$0xf]
      %v491 = vld [vmem:[%s356 + $0x60] sm:$0xf]
      %v492 = vld [vmem:[%s356 + $0x64] sm:$0xf]
      %v493 = vld [vmem:[%s356 + $0x68] sm:$0xf]
      %v494 = vld [vmem:[%s356 + $0x6c] sm:$0xf]
      %v495 = vld [vmem:[%s356 + $0x70] sm:$0xf]
      %v496 = vld [vmem:[%s356 + $0x74] sm:$0xf]
      %v497 = vld [vmem:[%s356 + $0x78] sm:$0xf]
      %v498 = vld [vmem:[%s356 + $0x7c] sm:$0xf]
      %v499 = vld [vmem:[%s362] sm:$0xf]
      %v500 = vld [vmem:[%s362 + $0x4] sm:$0xf]
      %v501 = vld [vmem:[%s362 + $0x8] sm:$0xf]
      %v502 = vld [vmem:[%s362 + $0xc] sm:$0xf]
      %v503 = vld [vmem:[%s362 + $0x10] sm:$0xf]
      %v504 = vld [vmem:[%s362 + $0x14] sm:$0xf]
      %v505 = vld [vmem:[%s362 + $0x18] sm:$0xf]
      %v506 = vld [vmem:[%s362 + $0x1c] sm:$0xf]
      %v507 = vld [vmem:[%s362 + $0x20] sm:$0xf]
      %v508 = vld [vmem:[%s362 + $0x24] sm:$0xf]
      %v509 = vld [vmem:[%s362 + $0x28] sm:$0xf]
      %v510 = vld [vmem:[%s362 + $0x2c] sm:$0xf]
      %v511 = vld [vmem:[%s362 + $0x30] sm:$0xf]
      %v512 = vld [vmem:[%s362 + $0x34] sm:$0xf]
      %v513 = vld [vmem:[%s362 + $0x38] sm:$0xf]
      %v514 = vld [vmem:[%s362 + $0x3c] sm:$0xf]
      %v515 = vld [vmem:[%s362 + $0x40] sm:$0xf]
      %v516 = vld [vmem:[%s362 + $0x44] sm:$0xf]
      %v517 = vld [vmem:[%s362 + $0x48] sm:$0xf]
      %v518 = vld [vmem:[%s362 + $0x4c] sm:$0xf]
      %v519 = vld [vmem:[%s362 + $0x50] sm:$0xf]
      %v520 = vld [vmem:[%s362 + $0x54] sm:$0xf]
      %v521 = vld [vmem:[%s362 + $0x58] sm:$0xf]
      %v522 = vld [vmem:[%s362 + $0x5c] sm:$0xf]
      %v523 = vld [vmem:[%s362 + $0x60] sm:$0xf]
      %v524 = vld [vmem:[%s362 + $0x64] sm:$0xf]
      %v525 = vld [vmem:[%s362 + $0x68] sm:$0xf]
      %v526 = vld [vmem:[%s362 + $0x6c] sm:$0xf]
      %v527 = vld [vmem:[%s362 + $0x70] sm:$0xf]
      %v528 = vld [vmem:[%s362 + $0x74] sm:$0xf]
      %v529 = vld [vmem:[%s362 + $0x78] sm:$0xf]
      %v530 = vld [vmem:[%s362 + $0x7c] sm:$0xf]
      %v563 = vunpack.c.l.b16 %v371
      %v564 = vunpack.c.l.b16 %v372
      %v565 = vunpack.c.l.b16 %v373
      %v566 = vunpack.c.l.b16 %v374
      %v567 = vunpack.c.l.b16 %v375
      %v568 = vunpack.c.l.b16 %v376
      %v569 = vunpack.c.l.b16 %v377
      %v570 = vunpack.c.l.b16 %v378
      %v571 = vunpack.c.l.b16 %v379
      %v572 = vunpack.c.l.b16 %v380
      %v573 = vunpack.c.l.b16 %v381
      %v574 = vunpack.c.l.b16 %v382
      %v575 = vunpack.c.l.b16 %v383
      %v576 = vunpack.c.l.b16 %v384
      %v577 = vunpack.c.l.b16 %v385
      %v578 = vunpack.c.l.b16 %v386
      %v579 = vunpack.c.l.b16 %v387
      %v580 = vunpack.c.l.b16 %v388
      %v581 = vunpack.c.l.b16 %v389
      %v582 = vunpack.c.l.b16 %v390
      %v583 = vunpack.c.l.b16 %v391
      %v584 = vunpack.c.l.b16 %v392
      %v585 = vunpack.c.l.b16 %v393
      %v586 = vunpack.c.l.b16 %v394
      %v587 = vunpack.c.l.b16 %v395
      %v588 = vunpack.c.l.b16 %v396
      %v589 = vunpack.c.l.b16 %v397
      %v590 = vunpack.c.l.b16 %v398
      %v591 = vunpack.c.l.b16 %v399
      %v592 = vunpack.c.l.b16 %v400
      %v593 = vunpack.c.l.b16 %v401
      %v594 = vunpack.c.l.b16 %v402
      %v595 = vpack.c.b16 %v564, %v563
      %v596 = vpack.c.b16 %v566, %v565
      %v597 = vpack.c.b16 %v568, %v567
      %v598 = vpack.c.b16 %v570, %v569
      %v599 = vpack.c.b16 %v572, %v571
      %v600 = vpack.c.b16 %v574, %v573
      %v601 = vpack.c.b16 %v576, %v575
      %v602 = vpack.c.b16 %v578, %v577
      %v603 = vpack.c.b16 %v580, %v579
      %v604 = vpack.c.b16 %v582, %v581
      %v605 = vpack.c.b16 %v584, %v583
      %v606 = vpack.c.b16 %v586, %v585
      %v607 = vpack.c.b16 %v588, %v587
      %v608 = vpack.c.b16 %v590, %v589
      %v609 = vpack.c.b16 %v592, %v591
      %v610 = vpack.c.b16 %v594, %v593
      %v659 = vunpack.c.l.b16 %v403
      %v660 = vunpack.c.l.b16 %v404
      %v661 = vunpack.c.l.b16 %v405
      %v662 = vunpack.c.l.b16 %v406
      %v663 = vunpack.c.l.b16 %v407
      %v664 = vunpack.c.l.b16 %v408
      %v665 = vunpack.c.l.b16 %v409
      %v666 = vunpack.c.l.b16 %v410
      %v667 = vunpack.c.l.b16 %v411
      %v668 = vunpack.c.l.b16 %v412
      %v669 = vunpack.c.l.b16 %v413
      %v670 = vunpack.c.l.b16 %v414
      %v671 = vunpack.c.l.b16 %v415
      %v672 = vunpack.c.l.b16 %v416
      %v673 = vunpack.c.l.b16 %v417
      %v674 = vunpack.c.l.b16 %v418
      %v675 = vunpack.c.l.b16 %v419
      %v676 = vunpack.c.l.b16 %v420
      %v677 = vunpack.c.l.b16 %v421
      %v678 = vunpack.c.l.b16 %v422
      %v679 = vunpack.c.l.b16 %v423
      %v680 = vunpack.c.l.b16 %v424
      %v681 = vunpack.c.l.b16 %v425
      %v682 = vunpack.c.l.b16 %v426
      %v683 = vunpack.c.l.b16 %v427
      %v684 = vunpack.c.l.b16 %v428
      %v685 = vunpack.c.l.b16 %v429
      %v686 = vunpack.c.l.b16 %v430
      %v687 = vunpack.c.l.b16 %v431
      %v688 = vunpack.c.l.b16 %v432
      %v689 = vunpack.c.l.b16 %v433
      %v690 = vunpack.c.l.b16 %v434
      %v691 = vpack.c.b16 %v660, %v659
      %v692 = vpack.c.b16 %v662, %v661
      %v693 = vpack.c.b16 %v664, %v663
      %v694 = vpack.c.b16 %v666, %v665
      %v695 = vpack.c.b16 %v668, %v667
      %v696 = vpack.c.b16 %v670, %v669
      %v697 = vpack.c.b16 %v672, %v671
      %v698 = vpack.c.b16 %v674, %v673
      %v699 = vpack.c.b16 %v676, %v675
      %v700 = vpack.c.b16 %v678, %v677
      %v701 = vpack.c.b16 %v680, %v679
      %v702 = vpack.c.b16 %v682, %v681
      %v703 = vpack.c.b16 %v684, %v683
      %v704 = vpack.c.b16 %v686, %v685
      %v705 = vpack.c.b16 %v688, %v687
      %v706 = vpack.c.b16 %v690, %v689
      %v755 = vunpack.c.l.b16 %v435
      %v756 = vunpack.c.l.b16 %v436
      %v757 = vunpack.c.l.b16 %v437
      %v758 = vunpack.c.l.b16 %v438
      %v759 = vunpack.c.l.b16 %v439
      %v760 = vunpack.c.l.b16 %v440
      %v761 = vunpack.c.l.b16 %v441
      %v762 = vunpack.c.l.b16 %v442
      %v763 = vunpack.c.l.b16 %v443
      %v764 = vunpack.c.l.b16 %v444
      %v765 = vunpack.c.l.b16 %v445
      %v766 = vunpack.c.l.b16 %v446
      %v767 = vunpack.c.l.b16 %v447
      %v768 = vunpack.c.l.b16 %v448
      %v769 = vunpack.c.l.b16 %v449
      %v770 = vunpack.c.l.b16 %v450
      %v771 = vunpack.c.l.b16 %v451
      %v772 = vunpack.c.l.b16 %v452
      %v773 = vunpack.c.l.b16 %v453
      %v774 = vunpack.c.l.b16 %v454
      %v775 = vunpack.c.l.b16 %v455
      %v776 = vunpack.c.l.b16 %v456
      %v777 = vunpack.c.l.b16 %v457
      %v778 = vunpack.c.l.b16 %v458
      %v779 = vunpack.c.l.b16 %v459
      %v780 = vunpack.c.l.b16 %v460
      %v781 = vunpack.c.l.b16 %v461
      %v782 = vunpack.c.l.b16 %v462
      %v783 = vunpack.c.l.b16 %v463
      %v784 = vunpack.c.l.b16 %v464
      %v785 = vunpack.c.l.b16 %v465
      %v786 = vunpack.c.l.b16 %v466
      %v787 = vpack.c.b16 %v756, %v755
      %v788 = vpack.c.b16 %v758, %v757
      %v789 = vpack.c.b16 %v760, %v759
      %v790 = vpack.c.b16 %v762, %v761
      %v791 = vpack.c.b16 %v764, %v763
      %v792 = vpack.c.b16 %v766, %v765
      %v793 = vpack.c.b16 %v768, %v767
      %v794 = vpack.c.b16 %v770, %v769
      %v795 = vpack.c.b16 %v772, %v771
      %v796 = vpack.c.b16 %v774, %v773
      %v797 = vpack.c.b16 %v776, %v775
      %v798 = vpack.c.b16 %v778, %v777
      %v799 = vpack.c.b16 %v780, %v779
      %v800 = vpack.c.b16 %v782, %v781
      %v801 = vpack.c.b16 %v784, %v783
      %v802 = vpack.c.b16 %v786, %v785
      %v851 = vunpack.c.l.b16 %v467
      %v852 = vunpack.c.l.b16 %v468
      %v853 = vunpack.c.l.b16 %v469
      %v854 = vunpack.c.l.b16 %v470
      %v855 = vunpack.c.l.b16 %v471
      %v856 = vunpack.c.l.b16 %v472
      %v857 = vunpack.c.l.b16 %v473
      %v858 = vunpack.c.l.b16 %v474
      %v859 = vunpack.c.l.b16 %v475
      %v860 = vunpack.c.l.b16 %v476
      %v861 = vunpack.c.l.b16 %v477
      %v862 = vunpack.c.l.b16 %v478
      %v863 = vunpack.c.l.b16 %v479
      %v864 = vunpack.c.l.b16 %v480
      %v865 = vunpack.c.l.b16 %v481
      %v866 = vunpack.c.l.b16 %v482
      %v867 = vunpack.c.l.b16 %v483
      %v868 = vunpack.c.l.b16 %v484
      %v869 = vunpack.c.l.b16 %v485
      %v870 = vunpack.c.l.b16 %v486
      %v871 = vunpack.c.l.b16 %v487
      %v872 = vunpack.c.l.b16 %v488
      %v873 = vunpack.c.l.b16 %v489
      %v874 = vunpack.c.l.b16 %v490
      %v875 = vunpack.c.l.b16 %v491
      %v876 = vunpack.c.l.b16 %v492
      %v877 = vunpack.c.l.b16 %v493
      %v878 = vunpack.c.l.b16 %v494
      %v879 = vunpack.c.l.b16 %v495
      %v880 = vunpack.c.l.b16 %v496
      %v881 = vunpack.c.l.b16 %v497
      %v882 = vunpack.c.l.b16 %v498
      %v883 = vpack.c.b16 %v852, %v851
      %v884 = vpack.c.b16 %v854, %v853
      %v885 = vpack.c.b16 %v856, %v855
      %v886 = vpack.c.b16 %v858, %v857
      %v887 = vpack.c.b16 %v860, %v859
      %v888 = vpack.c.b16 %v862, %v861
      %v889 = vpack.c.b16 %v864, %v863
      %v890 = vpack.c.b16 %v866, %v865
      %v891 = vpack.c.b16 %v868, %v867
      %v892 = vpack.c.b16 %v870, %v869
      %v893 = vpack.c.b16 %v872, %v871
      %v894 = vpack.c.b16 %v874, %v873
      %v895 = vpack.c.b16 %v876, %v875
      %v896 = vpack.c.b16 %v878, %v877
      %v897 = vpack.c.b16 %v880, %v879
      %v898 = vpack.c.b16 %v882, %v881
      %v947 = vunpack.c.l.b16 %v499
      %v948 = vunpack.c.l.b16 %v500
      %v949 = vunpack.c.l.b16 %v501
      %v950 = vunpack.c.l.b16 %v502
      %v951 = vunpack.c.l.b16 %v503
      %v952 = vunpack.c.l.b16 %v504
      %v953 = vunpack.c.l.b16 %v505
      %v954 = vunpack.c.l.b16 %v506
      %v955 = vunpack.c.l.b16 %v507
      %v956 = vunpack.c.l.b16 %v508
      %v957 = vunpack.c.l.b16 %v509
      %v958 = vunpack.c.l.b16 %v510
      %v959 = vunpack.c.l.b16 %v511
      %v960 = vunpack.c.l.b16 %v512
      %v961 = vunpack.c.l.b16 %v513
      %v962 = vunpack.c.l.b16 %v514
      %v963 = vunpack.c.l.b16 %v515
      %v964 = vunpack.c.l.b16 %v516
      %v965 = vunpack.c.l.b16 %v517
      %v966 = vunpack.c.l.b16 %v518
      %v967 = vunpack.c.l.b16 %v519
      %v968 = vunpack.c.l.b16 %v520
      %v969 = vunpack.c.l.b16 %v521
      %v970 = vunpack.c.l.b16 %v522
      %v971 = vunpack.c.l.b16 %v523
      %v972 = vunpack.c.l.b16 %v524
      %v973 = vunpack.c.l.b16 %v525
      %v974 = vunpack.c.l.b16 %v526
      %v975 = vunpack.c.l.b16 %v527
      %v976 = vunpack.c.l.b16 %v528
      %v977 = vunpack.c.l.b16 %v529
      %v978 = vunpack.c.l.b16 %v530
      %v979 = vpack.c.b16 %v948, %v947
      %v980 = vpack.c.b16 %v950, %v949
      %v981 = vpack.c.b16 %v952, %v951
      %v982 = vpack.c.b16 %v954, %v953
      %v983 = vpack.c.b16 %v956, %v955
      %v984 = vpack.c.b16 %v958, %v957
      %v985 = vpack.c.b16 %v960, %v959
      %v986 = vpack.c.b16 %v962, %v961
      %v987 = vpack.c.b16 %v964, %v963
      %v988 = vpack.c.b16 %v966, %v965
      %v989 = vpack.c.b16 %v968, %v967
      %v990 = vpack.c.b16 %v970, %v969
      %v991 = vpack.c.b16 %v972, %v971
      %v992 = vpack.c.b16 %v974, %v973
      %v993 = vpack.c.b16 %v976, %v975
      %v994 = vpack.c.b16 %v978, %v977
      %v1011 = vld [vmem:[%s5] sm:$0xf]
      %v1012 = vld [vmem:[%s5 + $0x4] sm:$0xf]
      %v1013 = vld [vmem:[%s5 + $0x8] sm:$0xf]
      %v1014 = vld [vmem:[%s5 + $0xc] sm:$0xf]
      %v1015 = vld [vmem:[%s5 + $0x10] sm:$0xf]
      %v1016 = vld [vmem:[%s5 + $0x14] sm:$0xf]
      %v1017 = vld [vmem:[%s5 + $0x18] sm:$0xf]
      %v1018 = vld [vmem:[%s5 + $0x1c] sm:$0xf]
      %v1019 = vld [vmem:[%s5 + $0x20] sm:$0xf]
      %v1020 = vld [vmem:[%s5 + $0x24] sm:$0xf]
      %v1021 = vld [vmem:[%s5 + $0x28] sm:$0xf]
      %v1022 = vld [vmem:[%s5 + $0x2c] sm:$0xf]
      %v1023 = vld [vmem:[%s5 + $0x30] sm:$0xf]
      %v1024 = vld [vmem:[%s5 + $0x34] sm:$0xf]
      %v1025 = vld [vmem:[%s5 + $0x38] sm:$0xf]
      %v1026 = vld [vmem:[%s5 + $0x3c] sm:$0xf]
      %v1027 = vld [vmem:[%s5 + $0x40] sm:$0xf]
      %v1028 = vld [vmem:[%s5 + $0x44] sm:$0xf]
      %v1029 = vld [vmem:[%s5 + $0x48] sm:$0xf]
      %v1030 = vld [vmem:[%s5 + $0x4c] sm:$0xf]
      %v1031 = vld [vmem:[%s5 + $0x50] sm:$0xf]
      %v1032 = vld [vmem:[%s5 + $0x54] sm:$0xf]
      %v1033 = vld [vmem:[%s5 + $0x58] sm:$0xf]
      %v1034 = vld [vmem:[%s5 + $0x5c] sm:$0xf]
      %v1035 = vld [vmem:[%s5 + $0x60] sm:$0xf]
      %v1036 = vld [vmem:[%s5 + $0x64] sm:$0xf]
      %v1037 = vld [vmem:[%s5 + $0x68] sm:$0xf]
      %v1038 = vld [vmem:[%s5 + $0x6c] sm:$0xf]
      %v1039 = vld [vmem:[%s5 + $0x70] sm:$0xf]
      %v1040 = vld [vmem:[%s5 + $0x74] sm:$0xf]
      %v1041 = vld [vmem:[%s5 + $0x78] sm:$0xf]
      %v1042 = vld [vmem:[%s5 + $0x7c] sm:$0xf]
      %v1043 = vld [vmem:[%s5 + $0x80] sm:$0xf]
      %v1044 = vld [vmem:[%s5 + $0x84] sm:$0xf]
      %v1045 = vld [vmem:[%s5 + $0x88] sm:$0xf]
      %v1046 = vld [vmem:[%s5 + $0x8c] sm:$0xf]
      %v1047 = vld [vmem:[%s5 + $0x90] sm:$0xf]
      %v1048 = vld [vmem:[%s5 + $0x94] sm:$0xf]
      %v1049 = vld [vmem:[%s5 + $0x98] sm:$0xf]
      %v1050 = vld [vmem:[%s5 + $0x9c] sm:$0xf]
      %v1051 = vld [vmem:[%s5 + $0xa0] sm:$0xf]
      %v1052 = vld [vmem:[%s5 + $0xa4] sm:$0xf]
      %v1053 = vld [vmem:[%s5 + $0xa8] sm:$0xf]
      %v1054 = vld [vmem:[%s5 + $0xac] sm:$0xf]
      %v1055 = vld [vmem:[%s5 + $0xb0] sm:$0xf]
      %v1056 = vld [vmem:[%s5 + $0xb4] sm:$0xf]
      %v1057 = vld [vmem:[%s5 + $0xb8] sm:$0xf]
      %v1058 = vld [vmem:[%s5 + $0xbc] sm:$0xf]
      %v1059 = vld [vmem:[%s5 + $0xc0] sm:$0xf]
      %v1060 = vld [vmem:[%s5 + $0xc4] sm:$0xf]
      %v1061 = vld [vmem:[%s5 + $0xc8] sm:$0xf]
      %v1062 = vld [vmem:[%s5 + $0xcc] sm:$0xf]
      %v1063 = vld [vmem:[%s5 + $0xd0] sm:$0xf]
      %v1064 = vld [vmem:[%s5 + $0xd4] sm:$0xf]
      %v1065 = vld [vmem:[%s5 + $0xd8] sm:$0xf]
      %v1066 = vld [vmem:[%s5 + $0xdc] sm:$0xf]
      %v1067 = vld [vmem:[%s5 + $0xe0] sm:$0xf]
      %v1068 = vld [vmem:[%s5 + $0xe4] sm:$0xf]
      %v1069 = vld [vmem:[%s5 + $0xe8] sm:$0xf]
      %v1070 = vld [vmem:[%s5 + $0xec] sm:$0xf]
      %v1071 = vld [vmem:[%s5 + $0xf0] sm:$0xf]
      %v1072 = vld [vmem:[%s5 + $0xf4] sm:$0xf]
      %v1073 = vld [vmem:[%s5 + $0xf8] sm:$0xf]
      %v1074 = vld [vmem:[%s5 + $0xfc] sm:$0xf]
      %v1075 = vld [vmem:[%s5 + $0x100] sm:$0xf]
      %v1076 = vld [vmem:[%s5 + $0x104] sm:$0xf]
      %v1077 = vld [vmem:[%s5 + $0x108] sm:$0xf]
      %v1078 = vld [vmem:[%s5 + $0x10c] sm:$0xf]
      %v1079 = vld [vmem:[%s5 + $0x110] sm:$0xf]
      %v1080 = vld [vmem:[%s5 + $0x114] sm:$0xf]
      %v1081 = vld [vmem:[%s5 + $0x118] sm:$0xf]
      %v1082 = vld [vmem:[%s5 + $0x11c] sm:$0xf]
      %v1083 = vld [vmem:[%s5 + $0x120] sm:$0xf]
      %v1084 = vld [vmem:[%s5 + $0x124] sm:$0xf]
      %v1085 = vld [vmem:[%s5 + $0x128] sm:$0xf]
      %v1086 = vld [vmem:[%s5 + $0x12c] sm:$0xf]
      %v1087 = vld [vmem:[%s5 + $0x130] sm:$0xf]
      %v1088 = vld [vmem:[%s5 + $0x134] sm:$0xf]
      %v1089 = vld [vmem:[%s5 + $0x138] sm:$0xf]
      %v1090 = vld [vmem:[%s5 + $0x13c] sm:$0xf]
      %v1091 = vld [vmem:[%s6] sm:$0x1]
      %v1093 = vlaneseq
      %v1094 = vshrl.u32 %v1093, 7
      %v1095 = vsub.s32 0, %v1094
      %v1096 = vrot.slane %v1091, %v1095
      %v1178 = vunpack.c.l.b16 %v1011
      %v1179 = vunpack.c.l.b16 %v1012
      %v1180 = vunpack.c.l.b16 %v1013
      %v1181 = vunpack.c.l.b16 %v1014
      %v1182 = vunpack.c.l.b16 %v1015
      %v1183 = vunpack.c.l.b16 %v1016
      %v1184 = vunpack.c.l.b16 %v1017
      %v1185 = vunpack.c.l.b16 %v1018
      %v1186 = vunpack.c.l.b16 %v1019
      %v1187 = vunpack.c.l.b16 %v1020
      %v1188 = vunpack.c.l.b16 %v1021
      %v1189 = vunpack.c.l.b16 %v1022
      %v1190 = vunpack.c.l.b16 %v1023
      %v1191 = vunpack.c.l.b16 %v1024
      %v1192 = vunpack.c.l.b16 %v1025
      %v1193 = vunpack.c.l.b16 %v1026
      %v1194 = vunpack.c.l.b16 %v1027
      %v1195 = vunpack.c.l.b16 %v1028
      %v1196 = vunpack.c.l.b16 %v1029
      %v1197 = vunpack.c.l.b16 %v1030
      %v1198 = vunpack.c.l.b16 %v1031
      %v1199 = vunpack.c.l.b16 %v1032
      %v1200 = vunpack.c.l.b16 %v1033
      %v1201 = vunpack.c.l.b16 %v1034
      %v1202 = vunpack.c.l.b16 %v1035
      %v1203 = vunpack.c.l.b16 %v1036
      %v1204 = vunpack.c.l.b16 %v1037
      %v1205 = vunpack.c.l.b16 %v1038
      %v1206 = vunpack.c.l.b16 %v1039
      %v1207 = vunpack.c.l.b16 %v1040
      %v1208 = vunpack.c.l.b16 %v1041
      %v1209 = vunpack.c.l.b16 %v1042
      %v1210 = vunpack.c.l.b16 %v1043
      %v1211 = vunpack.c.l.b16 %v1044
      %v1212 = vunpack.c.l.b16 %v1045
      %v1213 = vunpack.c.l.b16 %v1046
      %v1214 = vunpack.c.l.b16 %v1047
      %v1215 = vunpack.c.l.b16 %v1048
      %v1216 = vunpack.c.l.b16 %v1049
      %v1217 = vunpack.c.l.b16 %v1050
      %v1218 = vunpack.c.l.b16 %v1051
      %v1219 = vunpack.c.l.b16 %v1052
      %v1220 = vunpack.c.l.b16 %v1053
      %v1221 = vunpack.c.l.b16 %v1054
      %v1222 = vunpack.c.l.b16 %v1055
      %v1223 = vunpack.c.l.b16 %v1056
      %v1224 = vunpack.c.l.b16 %v1057
      %v1225 = vunpack.c.l.b16 %v1058
      %v1226 = vunpack.c.l.b16 %v1059
      %v1227 = vunpack.c.l.b16 %v1060
      %v1228 = vunpack.c.l.b16 %v1061
      %v1229 = vunpack.c.l.b16 %v1062
      %v1230 = vunpack.c.l.b16 %v1063
      %v1231 = vunpack.c.l.b16 %v1064
      %v1232 = vunpack.c.l.b16 %v1065
      %v1233 = vunpack.c.l.b16 %v1066
      %v1234 = vunpack.c.l.b16 %v1067
      %v1235 = vunpack.c.l.b16 %v1068
      %v1236 = vunpack.c.l.b16 %v1069
      %v1237 = vunpack.c.l.b16 %v1070
      %v1238 = vunpack.c.l.b16 %v1071
      %v1239 = vunpack.c.l.b16 %v1072
      %v1240 = vunpack.c.l.b16 %v1073
      %v1241 = vunpack.c.l.b16 %v1074
      %v1242 = vunpack.c.l.b16 %v1075
      %v1243 = vunpack.c.l.b16 %v1076
      %v1244 = vunpack.c.l.b16 %v1077
      %v1245 = vunpack.c.l.b16 %v1078
      %v1246 = vunpack.c.l.b16 %v1079
      %v1247 = vunpack.c.l.b16 %v1080
      %v1248 = vunpack.c.l.b16 %v1081
      %v1249 = vunpack.c.l.b16 %v1082
      %v1250 = vunpack.c.l.b16 %v1083
      %v1251 = vunpack.c.l.b16 %v1084
      %v1252 = vunpack.c.l.b16 %v1085
      %v1253 = vunpack.c.l.b16 %v1086
      %v1254 = vunpack.c.l.b16 %v1087
      %v1255 = vunpack.c.l.b16 %v1088
      %v1256 = vunpack.c.l.b16 %v1089
      %v1257 = vunpack.c.l.b16 %v1090
      %v1258 = vpack.c.b16 %v1179, %v1178
      %v1259 = vpack.c.b16 %v1181, %v1180
      %v1260 = vpack.c.b16 %v1183, %v1182
      %v1261 = vpack.c.b16 %v1185, %v1184
      %v1262 = vpack.c.b16 %v1187, %v1186
      %v1263 = vpack.c.b16 %v1189, %v1188
      %v1264 = vpack.c.b16 %v1191, %v1190
      %v1265 = vpack.c.b16 %v1193, %v1192
      %v1266 = vpack.c.b16 %v1195, %v1194
      %v1267 = vpack.c.b16 %v1197, %v1196
      %v1268 = vpack.c.b16 %v1199, %v1198
      %v1269 = vpack.c.b16 %v1201, %v1200
      %v1270 = vpack.c.b16 %v1203, %v1202
      %v1271 = vpack.c.b16 %v1205, %v1204
      %v1272 = vpack.c.b16 %v1207, %v1206
      %v1273 = vpack.c.b16 %v1209, %v1208
      %v1274 = vpack.c.b16 %v1211, %v1210
      %v1275 = vpack.c.b16 %v1213, %v1212
      %v1276 = vpack.c.b16 %v1215, %v1214
      %v1277 = vpack.c.b16 %v1217, %v1216
      %v1278 = vpack.c.b16 %v1219, %v1218
      %v1279 = vpack.c.b16 %v1221, %v1220
      %v1280 = vpack.c.b16 %v1223, %v1222
      %v1281 = vpack.c.b16 %v1225, %v1224
      %v1282 = vpack.c.b16 %v1227, %v1226
      %v1283 = vpack.c.b16 %v1229, %v1228
      %v1284 = vpack.c.b16 %v1231, %v1230
      %v1285 = vpack.c.b16 %v1233, %v1232
      %v1286 = vpack.c.b16 %v1235, %v1234
      %v1287 = vpack.c.b16 %v1237, %v1236
      %v1288 = vpack.c.b16 %v1239, %v1238
      %v1289 = vpack.c.b16 %v1241, %v1240
      %v1290 = vpack.c.b16 %v1243, %v1242
      %v1291 = vpack.c.b16 %v1245, %v1244
      %v1292 = vpack.c.b16 %v1247, %v1246
      %v1293 = vpack.c.b16 %v1249, %v1248
      %v1294 = vpack.c.b16 %v1251, %v1250
      %v1295 = vpack.c.b16 %v1253, %v1252
      %v1296 = vpack.c.b16 %v1255, %v1254
      %v1297 = vpack.c.b16 %v1257, %v1256
      %1338 = vmatprep.subr.bf16.mxu0 0
      %1339 = vmatpush1.bf16.msra.mxu0 %v1265
      %1340 = vmatprep.subr.bf16.mxu0 0
      %1341 = vmatpush1.bf16.msra.mxu0 %v1264
      %1342 = vmatprep.subr.bf16.mxu0 0
      %1343 = vmatpush1.bf16.msra.mxu0 %v1263
      %1344 = vmatprep.subr.bf16.mxu0 0
      %1345 = vmatpush1.bf16.msra.mxu0 %v1262
      %1346 = vmatprep.subr.bf16.mxu0 0
      %1347 = vmatpush1.bf16.msra.mxu0 %v1261
      %1348 = vmatprep.subr.bf16.mxu0 0
      %1349 = vmatpush1.bf16.msra.mxu0 %v1260
      %1350 = vmatprep.subr.bf16.mxu0 0
      %1351 = vmatpush1.bf16.msra.mxu0 %v1259
      %1352 = vmatprep.subr.bf16.mxu0 0
      %1353 = vmatpush1.bf16.msra.mxu0 %v1258
      %1354 = vmatprep.subr.bf16.mxu0 0
      %1355 = vmatpush2.bf16.msra.mxu0 %v1273
      %1356 = vmatprep.subr.bf16.mxu0 0
      %1357 = vmatpush2.bf16.msra.mxu0 %v1272
      %1358 = vmatprep.subr.bf16.mxu0 0
      %1359 = vmatpush2.bf16.msra.mxu0 %v1271
      %1360 = vmatprep.subr.bf16.mxu0 0
      %1361 = vmatpush2.bf16.msra.mxu0 %v1270
      %1362 = vmatprep.subr.bf16.mxu0 0
      %1363 = vmatpush2.bf16.msra.mxu0 %v1269
      %1364 = vmatprep.subr.bf16.mxu0 0
      %1365 = vmatpush2.bf16.msra.mxu0 %v1268
      %1366 = vmatprep.subr.bf16.mxu0 0
      %1367 = vmatpush2.bf16.msra.mxu0 %v1267
      %1368 = vmatprep.subr.bf16.mxu0 0
      %1369 = vmatpush2.bf16.msra.mxu0 %v1266
      %1370 = vmatprep.mubr.bf16.mxu0 %v691
      %1371 = vmatmul.mubr.bf16.gmra.mxu0 %v595
      %v1372 = vpop.f32.mrf.mxu0
      %v1373 = vadd.f32 %v1096, %v1372
      %v1374 = vpop.f32.mrf.mxu0
      %v1375 = vpop.f32.mrf.mxu0
      %v1376 = vadd.f32 %v1096, %v1375
      %v1377 = vpop.f32.mrf.mxu0
      %1378 = vmatprep.mubr.bf16.mxu0 %v692
      %1379 = vmatmul.mubr.bf16.gmra.mxu0 %v596
      %v1380 = vpop.f32.mrf.mxu0
      %v1381 = vadd.f32 %v1096, %v1380
      %v1382 = vpop.f32.mrf.mxu0
      %v1383 = vpop.f32.mrf.mxu0
      %v1384 = vadd.f32 %v1096, %v1383
      %v1385 = vpop.f32.mrf.mxu0
      %1386 = vmatprep.mubr.bf16.mxu0 %v693
      %1387 = vmatmul.mubr.bf16.gmra.mxu0 %v597
      %v1388 = vpop.f32.mrf.mxu0
      %v1389 = vadd.f32 %v1096, %v1388
      %v1390 = vpop.f32.mrf.mxu0
      %v1391 = vpop.f32.mrf.mxu0
      %v1392 = vadd.f32 %v1096, %v1391
      %v1393 = vpop.f32.mrf.mxu0
      %1394 = vmatprep.mubr.bf16.mxu0 %v694
      %1395 = vmatmul.mubr.bf16.gmra.mxu0 %v598
      %v1396 = vpop.f32.mrf.mxu0
      %v1397 = vadd.f32 %v1096, %v1396
      %v1398 = vpop.f32.mrf.mxu0
      %v1399 = vpop.f32.mrf.mxu0
      %v1400 = vadd.f32 %v1096, %v1399
      %v1401 = vpop.f32.mrf.mxu0
      %1402 = vmatprep.mubr.bf16.mxu0 %v695
      %1403 = vmatmul.mubr.bf16.gmra.mxu0 %v599
      %v1404 = vpop.f32.mrf.mxu0
      %v1405 = vadd.f32 %v1096, %v1404
      %v1406 = vpop.f32.mrf.mxu0
      %v1407 = vpop.f32.mrf.mxu0
      %v1408 = vadd.f32 %v1096, %v1407
      %v1409 = vpop.f32.mrf.mxu0
      %1410 = vmatprep.mubr.bf16.mxu0 %v696
      %1411 = vmatmul.mubr.bf16.gmra.mxu0 %v600
      %v1412 = vpop.f32.mrf.mxu0
      %v1413 = vadd.f32 %v1096, %v1412
      %v1414 = vpop.f32.mrf.mxu0
      %v1415 = vpop.f32.mrf.mxu0
      %v1416 = vadd.f32 %v1096, %v1415
      %v1417 = vpop.f32.mrf.mxu0
      %1418 = vmatprep.mubr.bf16.mxu0 %v697
      %1419 = vmatmul.mubr.bf16.gmra.mxu0 %v601
      %v1420 = vpop.f32.mrf.mxu0
      %v1421 = vadd.f32 %v1096, %v1420
      %v1422 = vpop.f32.mrf.mxu0
      %v1423 = vpop.f32.mrf.mxu0
      %v1424 = vadd.f32 %v1096, %v1423
      %v1425 = vpop.f32.mrf.mxu0
      %1426 = vmatprep.mubr.bf16.mxu0 %v698
      %1427 = vmatmul.mubr.bf16.gmra.mxu0 %v602
      %v1428 = vpop.f32.mrf.mxu0
      %v1429 = vadd.f32 %v1096, %v1428
      %v1430 = vpop.f32.mrf.mxu0
      %v1431 = vpop.f32.mrf.mxu0
      %v1432 = vadd.f32 %v1096, %v1431
      %v1433 = vpop.f32.mrf.mxu0
      %1434 = vmatprep.mubr.bf16.mxu0 %v699
      %1435 = vmatmul.mubr.bf16.gmra.mxu0 %v603
      %v1436 = vpop.f32.mrf.mxu0
      %v1437 = vadd.f32 %v1096, %v1436
      %v1438 = vpop.f32.mrf.mxu0
      %v1439 = vpop.f32.mrf.mxu0
      %v1440 = vadd.f32 %v1096, %v1439
      %v1441 = vpop.f32.mrf.mxu0
      %1442 = vmatprep.mubr.bf16.mxu0 %v700
      %1443 = vmatmul.mubr.bf16.gmra.mxu0 %v604
      %v1444 = vpop.f32.mrf.mxu0
      %v1445 = vadd.f32 %v1096, %v1444
      %v1446 = vpop.f32.mrf.mxu0
      %v1447 = vpop.f32.mrf.mxu0
      %v1448 = vadd.f32 %v1096, %v1447
      %v1449 = vpop.f32.mrf.mxu0
      %1450 = vmatprep.mubr.bf16.mxu0 %v701
      %1451 = vmatmul.mubr.bf16.gmra.mxu0 %v605
      %v1452 = vpop.f32.mrf.mxu0
      %v1453 = vadd.f32 %v1096, %v1452
      %v1454 = vpop.f32.mrf.mxu0
      %v1455 = vpop.f32.mrf.mxu0
      %v1456 = vadd.f32 %v1096, %v1455
      %v1457 = vpop.f32.mrf.mxu0
      %1458 = vmatprep.mubr.bf16.mxu0 %v702
      %1459 = vmatmul.mubr.bf16.gmra.mxu0 %v606
      %v1460 = vpop.f32.mrf.mxu0
      %v1461 = vadd.f32 %v1096, %v1460
      %v1462 = vpop.f32.mrf.mxu0
      %v1463 = vpop.f32.mrf.mxu0
      %v1464 = vadd.f32 %v1096, %v1463
      %v1465 = vpop.f32.mrf.mxu0
      %1466 = vmatprep.mubr.bf16.mxu0 %v703
      %1467 = vmatmul.mubr.bf16.gmra.mxu0 %v607
      %v1468 = vpop.f32.mrf.mxu0
      %v1469 = vadd.f32 %v1096, %v1468
      %v1470 = vpop.f32.mrf.mxu0
      %v1471 = vpop.f32.mrf.mxu0
      %v1472 = vadd.f32 %v1096, %v1471
      %v1473 = vpop.f32.mrf.mxu0
      %1474 = vmatprep.mubr.bf16.mxu0 %v704
      %1475 = vmatmul.mubr.bf16.gmra.mxu0 %v608
      %v1476 = vpop.f32.mrf.mxu0
      %v1477 = vadd.f32 %v1096, %v1476
      %v1478 = vpop.f32.mrf.mxu0
      %v1479 = vpop.f32.mrf.mxu0
      %v1480 = vadd.f32 %v1096, %v1479
      %v1481 = vpop.f32.mrf.mxu0
      %1482 = vmatprep.mubr.bf16.mxu0 %v705
      %1483 = vmatmul.mubr.bf16.gmra.mxu0 %v609
      %v1484 = vpop.f32.mrf.mxu0
      %v1485 = vadd.f32 %v1096, %v1484
      %v1486 = vpop.f32.mrf.mxu0
      %v1487 = vpop.f32.mrf.mxu0
      %v1488 = vadd.f32 %v1096, %v1487
      %v1489 = vpop.f32.mrf.mxu0
      %1490 = vmatprep.mubr.bf16.mxu0 %v706
      %1491 = vmatmul.mubr.bf16.gmra.mxu0 %v610
      %v1492 = vpop.f32.mrf.mxu0
      %v1493 = vadd.f32 %v1096, %v1492
      %v1494 = vpop.f32.mrf.mxu0
      %v1495 = vpop.f32.mrf.mxu0
      %v1496 = vadd.f32 %v1096, %v1495
      %v1497 = vpop.f32.mrf.mxu0
      %1498 = vdwg.mxu0
      %1499 = vmatprep.subr.bf16.mxu0 0
      %1500 = vmatpush1.bf16.msra.mxu0 %v1281
      %1501 = vmatprep.subr.bf16.mxu0 0
      %1502 = vmatpush1.bf16.msra.mxu0 %v1280
      %1503 = vmatprep.subr.bf16.mxu0 0
      %1504 = vmatpush1.bf16.msra.mxu0 %v1279
      %1505 = vmatprep.subr.bf16.mxu0 0
      %1506 = vmatpush1.bf16.msra.mxu0 %v1278
      %1507 = vmatprep.subr.bf16.mxu0 0
      %1508 = vmatpush1.bf16.msra.mxu0 %v1277
      %1509 = vmatprep.subr.bf16.mxu0 0
      %1510 = vmatpush1.bf16.msra.mxu0 %v1276
      %1511 = vmatprep.subr.bf16.mxu0 0
      %1512 = vmatpush1.bf16.msra.mxu0 %v1275
      %1513 = vmatprep.subr.bf16.mxu0 0
      %1514 = vmatpush1.bf16.msra.mxu0 %v1274
      %1515 = vmatprep.subr.bf16.mxu0 0
      %1516 = vmatpush2.bf16.msra.mxu0 %v1289
      %1517 = vmatprep.subr.bf16.mxu0 0
      %1518 = vmatpush2.bf16.msra.mxu0 %v1288
      %1519 = vmatprep.subr.bf16.mxu0 0
      %1520 = vmatpush2.bf16.msra.mxu0 %v1287
      %1521 = vmatprep.subr.bf16.mxu0 0
      %1522 = vmatpush2.bf16.msra.mxu0 %v1286
      %1523 = vmatprep.subr.bf16.mxu0 0
      %1524 = vmatpush2.bf16.msra.mxu0 %v1285
      %1525 = vmatprep.subr.bf16.mxu0 0
      %1526 = vmatpush2.bf16.msra.mxu0 %v1284
      %1527 = vmatprep.subr.bf16.mxu0 0
      %1528 = vmatpush2.bf16.msra.mxu0 %v1283
      %1529 = vmatprep.subr.bf16.mxu0 0
      %1530 = vmatpush2.bf16.msra.mxu0 %v1282
      %1531 = vmatprep.mubr.bf16.mxu0 %v883
      %1532 = vmatmul.mubr.bf16.gmra.mxu0 %v787
      %v1533 = vpop.f32.mrf.mxu0
      %v1534 = vadd.f32 %v1373, %v1533
      %v1535 = vpop.f32.mrf.mxu0
      %v1536 = vpop.f32.mrf.mxu0
      %v1537 = vadd.f32 %v1376, %v1536
      %v1538 = vpop.f32.mrf.mxu0
      %1539 = vmatprep.mubr.bf16.mxu0 %v884
      %1540 = vmatmul.mubr.bf16.gmra.mxu0 %v788
      %v1541 = vpop.f32.mrf.mxu0
      %v1542 = vadd.f32 %v1381, %v1541
      %v1543 = vpop.f32.mrf.mxu0
      %v1544 = vpop.f32.mrf.mxu0
      %v1545 = vadd.f32 %v1384, %v1544
      %v1546 = vpop.f32.mrf.mxu0
      %1547 = vmatprep.mubr.bf16.mxu0 %v885
      %1548 = vmatmul.mubr.bf16.gmra.mxu0 %v789
      %v1549 = vpop.f32.mrf.mxu0
      %v1550 = vadd.f32 %v1389, %v1549
      %v1551 = vpop.f32.mrf.mxu0
      %v1552 = vpop.f32.mrf.mxu0
      %v1553 = vadd.f32 %v1392, %v1552
      %v1554 = vpop.f32.mrf.mxu0
      %1555 = vmatprep.mubr.bf16.mxu0 %v886
      %1556 = vmatmul.mubr.bf16.gmra.mxu0 %v790
      %v1557 = vpop.f32.mrf.mxu0
      %v1558 = vadd.f32 %v1397, %v1557
      %v1559 = vpop.f32.mrf.mxu0
      %v1560 = vpop.f32.mrf.mxu0
      %v1561 = vadd.f32 %v1400, %v1560
      %v1562 = vpop.f32.mrf.mxu0
      %1563 = vmatprep.mubr.bf16.mxu0 %v887
      %1564 = vmatmul.mubr.bf16.gmra.mxu0 %v791
      %v1565 = vpop.f32.mrf.mxu0
      %v1566 = vadd.f32 %v1405, %v1565
      %v1567 = vpop.f32.mrf.mxu0
      %v1568 = vpop.f32.mrf.mxu0
      %v1569 = vadd.f32 %v1408, %v1568
      %v1570 = vpop.f32.mrf.mxu0
      %1571 = vmatprep.mubr.bf16.mxu0 %v888
      %1572 = vmatmul.mubr.bf16.gmra.mxu0 %v792
      %v1573 = vpop.f32.mrf.mxu0
      %v1574 = vadd.f32 %v1413, %v1573
      %v1575 = vpop.f32.mrf.mxu0
      %v1576 = vpop.f32.mrf.mxu0
      %v1577 = vadd.f32 %v1416, %v1576
      %v1578 = vpop.f32.mrf.mxu0
      %1579 = vmatprep.mubr.bf16.mxu0 %v889
      %1580 = vmatmul.mubr.bf16.gmra.mxu0 %v793
      %v1581 = vpop.f32.mrf.mxu0
      %v1582 = vadd.f32 %v1421, %v1581
      %v1583 = vpop.f32.mrf.mxu0
      %v1584 = vpop.f32.mrf.mxu0
      %v1585 = vadd.f32 %v1424, %v1584
      %v1586 = vpop.f32.mrf.mxu0
      %1587 = vmatprep.mubr.bf16.mxu0 %v890
      %1588 = vmatmul.mubr.bf16.gmra.mxu0 %v794
      %v1589 = vpop.f32.mrf.mxu0
      %v1590 = vadd.f32 %v1429, %v1589
      %v1591 = vpop.f32.mrf.mxu0
      %v1592 = vpop.f32.mrf.mxu0
      %v1593 = vadd.f32 %v1432, %v1592
      %v1594 = vpop.f32.mrf.mxu0
      %1595 = vmatprep.mubr.bf16.mxu0 %v891
      %1596 = vmatmul.mubr.bf16.gmra.mxu0 %v795
      %v1597 = vpop.f32.mrf.mxu0
      %v1598 = vadd.f32 %v1437, %v1597
      %v1599 = vpop.f32.mrf.mxu0
      %v1600 = vpop.f32.mrf.mxu0
      %v1601 = vadd.f32 %v1440, %v1600
      %v1602 = vpop.f32.mrf.mxu0
      %1603 = vmatprep.mubr.bf16.mxu0 %v892
      %1604 = vmatmul.mubr.bf16.gmra.mxu0 %v796
      %v1605 = vpop.f32.mrf.mxu0
      %v1606 = vadd.f32 %v1445, %v1605
      %v1607 = vpop.f32.mrf.mxu0
      %v1608 = vpop.f32.mrf.mxu0
      %v1609 = vadd.f32 %v1448, %v1608
      %v1610 = vpop.f32.mrf.mxu0
      %1611 = vmatprep.mubr.bf16.mxu0 %v893
      %1612 = vmatmul.mubr.bf16.gmra.mxu0 %v797
      %v1613 = vpop.f32.mrf.mxu0
      %v1614 = vadd.f32 %v1453, %v1613
      %v1615 = vpop.f32.mrf.mxu0
      %v1616 = vpop.f32.mrf.mxu0
      %v1617 = vadd.f32 %v1456, %v1616
      %v1618 = vpop.f32.mrf.mxu0
      %1619 = vmatprep.mubr.bf16.mxu0 %v894
      %1620 = vmatmul.mubr.bf16.gmra.mxu0 %v798
      %v1621 = vpop.f32.mrf.mxu0
      %v1622 = vadd.f32 %v1461, %v1621
      %v1623 = vpop.f32.mrf.mxu0
      %v1624 = vpop.f32.mrf.mxu0
      %v1625 = vadd.f32 %v1464, %v1624
      %v1626 = vpop.f32.mrf.mxu0
      %1627 = vmatprep.mubr.bf16.mxu0 %v895
      %1628 = vmatmul.mubr.bf16.gmra.mxu0 %v799
      %v1629 = vpop.f32.mrf.mxu0
      %v1630 = vadd.f32 %v1469, %v1629
      %v1631 = vpop.f32.mrf.mxu0
      %v1632 = vpop.f32.mrf.mxu0
      %v1633 = vadd.f32 %v1472, %v1632
      %v1634 = vpop.f32.mrf.mxu0
      %1635 = vmatprep.mubr.bf16.mxu0 %v896
      %1636 = vmatmul.mubr.bf16.gmra.mxu0 %v800
      %v1637 = vpop.f32.mrf.mxu0
      %v1638 = vadd.f32 %v1477, %v1637
      %v1639 = vpop.f32.mrf.mxu0
      %v1640 = vpop.f32.mrf.mxu0
      %v1641 = vadd.f32 %v1480, %v1640
      %v1642 = vpop.f32.mrf.mxu0
      %1643 = vmatprep.mubr.bf16.mxu0 %v897
      %1644 = vmatmul.mubr.bf16.gmra.mxu0 %v801
      %v1645 = vpop.f32.mrf.mxu0
      %v1646 = vadd.f32 %v1485, %v1645
      %v1647 = vpop.f32.mrf.mxu0
      %v1648 = vpop.f32.mrf.mxu0
      %v1649 = vadd.f32 %v1488, %v1648
      %v1650 = vpop.f32.mrf.mxu0
      %1651 = vmatprep.mubr.bf16.mxu0 %v898
      %1652 = vmatmul.mubr.bf16.gmra.mxu0 %v802
      %v1653 = vpop.f32.mrf.mxu0
      %v1654 = vadd.f32 %v1493, %v1653
      %v1655 = vpop.f32.mrf.mxu0
      %v1656 = vpop.f32.mrf.mxu0
      %v1657 = vadd.f32 %v1496, %v1656
      %v1658 = vpop.f32.mrf.mxu0
      %1659 = vdwg.mxu0
      %1660 = vmatprep.subr.bf16.mxu0 0
      %1661 = vmatpush1.bf16.msra.mxu0 %v1297
      %1662 = vmatprep.subr.bf16.mxu0 0
      %1663 = vmatpush1.bf16.msra.mxu0 %v1296
      %1664 = vmatprep.subr.bf16.mxu0 0
      %1665 = vmatpush1.bf16.msra.mxu0 %v1295
      %1666 = vmatprep.subr.bf16.mxu0 0
      %1667 = vmatpush1.bf16.msra.mxu0 %v1294
      %1668 = vmatprep.subr.bf16.mxu0 0
      %1669 = vmatpush1.bf16.msra.mxu0 %v1293
      %1670 = vmatprep.subr.bf16.mxu0 0
      %1671 = vmatpush1.bf16.msra.mxu0 %v1292
      %1672 = vmatprep.subr.bf16.mxu0 0
      %1673 = vmatpush1.bf16.msra.mxu0 %v1291
      %1674 = vmatprep.subr.bf16.mxu0 0
      %1675 = vmatpush1.bf16.msra.mxu0 %v1290
      %1676 = vmatprep.subr.bf16.mxu0 0
      %1677 = vmatpush2.bf16.msra.mxu0 0
      %1678 = vmatprep.subr.bf16.mxu0 0
      %1679 = vmatpush2.bf16.msra.mxu0 0
      %1680 = vmatprep.subr.bf16.mxu0 0
      %1681 = vmatpush2.bf16.msra.mxu0 0
      %1682 = vmatprep.subr.bf16.mxu0 0
      %1683 = vmatpush2.bf16.msra.mxu0 0
      %1684 = vmatprep.subr.bf16.mxu0 0
      %1685 = vmatpush2.bf16.msra.mxu0 0
      %1686 = vmatprep.subr.bf16.mxu0 0
      %1687 = vmatpush2.bf16.msra.mxu0 0
      %1688 = vmatprep.subr.bf16.mxu0 0
      %1689 = vmatpush2.bf16.msra.mxu0 0
      %1690 = vmatprep.subr.bf16.mxu0 0
      %1691 = vmatpush2.bf16.msra.mxu0 0
      %1692 = vmatprep.mubr.bf16.mxu0 0
      %1693 = vmatmul.mubr.bf16.gmra.mxu0 %v979
      %v1694 = vpop.f32.mrf.mxu0
      %v1695 = vadd.f32 %v1534, %v1694
      %v1696 = vpop.f32.mrf.mxu0
      %v1697 = vpop.f32.mrf.mxu0
      %v1698 = vadd.f32 %v1537, %v1697
      %v1699 = vpop.f32.mrf.mxu0
      %1700 = vmatprep.mubr.bf16.mxu0 0
      %1701 = vmatmul.mubr.bf16.gmra.mxu0 %v980
      %v1702 = vpop.f32.mrf.mxu0
      %v1703 = vadd.f32 %v1542, %v1702
      %v1704 = vpop.f32.mrf.mxu0
      %v1705 = vpop.f32.mrf.mxu0
      %v1706 = vadd.f32 %v1545, %v1705
      %v1707 = vpop.f32.mrf.mxu0
      %1708 = vmatprep.mubr.bf16.mxu0 0
      %1709 = vmatmul.mubr.bf16.gmra.mxu0 %v981
      %v1710 = vpop.f32.mrf.mxu0
      %v1711 = vadd.f32 %v1550, %v1710
      %v1712 = vpop.f32.mrf.mxu0
      %v1713 = vpop.f32.mrf.mxu0
      %v1714 = vadd.f32 %v1553, %v1713
      %v1715 = vpop.f32.mrf.mxu0
      %1716 = vmatprep.mubr.bf16.mxu0 0
      %1717 = vmatmul.mubr.bf16.gmra.mxu0 %v982
      %v1718 = vpop.f32.mrf.mxu0
      %v1719 = vadd.f32 %v1558, %v1718
      %v1720 = vpop.f32.mrf.mxu0
      %v1721 = vpop.f32.mrf.mxu0
      %v1722 = vadd.f32 %v1561, %v1721
      %v1723 = vpop.f32.mrf.mxu0
      %1724 = vmatprep.mubr.bf16.mxu0 0
      %1725 = vmatmul.mubr.bf16.gmra.mxu0 %v983
      %v1726 = vpop.f32.mrf.mxu0
      %v1727 = vadd.f32 %v1566, %v1726
      %v1728 = vpop.f32.mrf.mxu0
      %v1729 = vpop.f32.mrf.mxu0
      %v1730 = vadd.f32 %v1569, %v1729
      %v1731 = vpop.f32.mrf.mxu0
      %1732 = vmatprep.mubr.bf16.mxu0 0
      %1733 = vmatmul.mubr.bf16.gmra.mxu0 %v984
      %v1734 = vpop.f32.mrf.mxu0
      %v1735 = vadd.f32 %v1574, %v1734
      %v1736 = vpop.f32.mrf.mxu0
      %v1737 = vpop.f32.mrf.mxu0
      %v1738 = vadd.f32 %v1577, %v1737
      %v1739 = vpop.f32.mrf.mxu0
      %1740 = vmatprep.mubr.bf16.mxu0 0
      %1741 = vmatmul.mubr.bf16.gmra.mxu0 %v985
      %v1742 = vpop.f32.mrf.mxu0
      %v1743 = vadd.f32 %v1582, %v1742
      %v1744 = vpop.f32.mrf.mxu0
      %v1745 = vpop.f32.mrf.mxu0
      %v1746 = vadd.f32 %v1585, %v1745
      %v1747 = vpop.f32.mrf.mxu0
      %1748 = vmatprep.mubr.bf16.mxu0 0
      %1749 = vmatmul.mubr.bf16.gmra.mxu0 %v986
      %v1750 = vpop.f32.mrf.mxu0
      %v1751 = vadd.f32 %v1590, %v1750
      %v1752 = vpop.f32.mrf.mxu0
      %v1753 = vpop.f32.mrf.mxu0
      %v1754 = vadd.f32 %v1593, %v1753
      %v1755 = vpop.f32.mrf.mxu0
      %1756 = vmatprep.mubr.bf16.mxu0 0
      %1757 = vmatmul.mubr.bf16.gmra.mxu0 %v987
      %v1758 = vpop.f32.mrf.mxu0
      %v1759 = vadd.f32 %v1598, %v1758
      %v1760 = vpop.f32.mrf.mxu0
      %v1761 = vpop.f32.mrf.mxu0
      %v1762 = vadd.f32 %v1601, %v1761
      %v1763 = vpop.f32.mrf.mxu0
      %1764 = vmatprep.mubr.bf16.mxu0 0
      %1765 = vmatmul.mubr.bf16.gmra.mxu0 %v988
      %v1766 = vpop.f32.mrf.mxu0
      %v1767 = vadd.f32 %v1606, %v1766
      %v1768 = vpop.f32.mrf.mxu0
      %v1769 = vpop.f32.mrf.mxu0
      %v1770 = vadd.f32 %v1609, %v1769
      %v1771 = vpop.f32.mrf.mxu0
      %1772 = vmatprep.mubr.bf16.mxu0 0
      %1773 = vmatmul.mubr.bf16.gmra.mxu0 %v989
      %v1774 = vpop.f32.mrf.mxu0
      %v1775 = vadd.f32 %v1614, %v1774
      %v1776 = vpop.f32.mrf.mxu0
      %v1777 = vpop.f32.mrf.mxu0
      %v1778 = vadd.f32 %v1617, %v1777
      %v1779 = vpop.f32.mrf.mxu0
      %1780 = vmatprep.mubr.bf16.mxu0 0
      %1781 = vmatmul.mubr.bf16.gmra.mxu0 %v990
      %v1782 = vpop.f32.mrf.mxu0
      %v1783 = vadd.f32 %v1622, %v1782
      %v1784 = vpop.f32.mrf.mxu0
      %v1785 = vpop.f32.mrf.mxu0
      %v1786 = vadd.f32 %v1625, %v1785
      %v1787 = vpop.f32.mrf.mxu0
      %1788 = vmatprep.mubr.bf16.mxu0 0
      %1789 = vmatmul.mubr.bf16.gmra.mxu0 %v991
      %v1790 = vpop.f32.mrf.mxu0
      %v1791 = vadd.f32 %v1630, %v1790
      %v1792 = vpop.f32.mrf.mxu0
      %v1793 = vpop.f32.mrf.mxu0
      %v1794 = vadd.f32 %v1633, %v1793
      %v1795 = vpop.f32.mrf.mxu0
      %1796 = vmatprep.mubr.bf16.mxu0 0
      %1797 = vmatmul.mubr.bf16.gmra.mxu0 %v992
      %v1798 = vpop.f32.mrf.mxu0
      %v1799 = vadd.f32 %v1638, %v1798
      %v1800 = vpop.f32.mrf.mxu0
      %v1801 = vpop.f32.mrf.mxu0
      %v1802 = vadd.f32 %v1641, %v1801
      %v1803 = vpop.f32.mrf.mxu0
      %1804 = vmatprep.mubr.bf16.mxu0 0
      %1805 = vmatmul.mubr.bf16.gmra.mxu0 %v993
      %v1806 = vpop.f32.mrf.mxu0
      %v1807 = vadd.f32 %v1646, %v1806
      %v1808 = vpop.f32.mrf.mxu0
      %v1809 = vpop.f32.mrf.mxu0
      %v1810 = vadd.f32 %v1649, %v1809
      %v1811 = vpop.f32.mrf.mxu0
      %1812 = vmatprep.mubr.bf16.mxu0 0
      %1813 = vmatmul.mubr.bf16.gmra.mxu0 %v994
      %v1814 = vpop.f32.mrf.mxu0
      %v1815 = vadd.f32 %v1654, %v1814
      %v1816 = vpop.f32.mrf.mxu0
      %v1817 = vpop.f32.mrf.mxu0
      %v1818 = vadd.f32 %v1657, %v1817
      %v1819 = vpop.f32.mrf.mxu0
      %1820 = vdwg.mxu0
      %1821 = vst [vmem:[%s368] sm:$0xff] %v1695
      %1822 = vst [vmem:[%s368 + $0x8] sm:$0xff] %v1698
      %1823 = vst [vmem:[%s368 + $0x10] sm:$0xff] %v1703
      %1824 = vst [vmem:[%s368 + $0x18] sm:$0xff] %v1706
      %1825 = vst [vmem:[%s368 + $0x20] sm:$0xff] %v1711
      %1826 = vst [vmem:[%s368 + $0x28] sm:$0xff] %v1714
      %1827 = vst [vmem:[%s368 + $0x30] sm:$0xff] %v1719
      %1828 = vst [vmem:[%s368 + $0x38] sm:$0xff] %v1722
      %1829 = vst [vmem:[%s368 + $0x40] sm:$0xff] %v1727
      %1830 = vst [vmem:[%s368 + $0x48] sm:$0xff] %v1730
      %1831 = vst [vmem:[%s368 + $0x50] sm:$0xff] %v1735
      %1832 = vst [vmem:[%s368 + $0x58] sm:$0xff] %v1738
      %1833 = vst [vmem:[%s368 + $0x60] sm:$0xff] %v1743
      %1834 = vst [vmem:[%s368 + $0x68] sm:$0xff] %v1746
      %1835 = vst [vmem:[%s368 + $0x70] sm:$0xff] %v1751
      %1836 = vst [vmem:[%s368 + $0x78] sm:$0xff] %v1754
      %1837 = vst [vmem:[%s368 + $0x80] sm:$0xff] %v1759
      %1838 = vst [vmem:[%s368 + $0x88] sm:$0xff] %v1762
      %1839 = vst [vmem:[%s368 + $0x90] sm:$0xff] %v1767
      %1840 = vst [vmem:[%s368 + $0x98] sm:$0xff] %v1770
      %1841 = vst [vmem:[%s368 + $0xa0] sm:$0xff] %v1775
      %1842 = vst [vmem:[%s368 + $0xa8] sm:$0xff] %v1778
      %1843 = vst [vmem:[%s368 + $0xb0] sm:$0xff] %v1783
      %1844 = vst [vmem:[%s368 + $0xb8] sm:$0xff] %v1786
      %1845 = vst [vmem:[%s368 + $0xc0] sm:$0xff] %v1791
      %1846 = vst [vmem:[%s368 + $0xc8] sm:$0xff] %v1794
      %1847 = vst [vmem:[%s368 + $0xd0] sm:$0xff] %v1799
      %1848 = vst [vmem:[%s368 + $0xd8] sm:$0xff] %v1802
      %1849 = vst [vmem:[%s368 + $0xe0] sm:$0xff] %v1807
      %1850 = vst [vmem:[%s368 + $0xe8] sm:$0xff] %v1810
      %1851 = vst [vmem:[%s368 + $0xf0] sm:$0xff] %v1815
      %1852 = vst [vmem:[%s368 + $0xf8] sm:$0xff] %v1818
      %s1853 = smul.u32 32, %s18
      %p1854 = scmp.lt.s32.totalorder %s1853, 63
      %s1855 = scalar_select %p1854, %s1853, 63
      %s1856 = smul.addr %s1855, 8
      %s1857 = scalar_lea.vmem %s7, %s1856
      // Predicated region
      $region49: #{gin_forward.25} parent=47 // pred_check
        %p1858 = pneg %p208
      $region50: #{gin_forward.25} parent=47 // pred_check_branch
        %1860 = sbr.rel (%p1858) target = $region52
      $region51: #{gin_forward.25} parent=47 // pred_region
        %s1861 = smul.u32 32, %s18
      $region52: #{gin_forward.25} parent=47 // pred_fallthru
        _
    $region48: #{gin_forward.25} parent=5 // pred_fallthru
      _
    %p1862 = scmp.le.s32.totalorder 2, %s13
    // Predicated region
    $region53: #{gin_forward.25} parent=5 // pred_check
      %p1863 = pneg %p1862
    $region54: #{gin_forward.25} parent=5 // pred_check_branch
      %1865 = sbr.rel (%p1863) target = $region56
    $region55: #{gin_forward.25} parent=5 // pred_region
      %s1866 = ssub.s32 %s13, 2
      // Predicated region
      $region57: #{gin_forward.25} parent=55 // pred_check
        %p1867 = pneg %p214
      $region58: #{gin_forward.25} parent=55 // pred_check_branch
        %1869 = sbr.rel (%p1867) target = $region60
      $region59: #{gin_forward.25} parent=55 // pred_region
        %s1870 = smul.u32 32, %s19
        %p1871 = scmp.lt.s32.totalorder %s1870, 63
        %s1872 = scalar_select %p1871, %s1870, 63
        %s1873 = smul.addr %s1872, 8
        %s1874 = scalar_lea.vmem %s7, %s1873
      $region60: #{gin_forward.25} parent=55 // pred_fallthru
        _
    $region56: #{gin_forward.25} parent=5 // pred_fallthru
      _
  $region6: #{gin_forward.25} parent=0 // loop_footer
    %s17 = sadd.s32 1, %s13
  $region7: #{gin_forward.25} parent=0 // loop_footer_branch
    %12 = sbr.rel target = $region3
  $region8: #{gin_forward.25} parent=0 // loop_exit
    _

</llo_original>
